<compile_context>
chip_gen: v6e
topology: v6e:2x2x1
jax: 0.10.0
libtpu: 0.0.40
codegen_flags: <defaults>
</compile_context>

<pallas_src>
import jax
import jax.numpy as jnp
from jax.experimental import pallas as pl
from jax.experimental.pallas import tpu as pltpu

# ---------------- model hyper-parameters (small synthetic config) -----------
B = 2            # batch
IMG = 16         # input spatial size (grayscale, 1 channel)
CNN_C = 16       # cnn_output_channel
CNN_H = 8        # cnn_final_height
CNN_W = 8        # cnn_final_width  (== GRU sequence length)
T = CNN_W
RNN_H = 32       # rnn_hidden_size
GRU_IN = CNN_C * CNN_H   # 128 features per time step (forward() semantics)

_VMEM = pl.BlockSpec(memory_space=pltpu.MemorySpace.VMEM)


# ============================ fused Pallas kernel ============================
def lightcnn_rnn_kernel(x_ref, w1_ref, b1_ref, wa_ref, ba_ref, wb_ref, bb_ref,
                        wih1_ref, bih1_ref, whh1_ref, bhh1_ref,
                        wih2_ref, bih2_ref, whh2_ref, bhh2_ref,
                        clsw_ref, clsb_ref, out_ref):
    f32, bf16 = jnp.float32, jnp.bfloat16
    H, G2, G6 = RNN_H, 2 * RNN_H, 6 * RNN_H

    # ================= CNN features (ModifiedLightCNN.features) =============
    # NCHW [B,1,16,16] -> rows (b, w), lanes h; done in-kernel (B=2 small 2-D
    # transposes), then zero-padded on w for the 5x5 conv.
    x_bwh = jnp.stack([x_ref[b, 0, :, :].T for b in range(B)], axis=0)  # [B,W,H]
    zw = jnp.zeros((B, 2, IMG), f32)
    xpad = jnp.concatenate([zw, x_bwh, zw], axis=1)                     # [B,W+4,H]

    # conv1 5x5 pad 2, Cin=1, MFM over 2x8: kh taps folded into banded weights,
    # the 5 kw taps concatenated along K -> ONE MXU push.
    slabs = [xpad[:, kw:kw + IMG, :].reshape(B * IMG, IMG) for kw in range(5)]
    xcat = jnp.concatenate(slabs, axis=1).astype(bf16)                  # [32, 80]
    a1 = jnp.dot(xcat, w1_ref[...], preferred_element_type=f32) + b1_ref[...]
    # columns are (half, dh_pool, h', c):
    c1 = jnp.maximum(a1[:, :128], a1[:, 128:])          # MFM               [32,128]
    c1 = jnp.maximum(c1[:, :64], c1[:, 64:])            # h-direction pool  [32, 64]
    c1 = c1.reshape(B * CNN_W, 2, 64)                   # rows -> (b*8+w', dw)
    pool = jnp.maximum(c1[:, 0, :], c1[:, 1, :])        # w-direction pool  [16, 64]

    # group1a 1x1 conv, MFM over 2x8: identity-expanded over h' -> one matmul.
    ga = jnp.dot(pool.astype(bf16), wa_ref[...],
                 preferred_element_type=f32) + ba_ref[...]
    p1a = jnp.maximum(ga[:, :64], ga[:, 64:])                           # [16, 64]

    # group1b 3x3 conv pad 1, MFM over 2x16: kh folded into banded weights, the
    # 3 kw taps concatenated along K -> one matmul; MFM output lands directly
    # in the lane-dense GRU-input layout (lane = h*CNN_C + c).
    p1a3 = p1a.reshape(B, CNN_W, 64)
    zb = jnp.zeros((B, 1, 64), f32)
    p1ap = jnp.concatenate([zb, p1a3, zb], axis=1)                      # [B,10,64]
    slabs_b = [p1ap[:, kw:kw + CNN_W, :].reshape(B * T, 64) for kw in range(3)]
    xbcat = jnp.concatenate(slabs_b, axis=1).astype(bf16)               # [16,192]
    gb = jnp.dot(xbcat, wb_ref[...], preferred_element_type=f32) + bb_ref[...]
    seq = jnp.maximum(gb[:, :128], gb[:, 128:])         # [B*T, 128], rows (b, t)

    # ================= 2-layer bidirectional GRU + classifier ================
    # Host-side gate packing: col = gate*2H + dir*H + u, gates (r, z, n), so
    # all lane slices below are contiguous (no per-step lane concats).
    col = jax.lax.broadcasted_iota(jnp.int32, (B, G6), 1)
    fwd_lanes = (col % G2) < H                                   # fwd-dir lanes
    first_half = jax.lax.broadcasted_iota(jnp.int32, (B, G2), 1) < H

    def run_layer(x_all, whh_ref_l, bhh_ref_l):
        # x_all [B*T, 6H] = W_ih x + b_ih for all steps, both directions.
        x3 = x_all.reshape(B, T, G6)
        whh = whh_ref_l[...]               # bf16 block-diag [2H, 6H] (hoisted)
        bhh = bhh_ref_l[...]
        hcat = jnp.zeros((B, G2), f32)     # [h_fwd | h_bwd]
        states = []
        for s in range(T):                 # fully unrolled, T = 8 (static)
            tb = T - 1 - s
            xg = jnp.where(fwd_lanes, x3[:, s, :], x3[:, tb, :])
            # one merged fwd+bwd recurrent matmul on the critical path
            hg = jnp.dot(hcat.astype(bf16), whh,
                         preferred_element_type=f32) + bhh
            rz = jax.nn.sigmoid(xg[:, :2 * G2] + hg[:, :2 * G2])
            r, z = rz[:, :G2], rz[:, G2:]
            n = jnp.tanh(xg[:, 2 * G2:] + r * hg[:, 2 * G2:])
            hcat = (1.0 - z) * n + z * hcat
            states.append(hcat)
        return states

    # layer 1: one hoisted input projection for all steps and both directions
    x1 = jnp.dot(seq.astype(bf16), wih1_ref[...],
                 preferred_element_type=f32) + bih1_ref[...]
    st1 = run_layer(x1, whh1_ref, bhh1_ref)
    # bidirectional layer-1 output, rows (b, t), lanes [h_f(t) | h_b(t)];
    # register-resident (no scratch, no partial stores).
    h1 = jnp.stack([jnp.where(first_half, st1[t], st1[T - 1 - t])
                    for t in range(T)], axis=1).reshape(B * T, G2)

    # layer 2 (nn.GRU inter-layer dropout=0.3 is a no-op at inference)
    x2 = jnp.dot(h1.astype(bf16), wih2_ref[...],
                 preferred_element_type=f32) + bih2_ref[...]
    st2 = run_layer(x2, whh2_ref, bhh2_ref)

    # classifier on rnn_output[:, -1, :] = [h_f(T-1) | h_b(T-1)]: one matmul.
    last = jnp.where(first_half, st2[T - 1], st2[0])              # [B, 2H]
    out_ref[...] = (jnp.dot(last.astype(bf16), clsw_ref[...],
                            preferred_element_type=f32) + clsb_ref[...])


# ============================ wrapper ========================================
@jax.jit
def lightcnn_rnn_forward(x, params):
    p = params
    return pl.pallas_call(
        lightcnn_rnn_kernel,
        out_shape=jax.ShapeDtypeStruct((B, 2), jnp.float32),
        in_specs=[_VMEM] * 17,
        out_specs=_VMEM,
    )(x, p["w1"], p["b1"], p["wa"], p["ba"], p["wb"], p["bb"],
      p["wih1"], p["bih1"], p["whh1"], p["bhh1"],
      p["wih2"], p["bih2"], p["whh2"], p["bhh2"],
      p["clsw"], p["clsb"])


# =============================== parameters ==================================
def init_params(key):
    keys = iter(jax.random.split(key, 32))

    def nrm(shape, scale=0.05):
        return scale * jax.random.normal(next(keys), shape, dtype=jnp.float32)

    bf16 = jnp.bfloat16

    # ---- conv1: 5x5, Cin=1, Cout=2x8 (MFM) ----------------------------------
    w1_pt = nrm((16, 1, 5, 5))                      # PyTorch conv weight layout
    b1_pt = nrm((16,))
    hi = jnp.arange(IMG)[None, :, None]
    ho = jnp.arange(IMG)[None, None, :]
    kh = jnp.arange(5)[:, None, None]
    band1 = (hi == ho + kh - 2).astype(jnp.float32)       # zero-pad band [5,16,16]
    band1 = band1.reshape(5, IMG, CNN_H, 2)               # h_out -> (h', dh_pool)
    w1h = w1_pt[:, 0].reshape(2, 8, 5, 5)                 # (half, c, kh, kw)
    # w1exp[(kw, h_in), (half, dh_pool, h', c)]
    w1exp = jnp.einsum("dipq,acdk->kiaqpc", band1, w1h).reshape(5 * IMG, 256)
    b1exp = jnp.broadcast_to(b1_pt.reshape(2, 1, 1, 8), (2, 2, 8, 8)).reshape(1, 256)

    # ---- group1a: 1x1, 8 -> 2x8 (MFM) ---------------------------------------
    wa_pt = nrm((16, 8))                                  # (cout_full, cin)
    ba_pt = nrm((16,))
    wah = wa_pt.reshape(2, 8, 8)                          # (half, cout, cin)
    waexp = jnp.einsum("hg,aoc->hcago",
                       jnp.eye(CNN_H, dtype=jnp.float32), wah).reshape(64, 128)
    baexp = jnp.broadcast_to(ba_pt.reshape(2, 1, 8), (2, 8, 8)).reshape(1, 128)

    # ---- group1b: 3x3 pad 1, 8 -> 2x16 (MFM) --------------------------------
    wb_pt = nrm((32, 8, 3, 3))                            # (cout_full, cin, kh, kw)
    bb_pt = nrm((32,))
    hi8 = jnp.arange(CNN_H)[None, :, None]
    ho8 = jnp.arange(CNN_H)[None, None, :]
    kh3 = jnp.arange(3)[:, None, None]
    band3 = (hi8 == ho8 + kh3 - 1).astype(jnp.float32)    # [3, 8, 8]
    wbh = wb_pt.reshape(2, CNN_C, 8, 3, 3)                # (half, cout, cin, kh, kw)
    # wbexp[(kw, h_in, cin), (half, h_out, cout)]
    wbexp = jnp.einsum("dig,aocdk->kicago", band3, wbh).reshape(3 * 64, 256)
    bbexp = jnp.broadcast_to(bb_pt.reshape(2, 1, CNN_C),
                             (2, CNN_H, CNN_C)).reshape(1, 256)

    # ---- GRU (2 layers, bidirectional, PyTorch (r,z,n) gate packing) --------
    H = RNN_H

    def pack_cols(wf, wb):
        # [..., 3H] fwd / bwd -> [..., 6H] with col = gate*2H + dir*H + u
        s = wf.shape[:-1]
        w = jnp.stack([wf.reshape(s + (3, H)), wb.reshape(s + (3, H))], axis=-2)
        return w.reshape(s + (6 * H,))

    def gru_layer(in_dim, row_perm=None):
        wih_f, whh_f = nrm((3 * H, in_dim)), nrm((3 * H, H))
        bih_f, bhh_f = nrm((3 * H,)), nrm((3 * H,))
        wih_b, whh_b = nrm((3 * H, in_dim)), nrm((3 * H, H))
        bih_b, bhh_b = nrm((3 * H,)), nrm((3 * H,))
        wih_fT, wih_bT = wih_f.T, wih_b.T
        if row_perm is not None:
            wih_fT, wih_bT = wih_fT[row_perm], wih_bT[row_perm]
        wih = pack_cols(wih_fT, wih_bT)                          # [in, 6H]
        zero = jnp.zeros((H, 3 * H), jnp.float32)
        whh = jnp.concatenate([pack_cols(whh_f.T, zero),         # block-diagonal
                               pack_cols(zero, whh_b.T)], axis=0)  # [2H, 6H]
        bih = pack_cols(bih_f[None, :], bih_b[None, :])
        bhh = pack_cols(bhh_f[None, :], bhh_b[None, :])
        return wih, bih, whh, bhh

    # CNN emits per-step features ordered h*C + c; PyTorch's permute+flatten
    # order is c*H + h -> permute layer-1 W_ih rows (host side, free).
    f = jnp.arange(GRU_IN)
    perm = (f % CNN_C) * CNN_H + (f // CNN_C)
    wih1, bih1, whh1, bhh1 = gru_layer(GRU_IN, perm)
    wih2, bih2, whh2, bhh2 = gru_layer(2 * H)

    # ---- classifier ----------------------------------------------------------
    cls_w = nrm((2, 2 * H))
    cls_b = nrm((2,))

    # matmul weights in bf16 (MXU-native on v6e/v7x, halves DMA); biases f32.
    return dict(
        w1=w1exp.astype(bf16), b1=b1exp,
        wa=waexp.astype(bf16), ba=baexp,
        wb=wbexp.astype(bf16), bb=bbexp,
        wih1=wih1.astype(bf16), bih1=bih1, whh1=whh1.astype(bf16), bhh1=bhh1,
        wih2=wih2.astype(bf16), bih2=bih2, whh2=whh2.astype(bf16), bhh2=bhh2,
        clsw=cls_w.T.astype(bf16), clsb=cls_b[None, :])


if __name__ == "__main__":
    key = jax.random.PRNGKey(0)
    pkey, xkey = jax.random.split(key)
    params = init_params(pkey)
    x = jax.random.normal(xkey, (B, 1, IMG, IMG), dtype=jnp.float32)

    out = lightcnn_rnn_forward(x, params)
    out = jax.block_until_ready(out)
    assert out.shape == (B, 2), out.shape
    assert bool(jnp.all(jnp.isfinite(out)))
    print("KERNEL_OK")
</pallas_src>

<mosaic_0001>
module attributes {stable_mosaic.version = 11 : i64} {
  func.func @lightcnn_rnn_kernel(%arg0: memref<2x1x16x16xf32, #tpu.memory_space<vmem>>, %arg1: memref<80x256xbf16, #tpu.memory_space<vmem>>, %arg2: memref<1x256xf32, #tpu.memory_space<vmem>>, %arg3: memref<64x128xbf16, #tpu.memory_space<vmem>>, %arg4: memref<1x128xf32, #tpu.memory_space<vmem>>, %arg5: memref<192x256xbf16, #tpu.memory_space<vmem>>, %arg6: memref<1x256xf32, #tpu.memory_space<vmem>>, %arg7: memref<128x192xbf16, #tpu.memory_space<vmem>>, %arg8: memref<1x192xf32, #tpu.memory_space<vmem>>, %arg9: memref<64x192xbf16, #tpu.memory_space<vmem>>, %arg10: memref<1x192xf32, #tpu.memory_space<vmem>>, %arg11: memref<64x192xbf16, #tpu.memory_space<vmem>>, %arg12: memref<1x192xf32, #tpu.memory_space<vmem>>, %arg13: memref<64x192xbf16, #tpu.memory_space<vmem>>, %arg14: memref<1x192xf32, #tpu.memory_space<vmem>>, %arg15: memref<64x2xbf16, #tpu.memory_space<vmem>>, %arg16: memref<1x2xf32, #tpu.memory_space<vmem>>, %arg17: memref<2x2xf32, #tpu.memory_space<vmem>>) attributes {dimension_semantics = [], scalar_prefetch = 0 : i64, scratch_operands = 0 : i64, tpu.core_type = #tpu.core_type<tc>} {
    %c0 = arith.constant 0 : index
    %c0_0 = arith.constant 0 : index
    %c0_1 = arith.constant 0 : index
    %c0_2 = arith.constant 0 : index
    %0 = vector.load %arg0[%c0, %c0_0, %c0_1, %c0_2] : memref<2x1x16x16xf32, #tpu.memory_space<vmem>>, vector<1x1x16x16xf32>
    %1 = vector.shape_cast %0 : vector<1x1x16x16xf32> to vector<16x16xf32>
    %2 = tpu.transpose %1, [1, 0] : vector<16x16xf32> -> vector<16x16xf32>
    %c1 = arith.constant 1 : index
    %c0_3 = arith.constant 0 : index
    %c0_4 = arith.constant 0 : index
    %c0_5 = arith.constant 0 : index
    %3 = vector.load %arg0[%c1, %c0_3, %c0_4, %c0_5] : memref<2x1x16x16xf32, #tpu.memory_space<vmem>>, vector<1x1x16x16xf32>
    %4 = vector.shape_cast %3 : vector<1x1x16x16xf32> to vector<16x16xf32>
    %5 = tpu.transpose %4, [1, 0] : vector<16x16xf32> -> vector<16x16xf32>
    %6 = vector.shape_cast %2 : vector<16x16xf32> to vector<1x16x16xf32>
    %7 = vector.shape_cast %5 : vector<16x16xf32> to vector<1x16x16xf32>
    %8 = tpu.concatenate %6, %7 in 0 : vector<1x16x16xf32>, vector<1x16x16xf32> -> vector<2x16x16xf32>
    %cst = arith.constant 0.000000e+00 : f32
    %9 = vector.broadcast %cst : f32 to vector<2x2x16xf32>
    %10 = tpu.concatenate %9, %8, %9 in 1 : vector<2x2x16xf32>, vector<2x16x16xf32>, vector<2x2x16xf32> -> vector<2x20x16xf32>
    %11 = vector.extract_strided_slice %10 {offsets = [0, 0, 0], sizes = [2, 16, 16], strides = [1, 1, 1]} : vector<2x20x16xf32> to vector<2x16x16xf32>
    %12 = vector.shape_cast %11 : vector<2x16x16xf32> to vector<32x16xf32>
    %13 = vector.extract_strided_slice %10 {offsets = [0, 1, 0], sizes = [2, 16, 16], strides = [1, 1, 1]} : vector<2x20x16xf32> to vector<2x16x16xf32>
    %14 = vector.shape_cast %13 : vector<2x16x16xf32> to vector<32x16xf32>
    %15 = vector.extract_strided_slice %10 {offsets = [0, 2, 0], sizes = [2, 16, 16], strides = [1, 1, 1]} : vector<2x20x16xf32> to vector<2x16x16xf32>
    %16 = vector.shape_cast %15 : vector<2x16x16xf32> to vector<32x16xf32>
    %17 = vector.extract_strided_slice %10 {offsets = [0, 3, 0], sizes = [2, 16, 16], strides = [1, 1, 1]} : vector<2x20x16xf32> to vector<2x16x16xf32>
    %18 = vector.shape_cast %17 : vector<2x16x16xf32> to vector<32x16xf32>
    %19 = vector.extract_strided_slice %10 {offsets = [0, 4, 0], sizes = [2, 16, 16], strides = [1, 1, 1]} : vector<2x20x16xf32> to vector<2x16x16xf32>
    %20 = vector.shape_cast %19 : vector<2x16x16xf32> to vector<32x16xf32>
    %21 = tpu.concatenate %12, %14, %16, %18, %20 in 1 : vector<32x16xf32>, vector<32x16xf32>, vector<32x16xf32>, vector<32x16xf32>, vector<32x16xf32> -> vector<32x80xf32>
    %22 = arith.truncf %21 : vector<32x80xf32> to vector<32x80xbf16>
    %c0_6 = arith.constant 0 : index
    %c0_7 = arith.constant 0 : index
    %23 = vector.load %arg1[%c0_6, %c0_7] : memref<80x256xbf16, #tpu.memory_space<vmem>>, vector<80x256xbf16>
    %cst_8 = arith.constant dense<0.000000e+00> : vector<32x256xf32>
    %24 = tpu.matmul %22, %23, %cst_8 {dimension_numbers = #tpu.dot_dimension_numbers<[1], [0], [0], [1], [0, 0, 1, 1], [], []>} : vector<32x80xbf16>, vector<80x256xbf16>, vector<32x256xf32> -> vector<32x256xf32>
    %c0_9 = arith.constant 0 : index
    %c0_10 = arith.constant 0 : index
    %25 = vector.load %arg2[%c0_9, %c0_10] : memref<1x256xf32, #tpu.memory_space<vmem>>, vector<1x256xf32>
    %26 = vector.broadcast %25 : vector<1x256xf32> to vector<32x256xf32>
    %27 = arith.addf %24, %26 : vector<32x256xf32>
    %28 = vector.extract_strided_slice %27 {offsets = [0, 0], sizes = [32, 128], strides = [1, 1]} : vector<32x256xf32> to vector<32x128xf32>
    %29 = vector.extract_strided_slice %27 {offsets = [0, 128], sizes = [32, 128], strides = [1, 1]} : vector<32x256xf32> to vector<32x128xf32>
    %30 = arith.maximumf %28, %29 : vector<32x128xf32>
    %31 = vector.extract_strided_slice %30 {offsets = [0, 0], sizes = [32, 64], strides = [1, 1]} : vector<32x128xf32> to vector<32x64xf32>
    %32 = vector.extract_strided_slice %30 {offsets = [0, 64], sizes = [32, 64], strides = [1, 1]} : vector<32x128xf32> to vector<32x64xf32>
    %33 = arith.maximumf %31, %32 : vector<32x64xf32>
    %34 = vector.shape_cast %33 : vector<32x64xf32> to vector<16x2x64xf32>
    %35 = vector.extract_strided_slice %34 {offsets = [0, 0, 0], sizes = [16, 1, 64], strides = [1, 1, 1]} : vector<16x2x64xf32> to vector<16x1x64xf32>
    %36 = vector.shape_cast %35 : vector<16x1x64xf32> to vector<16x64xf32>
    %37 = vector.extract_strided_slice %34 {offsets = [0, 1, 0], sizes = [16, 1, 64], strides = [1, 1, 1]} : vector<16x2x64xf32> to vector<16x1x64xf32>
    %38 = vector.shape_cast %37 : vector<16x1x64xf32> to vector<16x64xf32>
    %39 = arith.maximumf %36, %38 : vector<16x64xf32>
    %40 = arith.truncf %39 : vector<16x64xf32> to vector<16x64xbf16>
    %c0_11 = arith.constant 0 : index
    %c0_12 = arith.constant 0 : index
    %41 = vector.load %arg3[%c0_11, %c0_12] : memref<64x128xbf16, #tpu.memory_space<vmem>>, vector<64x128xbf16>
    %cst_13 = arith.constant dense<0.000000e+00> : vector<16x128xf32>
    %42 = tpu.matmul %40, %41, %cst_13 {dimension_numbers = #tpu.dot_dimension_numbers<[1], [0], [0], [1], [0, 0, 1, 1], [], []>} : vector<16x64xbf16>, vector<64x128xbf16>, vector<16x128xf32> -> vector<16x128xf32>
    %c0_14 = arith.constant 0 : index
    %c0_15 = arith.constant 0 : index
    %43 = vector.load %arg4[%c0_14, %c0_15] : memref<1x128xf32, #tpu.memory_space<vmem>>, vector<1x128xf32>
    %44 = vector.broadcast %43 : vector<1x128xf32> to vector<16x128xf32>
    %45 = arith.addf %42, %44 : vector<16x128xf32>
    %46 = vector.extract_strided_slice %45 {offsets = [0, 0], sizes = [16, 64], strides = [1, 1]} : vector<16x128xf32> to vector<16x64xf32>
    %47 = vector.extract_strided_slice %45 {offsets = [0, 64], sizes = [16, 64], strides = [1, 1]} : vector<16x128xf32> to vector<16x64xf32>
    %48 = arith.maximumf %46, %47 : vector<16x64xf32>
    %49 = vector.shape_cast %48 : vector<16x64xf32> to vector<2x8x64xf32>
    %cst_16 = arith.constant 0.000000e+00 : f32
    %50 = vector.broadcast %cst_16 : f32 to vector<2x1x64xf32>
    %51 = tpu.concatenate %50, %49, %50 in 1 : vector<2x1x64xf32>, vector<2x8x64xf32>, vector<2x1x64xf32> -> vector<2x10x64xf32>
    %52 = vector.extract_strided_slice %51 {offsets = [0, 0, 0], sizes = [2, 8, 64], strides = [1, 1, 1]} : vector<2x10x64xf32> to vector<2x8x64xf32>
    %53 = vector.shape_cast %52 : vector<2x8x64xf32> to vector<16x64xf32>
    %54 = vector.extract_strided_slice %51 {offsets = [0, 1, 0], sizes = [2, 8, 64], strides = [1, 1, 1]} : vector<2x10x64xf32> to vector<2x8x64xf32>
    %55 = vector.shape_cast %54 : vector<2x8x64xf32> to vector<16x64xf32>
    %56 = vector.extract_strided_slice %51 {offsets = [0, 2, 0], sizes = [2, 8, 64], strides = [1, 1, 1]} : vector<2x10x64xf32> to vector<2x8x64xf32>
    %57 = vector.shape_cast %56 : vector<2x8x64xf32> to vector<16x64xf32>
    %58 = tpu.concatenate %53, %55, %57 in 1 : vector<16x64xf32>, vector<16x64xf32>, vector<16x64xf32> -> vector<16x192xf32>
    %59 = arith.truncf %58 : vector<16x192xf32> to vector<16x192xbf16>
    %c0_17 = arith.constant 0 : index
    %c0_18 = arith.constant 0 : index
    %60 = vector.load %arg5[%c0_17, %c0_18] : memref<192x256xbf16, #tpu.memory_space<vmem>>, vector<192x256xbf16>
    %cst_19 = arith.constant dense<0.000000e+00> : vector<16x256xf32>
    %61 = tpu.matmul %59, %60, %cst_19 {dimension_numbers = #tpu.dot_dimension_numbers<[1], [0], [0], [1], [0, 0, 1, 1], [], []>} : vector<16x192xbf16>, vector<192x256xbf16>, vector<16x256xf32> -> vector<16x256xf32>
    %c0_20 = arith.constant 0 : index
    %c0_21 = arith.constant 0 : index
    %62 = vector.load %arg6[%c0_20, %c0_21] : memref<1x256xf32, #tpu.memory_space<vmem>>, vector<1x256xf32>
    %63 = vector.broadcast %62 : vector<1x256xf32> to vector<16x256xf32>
    %64 = arith.addf %61, %63 : vector<16x256xf32>
    %65 = vector.extract_strided_slice %64 {offsets = [0, 0], sizes = [16, 128], strides = [1, 1]} : vector<16x256xf32> to vector<16x128xf32>
    %66 = vector.extract_strided_slice %64 {offsets = [0, 128], sizes = [16, 128], strides = [1, 1]} : vector<16x256xf32> to vector<16x128xf32>
    %67 = arith.maximumf %65, %66 : vector<16x128xf32>
    %68 = tpu.iota {dimensions = array<i32: 1>} : vector<2x192xi32>
    %c64_i32 = arith.constant 64 : i32
    %c0_i32 = arith.constant 0 : i32
    %69 = arith.cmpi eq, %c64_i32, %c0_i32 : i32
    %c1_i32 = arith.constant 1 : i32
    %70 = arith.select %69, %c1_i32, %c64_i32 : i32
    %71 = vector.broadcast %70 : i32 to vector<2x192xi32>
    %72 = arith.remsi %68, %71 : vector<2x192xi32>
    %c0_i32_22 = arith.constant 0 : i32
    %73 = vector.broadcast %c0_i32_22 : i32 to vector<2x192xi32>
    %74 = arith.cmpi ne, %72, %73 : vector<2x192xi32>
    %c0_i32_23 = arith.constant 0 : i32
    %75 = vector.broadcast %c0_i32_23 : i32 to vector<2x192xi32>
    %76 = arith.cmpi slt, %72, %75 : vector<2x192xi32>
    %c0_i32_24 = arith.constant 0 : i32
    %77 = arith.cmpi slt, %70, %c0_i32_24 : i32
    %78 = vector.broadcast %77 : i1 to vector<2x192xi1>
    %79 = vector.broadcast %78 : vector<2x192xi1> to vector<2x192xi1>
    %80 = arith.xori %76, %79 : vector<2x192xi1>
    %81 = arith.andi %80, %74 : vector<2x192xi1>
    %82 = vector.broadcast %70 : i32 to vector<2x192xi32>
    %83 = arith.addi %72, %82 : vector<2x192xi32>
    %84 = arith.select %81, %83, %72 : vector<2x192xi1>, vector<2x192xi32>
    %c32_i32 = arith.constant 32 : i32
    %85 = vector.broadcast %c32_i32 : i32 to vector<2x192xi32>
    %86 = arith.cmpi slt, %84, %85 : vector<2x192xi32>
    %87 = tpu.iota {dimensions = array<i32: 1>} : vector<2x64xi32>
    %c32_i32_25 = arith.constant 32 : i32
    %88 = vector.broadcast %c32_i32_25 : i32 to vector<2x64xi32>
    %89 = arith.cmpi slt, %87, %88 : vector<2x64xi32>
    %90 = arith.truncf %67 : vector<16x128xf32> to vector<16x128xbf16>
    %c0_26 = arith.constant 0 : index
    %c0_27 = arith.constant 0 : index
    %91 = vector.load %arg7[%c0_26, %c0_27] : memref<128x192xbf16, #tpu.memory_space<vmem>>, vector<128x192xbf16>
    %cst_28 = arith.constant dense<0.000000e+00> : vector<16x192xf32>
    %92 = tpu.matmul %90, %91, %cst_28 {dimension_numbers = #tpu.dot_dimension_numbers<[1], [0], [0], [1], [0, 0, 1, 1], [], []>} : vector<16x128xbf16>, vector<128x192xbf16>, vector<16x192xf32> -> vector<16x192xf32>
    %c0_29 = arith.constant 0 : index
    %c0_30 = arith.constant 0 : index
    %93 = vector.load %arg8[%c0_29, %c0_30] : memref<1x192xf32, #tpu.memory_space<vmem>>, vector<1x192xf32>
    %94 = vector.broadcast %93 : vector<1x192xf32> to vector<16x192xf32>
    %95 = arith.addf %92, %94 : vector<16x192xf32>
    %96 = vector.shape_cast %95 : vector<16x192xf32> to vector<2x8x192xf32>
    %c0_31 = arith.constant 0 : index
    %c0_32 = arith.constant 0 : index
    %97 = vector.load %arg9[%c0_31, %c0_32] : memref<64x192xbf16, #tpu.memory_space<vmem>>, vector<64x192xbf16>
    %c0_33 = arith.constant 0 : index
    %c0_34 = arith.constant 0 : index
    %98 = vector.load %arg10[%c0_33, %c0_34] : memref<1x192xf32, #tpu.memory_space<vmem>>, vector<1x192xf32>
    %cst_35 = arith.constant 0.000000e+00 : f32
    %99 = vector.broadcast %cst_35 : f32 to vector<2x64xf32>
    %100 = vector.extract_strided_slice %96 {offsets = [0, 0, 0], sizes = [2, 1, 192], strides = [1, 1, 1]} : vector<2x8x192xf32> to vector<2x1x192xf32>
    %101 = vector.shape_cast %100 : vector<2x1x192xf32> to vector<2x192xf32>
    %102 = vector.extract_strided_slice %96 {offsets = [0, 7, 0], sizes = [2, 1, 192], strides = [1, 1, 1]} : vector<2x8x192xf32> to vector<2x1x192xf32>
    %103 = vector.shape_cast %102 : vector<2x1x192xf32> to vector<2x192xf32>
    %104 = arith.select %86, %101, %103 : vector<2x192xi1>, vector<2x192xf32>
    %105 = arith.truncf %99 : vector<2x64xf32> to vector<2x64xbf16>
    %cst_36 = arith.constant dense<0.000000e+00> : vector<2x192xf32>
    %106 = tpu.matmul %105, %97, %cst_36 {dimension_numbers = #tpu.dot_dimension_numbers<[1], [0], [0], [1], [0, 0, 1, 1], [], []>} : vector<2x64xbf16>, vector<64x192xbf16>, vector<2x192xf32> -> vector<2x192xf32>
    %107 = vector.broadcast %98 : vector<1x192xf32> to vector<2x192xf32>
    %108 = arith.addf %106, %107 : vector<2x192xf32>
    %109 = vector.extract_strided_slice %104 {offsets = [0, 0], sizes = [2, 128], strides = [1, 1]} : vector<2x192xf32> to vector<2x128xf32>
    %110 = vector.extract_strided_slice %108 {offsets = [0, 0], sizes = [2, 128], strides = [1, 1]} : vector<2x192xf32> to vector<2x128xf32>
    %111 = arith.addf %109, %110 : vector<2x128xf32>
    %112 = arith.negf %111 : vector<2x128xf32>
    %113 = math.exp %112 : vector<2x128xf32>
    %cst_37 = arith.constant 1.000000e+00 : f32
    %114 = vector.broadcast %cst_37 : f32 to vector<2x128xf32>
    %115 = arith.addf %114, %113 : vector<2x128xf32>
    %116 = arith.divf %114, %115 : vector<2x128xf32>
    %117 = vector.extract_strided_slice %116 {offsets = [0, 0], sizes = [2, 64], strides = [1, 1]} : vector<2x128xf32> to vector<2x64xf32>
    %118 = vector.extract_strided_slice %116 {offsets = [0, 64], sizes = [2, 64], strides = [1, 1]} : vector<2x128xf32> to vector<2x64xf32>
    %119 = vector.extract_strided_slice %104 {offsets = [0, 128], sizes = [2, 64], strides = [1, 1]} : vector<2x192xf32> to vector<2x64xf32>
    %120 = vector.extract_strided_slice %108 {offsets = [0, 128], sizes = [2, 64], strides = [1, 1]} : vector<2x192xf32> to vector<2x64xf32>
    %121 = arith.mulf %117, %120 : vector<2x64xf32>
    %122 = arith.addf %119, %121 : vector<2x64xf32>
    %123 = math.tanh %122 : vector<2x64xf32>
    %cst_38 = arith.constant 1.000000e+00 : f32
    %124 = vector.broadcast %cst_38 : f32 to vector<2x64xf32>
    %125 = arith.subf %124, %118 : vector<2x64xf32>
    %126 = arith.mulf %125, %123 : vector<2x64xf32>
    %127 = arith.mulf %118, %99 : vector<2x64xf32>
    %128 = arith.addf %126, %127 : vector<2x64xf32>
    %129 = vector.extract_strided_slice %96 {offsets = [0, 1, 0], sizes = [2, 1, 192], strides = [1, 1, 1]} : vector<2x8x192xf32> to vector<2x1x192xf32>
    %130 = vector.shape_cast %129 : vector<2x1x192xf32> to vector<2x192xf32>
    %131 = vector.extract_strided_slice %96 {offsets = [0, 6, 0], sizes = [2, 1, 192], strides = [1, 1, 1]} : vector<2x8x192xf32> to vector<2x1x192xf32>
    %132 = vector.shape_cast %131 : vector<2x1x192xf32> to vector<2x192xf32>
    %133 = arith.select %86, %130, %132 : vector<2x192xi1>, vector<2x192xf32>
    %134 = arith.truncf %128 : vector<2x64xf32> to vector<2x64xbf16>
    %cst_39 = arith.constant dense<0.000000e+00> : vector<2x192xf32>
    %135 = tpu.matmul %134, %97, %cst_39 {dimension_numbers = #tpu.dot_dimension_numbers<[1], [0], [0], [1], [0, 0, 1, 1], [], []>} : vector<2x64xbf16>, vector<64x192xbf16>, vector<2x192xf32> -> vector<2x192xf32>
    %136 = vector.broadcast %98 : vector<1x192xf32> to vector<2x192xf32>
    %137 = arith.addf %135, %136 : vector<2x192xf32>
    %138 = vector.extract_strided_slice %133 {offsets = [0, 0], sizes = [2, 128], strides = [1, 1]} : vector<2x192xf32> to vector<2x128xf32>
    %139 = vector.extract_strided_slice %137 {offsets = [0, 0], sizes = [2, 128], strides = [1, 1]} : vector<2x192xf32> to vector<2x128xf32>
    %140 = arith.addf %138, %139 : vector<2x128xf32>
    %141 = arith.negf %140 : vector<2x128xf32>
    %142 = math.exp %141 : vector<2x128xf32>
    %cst_40 = arith.constant 1.000000e+00 : f32
    %143 = vector.broadcast %cst_40 : f32 to vector<2x128xf32>
    %144 = arith.addf %143, %142 : vector<2x128xf32>
    %145 = arith.divf %143, %144 : vector<2x128xf32>
    %146 = vector.extract_strided_slice %145 {offsets = [0, 0], sizes = [2, 64], strides = [1, 1]} : vector<2x128xf32> to vector<2x64xf32>
    %147 = vector.extract_strided_slice %145 {offsets = [0, 64], sizes = [2, 64], strides = [1, 1]} : vector<2x128xf32> to vector<2x64xf32>
    %148 = vector.extract_strided_slice %133 {offsets = [0, 128], sizes = [2, 64], strides = [1, 1]} : vector<2x192xf32> to vector<2x64xf32>
    %149 = vector.extract_strided_slice %137 {offsets = [0, 128], sizes = [2, 64], strides = [1, 1]} : vector<2x192xf32> to vector<2x64xf32>
    %150 = arith.mulf %146, %149 : vector<2x64xf32>
    %151 = arith.addf %148, %150 : vector<2x64xf32>
    %152 = math.tanh %151 : vector<2x64xf32>
    %cst_41 = arith.constant 1.000000e+00 : f32
    %153 = vector.broadcast %cst_41 : f32 to vector<2x64xf32>
    %154 = arith.subf %153, %147 : vector<2x64xf32>
    %155 = arith.mulf %154, %152 : vector<2x64xf32>
    %156 = arith.mulf %147, %128 : vector<2x64xf32>
    %157 = arith.addf %155, %156 : vector<2x64xf32>
    %158 = vector.extract_strided_slice %96 {offsets = [0, 2, 0], sizes = [2, 1, 192], strides = [1, 1, 1]} : vector<2x8x192xf32> to vector<2x1x192xf32>
    %159 = vector.shape_cast %158 : vector<2x1x192xf32> to vector<2x192xf32>
    %160 = vector.extract_strided_slice %96 {offsets = [0, 5, 0], sizes = [2, 1, 192], strides = [1, 1, 1]} : vector<2x8x192xf32> to vector<2x1x192xf32>
    %161 = vector.shape_cast %160 : vector<2x1x192xf32> to vector<2x192xf32>
    %162 = arith.select %86, %159, %161 : vector<2x192xi1>, vector<2x192xf32>
    %163 = arith.truncf %157 : vector<2x64xf32> to vector<2x64xbf16>
    %cst_42 = arith.constant dense<0.000000e+00> : vector<2x192xf32>
    %164 = tpu.matmul %163, %97, %cst_42 {dimension_numbers = #tpu.dot_dimension_numbers<[1], [0], [0], [1], [0, 0, 1, 1], [], []>} : vector<2x64xbf16>, vector<64x192xbf16>, vector<2x192xf32> -> vector<2x192xf32>
    %165 = vector.broadcast %98 : vector<1x192xf32> to vector<2x192xf32>
    %166 = arith.addf %164, %165 : vector<2x192xf32>
    %167 = vector.extract_strided_slice %162 {offsets = [0, 0], sizes = [2, 128], strides = [1, 1]} : vector<2x192xf32> to vector<2x128xf32>
    %168 = vector.extract_strided_slice %166 {offsets = [0, 0], sizes = [2, 128], strides = [1, 1]} : vector<2x192xf32> to vector<2x128xf32>
    %169 = arith.addf %167, %168 : vector<2x128xf32>
    %170 = arith.negf %169 : vector<2x128xf32>
    %171 = math.exp %170 : vector<2x128xf32>
    %cst_43 = arith.constant 1.000000e+00 : f32
    %172 = vector.broadcast %cst_43 : f32 to vector<2x128xf32>
    %173 = arith.addf %172, %171 : vector<2x128xf32>
    %174 = arith.divf %172, %173 : vector<2x128xf32>
    %175 = vector.extract_strided_slice %174 {offsets = [0, 0], sizes = [2, 64], strides = [1, 1]} : vector<2x128xf32> to vector<2x64xf32>
    %176 = vector.extract_strided_slice %174 {offsets = [0, 64], sizes = [2, 64], strides = [1, 1]} : vector<2x128xf32> to vector<2x64xf32>
    %177 = vector.extract_strided_slice %162 {offsets = [0, 128], sizes = [2, 64], strides = [1, 1]} : vector<2x192xf32> to vector<2x64xf32>
    %178 = vector.extract_strided_slice %166 {offsets = [0, 128], sizes = [2, 64], strides = [1, 1]} : vector<2x192xf32> to vector<2x64xf32>
    %179 = arith.mulf %175, %178 : vector<2x64xf32>
    %180 = arith.addf %177, %179 : vector<2x64xf32>
    %181 = math.tanh %180 : vector<2x64xf32>
    %cst_44 = arith.constant 1.000000e+00 : f32
    %182 = vector.broadcast %cst_44 : f32 to vector<2x64xf32>
    %183 = arith.subf %182, %176 : vector<2x64xf32>
    %184 = arith.mulf %183, %181 : vector<2x64xf32>
    %185 = arith.mulf %176, %157 : vector<2x64xf32>
    %186 = arith.addf %184, %185 : vector<2x64xf32>
    %187 = vector.extract_strided_slice %96 {offsets = [0, 3, 0], sizes = [2, 1, 192], strides = [1, 1, 1]} : vector<2x8x192xf32> to vector<2x1x192xf32>
    %188 = vector.shape_cast %187 : vector<2x1x192xf32> to vector<2x192xf32>
    %189 = vector.extract_strided_slice %96 {offsets = [0, 4, 0], sizes = [2, 1, 192], strides = [1, 1, 1]} : vector<2x8x192xf32> to vector<2x1x192xf32>
    %190 = vector.shape_cast %189 : vector<2x1x192xf32> to vector<2x192xf32>
    %191 = arith.select %86, %188, %190 : vector<2x192xi1>, vector<2x192xf32>
    %192 = arith.truncf %186 : vector<2x64xf32> to vector<2x64xbf16>
    %cst_45 = arith.constant dense<0.000000e+00> : vector<2x192xf32>
    %193 = tpu.matmul %192, %97, %cst_45 {dimension_numbers = #tpu.dot_dimension_numbers<[1], [0], [0], [1], [0, 0, 1, 1], [], []>} : vector<2x64xbf16>, vector<64x192xbf16>, vector<2x192xf32> -> vector<2x192xf32>
    %194 = vector.broadcast %98 : vector<1x192xf32> to vector<2x192xf32>
    %195 = arith.addf %193, %194 : vector<2x192xf32>
    %196 = vector.extract_strided_slice %191 {offsets = [0, 0], sizes = [2, 128], strides = [1, 1]} : vector<2x192xf32> to vector<2x128xf32>
    %197 = vector.extract_strided_slice %195 {offsets = [0, 0], sizes = [2, 128], strides = [1, 1]} : vector<2x192xf32> to vector<2x128xf32>
    %198 = arith.addf %196, %197 : vector<2x128xf32>
    %199 = arith.negf %198 : vector<2x128xf32>
    %200 = math.exp %199 : vector<2x128xf32>
    %cst_46 = arith.constant 1.000000e+00 : f32
    %201 = vector.broadcast %cst_46 : f32 to vector<2x128xf32>
    %202 = arith.addf %201, %200 : vector<2x128xf32>
    %203 = arith.divf %201, %202 : vector<2x128xf32>
    %204 = vector.extract_strided_slice %203 {offsets = [0, 0], sizes = [2, 64], strides = [1, 1]} : vector<2x128xf32> to vector<2x64xf32>
    %205 = vector.extract_strided_slice %203 {offsets = [0, 64], sizes = [2, 64], strides = [1, 1]} : vector<2x128xf32> to vector<2x64xf32>
    %206 = vector.extract_strided_slice %191 {offsets = [0, 128], sizes = [2, 64], strides = [1, 1]} : vector<2x192xf32> to vector<2x64xf32>
    %207 = vector.extract_strided_slice %195 {offsets = [0, 128], sizes = [2, 64], strides = [1, 1]} : vector<2x192xf32> to vector<2x64xf32>
    %208 = arith.mulf %204, %207 : vector<2x64xf32>
    %209 = arith.addf %206, %208 : vector<2x64xf32>
    %210 = math.tanh %209 : vector<2x64xf32>
    %cst_47 = arith.constant 1.000000e+00 : f32
    %211 = vector.broadcast %cst_47 : f32 to vector<2x64xf32>
    %212 = arith.subf %211, %205 : vector<2x64xf32>
    %213 = arith.mulf %212, %210 : vector<2x64xf32>
    %214 = arith.mulf %205, %186 : vector<2x64xf32>
    %215 = arith.addf %213, %214 : vector<2x64xf32>
    %216 = vector.extract_strided_slice %96 {offsets = [0, 4, 0], sizes = [2, 1, 192], strides = [1, 1, 1]} : vector<2x8x192xf32> to vector<2x1x192xf32>
    %217 = vector.shape_cast %216 : vector<2x1x192xf32> to vector<2x192xf32>
    %218 = vector.extract_strided_slice %96 {offsets = [0, 3, 0], sizes = [2, 1, 192], strides = [1, 1, 1]} : vector<2x8x192xf32> to vector<2x1x192xf32>
    %219 = vector.shape_cast %218 : vector<2x1x192xf32> to vector<2x192xf32>
    %220 = arith.select %86, %217, %219 : vector<2x192xi1>, vector<2x192xf32>
    %221 = arith.truncf %215 : vector<2x64xf32> to vector<2x64xbf16>
    %cst_48 = arith.constant dense<0.000000e+00> : vector<2x192xf32>
    %222 = tpu.matmul %221, %97, %cst_48 {dimension_numbers = #tpu.dot_dimension_numbers<[1], [0], [0], [1], [0, 0, 1, 1], [], []>} : vector<2x64xbf16>, vector<64x192xbf16>, vector<2x192xf32> -> vector<2x192xf32>
    %223 = vector.broadcast %98 : vector<1x192xf32> to vector<2x192xf32>
    %224 = arith.addf %222, %223 : vector<2x192xf32>
    %225 = vector.extract_strided_slice %220 {offsets = [0, 0], sizes = [2, 128], strides = [1, 1]} : vector<2x192xf32> to vector<2x128xf32>
    %226 = vector.extract_strided_slice %224 {offsets = [0, 0], sizes = [2, 128], strides = [1, 1]} : vector<2x192xf32> to vector<2x128xf32>
    %227 = arith.addf %225, %226 : vector<2x128xf32>
    %228 = arith.negf %227 : vector<2x128xf32>
    %229 = math.exp %228 : vector<2x128xf32>
    %cst_49 = arith.constant 1.000000e+00 : f32
    %230 = vector.broadcast %cst_49 : f32 to vector<2x128xf32>
    %231 = arith.addf %230, %229 : vector<2x128xf32>
    %232 = arith.divf %230, %231 : vector<2x128xf32>
    %233 = vector.extract_strided_slice %232 {offsets = [0, 0], sizes = [2, 64], strides = [1, 1]} : vector<2x128xf32> to vector<2x64xf32>
    %234 = vector.extract_strided_slice %232 {offsets = [0, 64], sizes = [2, 64], strides = [1, 1]} : vector<2x128xf32> to vector<2x64xf32>
    %235 = vector.extract_strided_slice %220 {offsets = [0, 128], sizes = [2, 64], strides = [1, 1]} : vector<2x192xf32> to vector<2x64xf32>
    %236 = vector.extract_strided_slice %224 {offsets = [0, 128], sizes = [2, 64], strides = [1, 1]} : vector<2x192xf32> to vector<2x64xf32>
    %237 = arith.mulf %233, %236 : vector<2x64xf32>
    %238 = arith.addf %235, %237 : vector<2x64xf32>
    %239 = math.tanh %238 : vector<2x64xf32>
    %cst_50 = arith.constant 1.000000e+00 : f32
    %240 = vector.broadcast %cst_50 : f32 to vector<2x64xf32>
    %241 = arith.subf %240, %234 : vector<2x64xf32>
    %242 = arith.mulf %241, %239 : vector<2x64xf32>
    %243 = arith.mulf %234, %215 : vector<2x64xf32>
    %244 = arith.addf %242, %243 : vector<2x64xf32>
    %245 = vector.extract_strided_slice %96 {offsets = [0, 5, 0], sizes = [2, 1, 192], strides = [1, 1, 1]} : vector<2x8x192xf32> to vector<2x1x192xf32>
    %246 = vector.shape_cast %245 : vector<2x1x192xf32> to vector<2x192xf32>
    %247 = vector.extract_strided_slice %96 {offsets = [0, 2, 0], sizes = [2, 1, 192], strides = [1, 1, 1]} : vector<2x8x192xf32> to vector<2x1x192xf32>
    %248 = vector.shape_cast %247 : vector<2x1x192xf32> to vector<2x192xf32>
    %249 = arith.select %86, %246, %248 : vector<2x192xi1>, vector<2x192xf32>
    %250 = arith.truncf %244 : vector<2x64xf32> to vector<2x64xbf16>
    %cst_51 = arith.constant dense<0.000000e+00> : vector<2x192xf32>
    %251 = tpu.matmul %250, %97, %cst_51 {dimension_numbers = #tpu.dot_dimension_numbers<[1], [0], [0], [1], [0, 0, 1, 1], [], []>} : vector<2x64xbf16>, vector<64x192xbf16>, vector<2x192xf32> -> vector<2x192xf32>
    %252 = vector.broadcast %98 : vector<1x192xf32> to vector<2x192xf32>
    %253 = arith.addf %251, %252 : vector<2x192xf32>
    %254 = vector.extract_strided_slice %249 {offsets = [0, 0], sizes = [2, 128], strides = [1, 1]} : vector<2x192xf32> to vector<2x128xf32>
    %255 = vector.extract_strided_slice %253 {offsets = [0, 0], sizes = [2, 128], strides = [1, 1]} : vector<2x192xf32> to vector<2x128xf32>
    %256 = arith.addf %254, %255 : vector<2x128xf32>
    %257 = arith.negf %256 : vector<2x128xf32>
    %258 = math.exp %257 : vector<2x128xf32>
    %cst_52 = arith.constant 1.000000e+00 : f32
    %259 = vector.broadcast %cst_52 : f32 to vector<2x128xf32>
    %260 = arith.addf %259, %258 : vector<2x128xf32>
    %261 = arith.divf %259, %260 : vector<2x128xf32>
    %262 = vector.extract_strided_slice %261 {offsets = [0, 0], sizes = [2, 64], strides = [1, 1]} : vector<2x128xf32> to vector<2x64xf32>
    %263 = vector.extract_strided_slice %261 {offsets = [0, 64], sizes = [2, 64], strides = [1, 1]} : vector<2x128xf32> to vector<2x64xf32>
    %264 = vector.extract_strided_slice %249 {offsets = [0, 128], sizes = [2, 64], strides = [1, 1]} : vector<2x192xf32> to vector<2x64xf32>
    %265 = vector.extract_strided_slice %253 {offsets = [0, 128], sizes = [2, 64], strides = [1, 1]} : vector<2x192xf32> to vector<2x64xf32>
    %266 = arith.mulf %262, %265 : vector<2x64xf32>
    %267 = arith.addf %264, %266 : vector<2x64xf32>
    %268 = math.tanh %267 : vector<2x64xf32>
    %cst_53 = arith.constant 1.000000e+00 : f32
    %269 = vector.broadcast %cst_53 : f32 to vector<2x64xf32>
    %270 = arith.subf %269, %263 : vector<2x64xf32>
    %271 = arith.mulf %270, %268 : vector<2x64xf32>
    %272 = arith.mulf %263, %244 : vector<2x64xf32>
    %273 = arith.addf %271, %272 : vector<2x64xf32>
    %274 = vector.extract_strided_slice %96 {offsets = [0, 6, 0], sizes = [2, 1, 192], strides = [1, 1, 1]} : vector<2x8x192xf32> to vector<2x1x192xf32>
    %275 = vector.shape_cast %274 : vector<2x1x192xf32> to vector<2x192xf32>
    %276 = vector.extract_strided_slice %96 {offsets = [0, 1, 0], sizes = [2, 1, 192], strides = [1, 1, 1]} : vector<2x8x192xf32> to vector<2x1x192xf32>
    %277 = vector.shape_cast %276 : vector<2x1x192xf32> to vector<2x192xf32>
    %278 = arith.select %86, %275, %277 : vector<2x192xi1>, vector<2x192xf32>
    %279 = arith.truncf %273 : vector<2x64xf32> to vector<2x64xbf16>
    %cst_54 = arith.constant dense<0.000000e+00> : vector<2x192xf32>
    %280 = tpu.matmul %279, %97, %cst_54 {dimension_numbers = #tpu.dot_dimension_numbers<[1], [0], [0], [1], [0, 0, 1, 1], [], []>} : vector<2x64xbf16>, vector<64x192xbf16>, vector<2x192xf32> -> vector<2x192xf32>
    %281 = vector.broadcast %98 : vector<1x192xf32> to vector<2x192xf32>
    %282 = arith.addf %280, %281 : vector<2x192xf32>
    %283 = vector.extract_strided_slice %278 {offsets = [0, 0], sizes = [2, 128], strides = [1, 1]} : vector<2x192xf32> to vector<2x128xf32>
    %284 = vector.extract_strided_slice %282 {offsets = [0, 0], sizes = [2, 128], strides = [1, 1]} : vector<2x192xf32> to vector<2x128xf32>
    %285 = arith.addf %283, %284 : vector<2x128xf32>
    %286 = arith.negf %285 : vector<2x128xf32>
    %287 = math.exp %286 : vector<2x128xf32>
    %cst_55 = arith.constant 1.000000e+00 : f32
    %288 = vector.broadcast %cst_55 : f32 to vector<2x128xf32>
    %289 = arith.addf %288, %287 : vector<2x128xf32>
    %290 = arith.divf %288, %289 : vector<2x128xf32>
    %291 = vector.extract_strided_slice %290 {offsets = [0, 0], sizes = [2, 64], strides = [1, 1]} : vector<2x128xf32> to vector<2x64xf32>
    %292 = vector.extract_strided_slice %290 {offsets = [0, 64], sizes = [2, 64], strides = [1, 1]} : vector<2x128xf32> to vector<2x64xf32>
    %293 = vector.extract_strided_slice %278 {offsets = [0, 128], sizes = [2, 64], strides = [1, 1]} : vector<2x192xf32> to vector<2x64xf32>
    %294 = vector.extract_strided_slice %282 {offsets = [0, 128], sizes = [2, 64], strides = [1, 1]} : vector<2x192xf32> to vector<2x64xf32>
    %295 = arith.mulf %291, %294 : vector<2x64xf32>
    %296 = arith.addf %293, %295 : vector<2x64xf32>
    %297 = math.tanh %296 : vector<2x64xf32>
    %cst_56 = arith.constant 1.000000e+00 : f32
    %298 = vector.broadcast %cst_56 : f32 to vector<2x64xf32>
    %299 = arith.subf %298, %292 : vector<2x64xf32>
    %300 = arith.mulf %299, %297 : vector<2x64xf32>
    %301 = arith.mulf %292, %273 : vector<2x64xf32>
    %302 = arith.addf %300, %301 : vector<2x64xf32>
    %303 = vector.extract_strided_slice %96 {offsets = [0, 7, 0], sizes = [2, 1, 192], strides = [1, 1, 1]} : vector<2x8x192xf32> to vector<2x1x192xf32>
    %304 = vector.shape_cast %303 : vector<2x1x192xf32> to vector<2x192xf32>
    %305 = vector.extract_strided_slice %96 {offsets = [0, 0, 0], sizes = [2, 1, 192], strides = [1, 1, 1]} : vector<2x8x192xf32> to vector<2x1x192xf32>
    %306 = vector.shape_cast %305 : vector<2x1x192xf32> to vector<2x192xf32>
    %307 = arith.select %86, %304, %306 : vector<2x192xi1>, vector<2x192xf32>
    %308 = arith.truncf %302 : vector<2x64xf32> to vector<2x64xbf16>
    %cst_57 = arith.constant dense<0.000000e+00> : vector<2x192xf32>
    %309 = tpu.matmul %308, %97, %cst_57 {dimension_numbers = #tpu.dot_dimension_numbers<[1], [0], [0], [1], [0, 0, 1, 1], [], []>} : vector<2x64xbf16>, vector<64x192xbf16>, vector<2x192xf32> -> vector<2x192xf32>
    %310 = vector.broadcast %98 : vector<1x192xf32> to vector<2x192xf32>
    %311 = arith.addf %309, %310 : vector<2x192xf32>
    %312 = vector.extract_strided_slice %307 {offsets = [0, 0], sizes = [2, 128], strides = [1, 1]} : vector<2x192xf32> to vector<2x128xf32>
    %313 = vector.extract_strided_slice %311 {offsets = [0, 0], sizes = [2, 128], strides = [1, 1]} : vector<2x192xf32> to vector<2x128xf32>
    %314 = arith.addf %312, %313 : vector<2x128xf32>
    %315 = arith.negf %314 : vector<2x128xf32>
    %316 = math.exp %315 : vector<2x128xf32>
    %cst_58 = arith.constant 1.000000e+00 : f32
    %317 = vector.broadcast %cst_58 : f32 to vector<2x128xf32>
    %318 = arith.addf %317, %316 : vector<2x128xf32>
    %319 = arith.divf %317, %318 : vector<2x128xf32>
    %320 = vector.extract_strided_slice %319 {offsets = [0, 0], sizes = [2, 64], strides = [1, 1]} : vector<2x128xf32> to vector<2x64xf32>
    %321 = vector.extract_strided_slice %319 {offsets = [0, 64], sizes = [2, 64], strides = [1, 1]} : vector<2x128xf32> to vector<2x64xf32>
    %322 = vector.extract_strided_slice %307 {offsets = [0, 128], sizes = [2, 64], strides = [1, 1]} : vector<2x192xf32> to vector<2x64xf32>
    %323 = vector.extract_strided_slice %311 {offsets = [0, 128], sizes = [2, 64], strides = [1, 1]} : vector<2x192xf32> to vector<2x64xf32>
    %324 = arith.mulf %320, %323 : vector<2x64xf32>
    %325 = arith.addf %322, %324 : vector<2x64xf32>
    %326 = math.tanh %325 : vector<2x64xf32>
    %cst_59 = arith.constant 1.000000e+00 : f32
    %327 = vector.broadcast %cst_59 : f32 to vector<2x64xf32>
    %328 = arith.subf %327, %321 : vector<2x64xf32>
    %329 = arith.mulf %328, %326 : vector<2x64xf32>
    %330 = arith.mulf %321, %302 : vector<2x64xf32>
    %331 = arith.addf %329, %330 : vector<2x64xf32>
    %332 = arith.select %89, %128, %331 : vector<2x64xi1>, vector<2x64xf32>
    %333 = arith.select %89, %157, %302 : vector<2x64xi1>, vector<2x64xf32>
    %334 = arith.select %89, %186, %273 : vector<2x64xi1>, vector<2x64xf32>
    %335 = arith.select %89, %215, %244 : vector<2x64xi1>, vector<2x64xf32>
    %336 = arith.select %89, %244, %215 : vector<2x64xi1>, vector<2x64xf32>
    %337 = arith.select %89, %273, %186 : vector<2x64xi1>, vector<2x64xf32>
    %338 = arith.select %89, %302, %157 : vector<2x64xi1>, vector<2x64xf32>
    %339 = arith.select %89, %331, %128 : vector<2x64xi1>, vector<2x64xf32>
    %340 = vector.shape_cast %332 : vector<2x64xf32> to vector<2x1x64xf32>
    %341 = vector.shape_cast %333 : vector<2x64xf32> to vector<2x1x64xf32>
    %342 = vector.shape_cast %334 : vector<2x64xf32> to vector<2x1x64xf32>
    %343 = vector.shape_cast %335 : vector<2x64xf32> to vector<2x1x64xf32>
    %344 = vector.shape_cast %336 : vector<2x64xf32> to vector<2x1x64xf32>
    %345 = vector.shape_cast %337 : vector<2x64xf32> to vector<2x1x64xf32>
    %346 = vector.shape_cast %338 : vector<2x64xf32> to vector<2x1x64xf32>
    %347 = vector.shape_cast %339 : vector<2x64xf32> to vector<2x1x64xf32>
    %348 = tpu.concatenate %340, %341, %342, %343, %344, %345, %346, %347 in 1 : vector<2x1x64xf32>, vector<2x1x64xf32>, vector<2x1x64xf32>, vector<2x1x64xf32>, vector<2x1x64xf32>, vector<2x1x64xf32>, vector<2x1x64xf32>, vector<2x1x64xf32> -> vector<2x8x64xf32>
    %349 = vector.shape_cast %348 : vector<2x8x64xf32> to vector<16x64xf32>
    %350 = arith.truncf %349 : vector<16x64xf32> to vector<16x64xbf16>
    %c0_60 = arith.constant 0 : index
    %c0_61 = arith.constant 0 : index
    %351 = vector.load %arg11[%c0_60, %c0_61] : memref<64x192xbf16, #tpu.memory_space<vmem>>, vector<64x192xbf16>
    %cst_62 = arith.constant dense<0.000000e+00> : vector<16x192xf32>
    %352 = tpu.matmul %350, %351, %cst_62 {dimension_numbers = #tpu.dot_dimension_numbers<[1], [0], [0], [1], [0, 0, 1, 1], [], []>} : vector<16x64xbf16>, vector<64x192xbf16>, vector<16x192xf32> -> vector<16x192xf32>
    %c0_63 = arith.constant 0 : index
    %c0_64 = arith.constant 0 : index
    %353 = vector.load %arg12[%c0_63, %c0_64] : memref<1x192xf32, #tpu.memory_space<vmem>>, vector<1x192xf32>
    %354 = vector.broadcast %353 : vector<1x192xf32> to vector<16x192xf32>
    %355 = arith.addf %352, %354 : vector<16x192xf32>
    %356 = vector.shape_cast %355 : vector<16x192xf32> to vector<2x8x192xf32>
    %c0_65 = arith.constant 0 : index
    %c0_66 = arith.constant 0 : index
    %357 = vector.load %arg13[%c0_65, %c0_66] : memref<64x192xbf16, #tpu.memory_space<vmem>>, vector<64x192xbf16>
    %c0_67 = arith.constant 0 : index
    %c0_68 = arith.constant 0 : index
    %358 = vector.load %arg14[%c0_67, %c0_68] : memref<1x192xf32, #tpu.memory_space<vmem>>, vector<1x192xf32>
    %cst_69 = arith.constant 0.000000e+00 : f32
    %359 = vector.broadcast %cst_69 : f32 to vector<2x64xf32>
    %360 = vector.extract_strided_slice %356 {offsets = [0, 0, 0], sizes = [2, 1, 192], strides = [1, 1, 1]} : vector<2x8x192xf32> to vector<2x1x192xf32>
    %361 = vector.shape_cast %360 : vector<2x1x192xf32> to vector<2x192xf32>
    %362 = vector.extract_strided_slice %356 {offsets = [0, 7, 0], sizes = [2, 1, 192], strides = [1, 1, 1]} : vector<2x8x192xf32> to vector<2x1x192xf32>
    %363 = vector.shape_cast %362 : vector<2x1x192xf32> to vector<2x192xf32>
    %364 = arith.select %86, %361, %363 : vector<2x192xi1>, vector<2x192xf32>
    %365 = arith.truncf %359 : vector<2x64xf32> to vector<2x64xbf16>
    %cst_70 = arith.constant dense<0.000000e+00> : vector<2x192xf32>
    %366 = tpu.matmul %365, %357, %cst_70 {dimension_numbers = #tpu.dot_dimension_numbers<[1], [0], [0], [1], [0, 0, 1, 1], [], []>} : vector<2x64xbf16>, vector<64x192xbf16>, vector<2x192xf32> -> vector<2x192xf32>
    %367 = vector.broadcast %358 : vector<1x192xf32> to vector<2x192xf32>
    %368 = arith.addf %366, %367 : vector<2x192xf32>
    %369 = vector.extract_strided_slice %364 {offsets = [0, 0], sizes = [2, 128], strides = [1, 1]} : vector<2x192xf32> to vector<2x128xf32>
    %370 = vector.extract_strided_slice %368 {offsets = [0, 0], sizes = [2, 128], strides = [1, 1]} : vector<2x192xf32> to vector<2x128xf32>
    %371 = arith.addf %369, %370 : vector<2x128xf32>
    %372 = arith.negf %371 : vector<2x128xf32>
    %373 = math.exp %372 : vector<2x128xf32>
    %cst_71 = arith.constant 1.000000e+00 : f32
    %374 = vector.broadcast %cst_71 : f32 to vector<2x128xf32>
    %375 = arith.addf %374, %373 : vector<2x128xf32>
    %376 = arith.divf %374, %375 : vector<2x128xf32>
    %377 = vector.extract_strided_slice %376 {offsets = [0, 0], sizes = [2, 64], strides = [1, 1]} : vector<2x128xf32> to vector<2x64xf32>
    %378 = vector.extract_strided_slice %376 {offsets = [0, 64], sizes = [2, 64], strides = [1, 1]} : vector<2x128xf32> to vector<2x64xf32>
    %379 = vector.extract_strided_slice %364 {offsets = [0, 128], sizes = [2, 64], strides = [1, 1]} : vector<2x192xf32> to vector<2x64xf32>
    %380 = vector.extract_strided_slice %368 {offsets = [0, 128], sizes = [2, 64], strides = [1, 1]} : vector<2x192xf32> to vector<2x64xf32>
    %381 = arith.mulf %377, %380 : vector<2x64xf32>
    %382 = arith.addf %379, %381 : vector<2x64xf32>
    %383 = math.tanh %382 : vector<2x64xf32>
    %cst_72 = arith.constant 1.000000e+00 : f32
    %384 = vector.broadcast %cst_72 : f32 to vector<2x64xf32>
    %385 = arith.subf %384, %378 : vector<2x64xf32>
    %386 = arith.mulf %385, %383 : vector<2x64xf32>
    %387 = arith.mulf %378, %359 : vector<2x64xf32>
    %388 = arith.addf %386, %387 : vector<2x64xf32>
    %389 = vector.extract_strided_slice %356 {offsets = [0, 1, 0], sizes = [2, 1, 192], strides = [1, 1, 1]} : vector<2x8x192xf32> to vector<2x1x192xf32>
    %390 = vector.shape_cast %389 : vector<2x1x192xf32> to vector<2x192xf32>
    %391 = vector.extract_strided_slice %356 {offsets = [0, 6, 0], sizes = [2, 1, 192], strides = [1, 1, 1]} : vector<2x8x192xf32> to vector<2x1x192xf32>
    %392 = vector.shape_cast %391 : vector<2x1x192xf32> to vector<2x192xf32>
    %393 = arith.select %86, %390, %392 : vector<2x192xi1>, vector<2x192xf32>
    %394 = arith.truncf %388 : vector<2x64xf32> to vector<2x64xbf16>
    %cst_73 = arith.constant dense<0.000000e+00> : vector<2x192xf32>
    %395 = tpu.matmul %394, %357, %cst_73 {dimension_numbers = #tpu.dot_dimension_numbers<[1], [0], [0], [1], [0, 0, 1, 1], [], []>} : vector<2x64xbf16>, vector<64x192xbf16>, vector<2x192xf32> -> vector<2x192xf32>
    %396 = vector.broadcast %358 : vector<1x192xf32> to vector<2x192xf32>
    %397 = arith.addf %395, %396 : vector<2x192xf32>
    %398 = vector.extract_strided_slice %393 {offsets = [0, 0], sizes = [2, 128], strides = [1, 1]} : vector<2x192xf32> to vector<2x128xf32>
    %399 = vector.extract_strided_slice %397 {offsets = [0, 0], sizes = [2, 128], strides = [1, 1]} : vector<2x192xf32> to vector<2x128xf32>
    %400 = arith.addf %398, %399 : vector<2x128xf32>
    %401 = arith.negf %400 : vector<2x128xf32>
    %402 = math.exp %401 : vector<2x128xf32>
    %cst_74 = arith.constant 1.000000e+00 : f32
    %403 = vector.broadcast %cst_74 : f32 to vector<2x128xf32>
    %404 = arith.addf %403, %402 : vector<2x128xf32>
    %405 = arith.divf %403, %404 : vector<2x128xf32>
    %406 = vector.extract_strided_slice %405 {offsets = [0, 0], sizes = [2, 64], strides = [1, 1]} : vector<2x128xf32> to vector<2x64xf32>
    %407 = vector.extract_strided_slice %405 {offsets = [0, 64], sizes = [2, 64], strides = [1, 1]} : vector<2x128xf32> to vector<2x64xf32>
    %408 = vector.extract_strided_slice %393 {offsets = [0, 128], sizes = [2, 64], strides = [1, 1]} : vector<2x192xf32> to vector<2x64xf32>
    %409 = vector.extract_strided_slice %397 {offsets = [0, 128], sizes = [2, 64], strides = [1, 1]} : vector<2x192xf32> to vector<2x64xf32>
    %410 = arith.mulf %406, %409 : vector<2x64xf32>
    %411 = arith.addf %408, %410 : vector<2x64xf32>
    %412 = math.tanh %411 : vector<2x64xf32>
    %cst_75 = arith.constant 1.000000e+00 : f32
    %413 = vector.broadcast %cst_75 : f32 to vector<2x64xf32>
    %414 = arith.subf %413, %407 : vector<2x64xf32>
    %415 = arith.mulf %414, %412 : vector<2x64xf32>
    %416 = arith.mulf %407, %388 : vector<2x64xf32>
    %417 = arith.addf %415, %416 : vector<2x64xf32>
    %418 = vector.extract_strided_slice %356 {offsets = [0, 2, 0], sizes = [2, 1, 192], strides = [1, 1, 1]} : vector<2x8x192xf32> to vector<2x1x192xf32>
    %419 = vector.shape_cast %418 : vector<2x1x192xf32> to vector<2x192xf32>
    %420 = vector.extract_strided_slice %356 {offsets = [0, 5, 0], sizes = [2, 1, 192], strides = [1, 1, 1]} : vector<2x8x192xf32> to vector<2x1x192xf32>
    %421 = vector.shape_cast %420 : vector<2x1x192xf32> to vector<2x192xf32>
    %422 = arith.select %86, %419, %421 : vector<2x192xi1>, vector<2x192xf32>
    %423 = arith.truncf %417 : vector<2x64xf32> to vector<2x64xbf16>
    %cst_76 = arith.constant dense<0.000000e+00> : vector<2x192xf32>
    %424 = tpu.matmul %423, %357, %cst_76 {dimension_numbers = #tpu.dot_dimension_numbers<[1], [0], [0], [1], [0, 0, 1, 1], [], []>} : vector<2x64xbf16>, vector<64x192xbf16>, vector<2x192xf32> -> vector<2x192xf32>
    %425 = vector.broadcast %358 : vector<1x192xf32> to vector<2x192xf32>
    %426 = arith.addf %424, %425 : vector<2x192xf32>
    %427 = vector.extract_strided_slice %422 {offsets = [0, 0], sizes = [2, 128], strides = [1, 1]} : vector<2x192xf32> to vector<2x128xf32>
    %428 = vector.extract_strided_slice %426 {offsets = [0, 0], sizes = [2, 128], strides = [1, 1]} : vector<2x192xf32> to vector<2x128xf32>
    %429 = arith.addf %427, %428 : vector<2x128xf32>
    %430 = arith.negf %429 : vector<2x128xf32>
    %431 = math.exp %430 : vector<2x128xf32>
    %cst_77 = arith.constant 1.000000e+00 : f32
    %432 = vector.broadcast %cst_77 : f32 to vector<2x128xf32>
    %433 = arith.addf %432, %431 : vector<2x128xf32>
    %434 = arith.divf %432, %433 : vector<2x128xf32>
    %435 = vector.extract_strided_slice %434 {offsets = [0, 0], sizes = [2, 64], strides = [1, 1]} : vector<2x128xf32> to vector<2x64xf32>
    %436 = vector.extract_strided_slice %434 {offsets = [0, 64], sizes = [2, 64], strides = [1, 1]} : vector<2x128xf32> to vector<2x64xf32>
    %437 = vector.extract_strided_slice %422 {offsets = [0, 128], sizes = [2, 64], strides = [1, 1]} : vector<2x192xf32> to vector<2x64xf32>
    %438 = vector.extract_strided_slice %426 {offsets = [0, 128], sizes = [2, 64], strides = [1, 1]} : vector<2x192xf32> to vector<2x64xf32>
    %439 = arith.mulf %435, %438 : vector<2x64xf32>
    %440 = arith.addf %437, %439 : vector<2x64xf32>
    %441 = math.tanh %440 : vector<2x64xf32>
    %cst_78 = arith.constant 1.000000e+00 : f32
    %442 = vector.broadcast %cst_78 : f32 to vector<2x64xf32>
    %443 = arith.subf %442, %436 : vector<2x64xf32>
    %444 = arith.mulf %443, %441 : vector<2x64xf32>
    %445 = arith.mulf %436, %417 : vector<2x64xf32>
    %446 = arith.addf %444, %445 : vector<2x64xf32>
    %447 = vector.extract_strided_slice %356 {offsets = [0, 3, 0], sizes = [2, 1, 192], strides = [1, 1, 1]} : vector<2x8x192xf32> to vector<2x1x192xf32>
    %448 = vector.shape_cast %447 : vector<2x1x192xf32> to vector<2x192xf32>
    %449 = vector.extract_strided_slice %356 {offsets = [0, 4, 0], sizes = [2, 1, 192], strides = [1, 1, 1]} : vector<2x8x192xf32> to vector<2x1x192xf32>
    %450 = vector.shape_cast %449 : vector<2x1x192xf32> to vector<2x192xf32>
    %451 = arith.select %86, %448, %450 : vector<2x192xi1>, vector<2x192xf32>
    %452 = arith.truncf %446 : vector<2x64xf32> to vector<2x64xbf16>
    %cst_79 = arith.constant dense<0.000000e+00> : vector<2x192xf32>
    %453 = tpu.matmul %452, %357, %cst_79 {dimension_numbers = #tpu.dot_dimension_numbers<[1], [0], [0], [1], [0, 0, 1, 1], [], []>} : vector<2x64xbf16>, vector<64x192xbf16>, vector<2x192xf32> -> vector<2x192xf32>
    %454 = vector.broadcast %358 : vector<1x192xf32> to vector<2x192xf32>
    %455 = arith.addf %453, %454 : vector<2x192xf32>
    %456 = vector.extract_strided_slice %451 {offsets = [0, 0], sizes = [2, 128], strides = [1, 1]} : vector<2x192xf32> to vector<2x128xf32>
    %457 = vector.extract_strided_slice %455 {offsets = [0, 0], sizes = [2, 128], strides = [1, 1]} : vector<2x192xf32> to vector<2x128xf32>
    %458 = arith.addf %456, %457 : vector<2x128xf32>
    %459 = arith.negf %458 : vector<2x128xf32>
    %460 = math.exp %459 : vector<2x128xf32>
    %cst_80 = arith.constant 1.000000e+00 : f32
    %461 = vector.broadcast %cst_80 : f32 to vector<2x128xf32>
    %462 = arith.addf %461, %460 : vector<2x128xf32>
    %463 = arith.divf %461, %462 : vector<2x128xf32>
    %464 = vector.extract_strided_slice %463 {offsets = [0, 0], sizes = [2, 64], strides = [1, 1]} : vector<2x128xf32> to vector<2x64xf32>
    %465 = vector.extract_strided_slice %463 {offsets = [0, 64], sizes = [2, 64], strides = [1, 1]} : vector<2x128xf32> to vector<2x64xf32>
    %466 = vector.extract_strided_slice %451 {offsets = [0, 128], sizes = [2, 64], strides = [1, 1]} : vector<2x192xf32> to vector<2x64xf32>
    %467 = vector.extract_strided_slice %455 {offsets = [0, 128], sizes = [2, 64], strides = [1, 1]} : vector<2x192xf32> to vector<2x64xf32>
    %468 = arith.mulf %464, %467 : vector<2x64xf32>
    %469 = arith.addf %466, %468 : vector<2x64xf32>
    %470 = math.tanh %469 : vector<2x64xf32>
    %cst_81 = arith.constant 1.000000e+00 : f32
    %471 = vector.broadcast %cst_81 : f32 to vector<2x64xf32>
    %472 = arith.subf %471, %465 : vector<2x64xf32>
    %473 = arith.mulf %472, %470 : vector<2x64xf32>
    %474 = arith.mulf %465, %446 : vector<2x64xf32>
    %475 = arith.addf %473, %474 : vector<2x64xf32>
    %476 = vector.extract_strided_slice %356 {offsets = [0, 4, 0], sizes = [2, 1, 192], strides = [1, 1, 1]} : vector<2x8x192xf32> to vector<2x1x192xf32>
    %477 = vector.shape_cast %476 : vector<2x1x192xf32> to vector<2x192xf32>
    %478 = vector.extract_strided_slice %356 {offsets = [0, 3, 0], sizes = [2, 1, 192], strides = [1, 1, 1]} : vector<2x8x192xf32> to vector<2x1x192xf32>
    %479 = vector.shape_cast %478 : vector<2x1x192xf32> to vector<2x192xf32>
    %480 = arith.select %86, %477, %479 : vector<2x192xi1>, vector<2x192xf32>
    %481 = arith.truncf %475 : vector<2x64xf32> to vector<2x64xbf16>
    %cst_82 = arith.constant dense<0.000000e+00> : vector<2x192xf32>
    %482 = tpu.matmul %481, %357, %cst_82 {dimension_numbers = #tpu.dot_dimension_numbers<[1], [0], [0], [1], [0, 0, 1, 1], [], []>} : vector<2x64xbf16>, vector<64x192xbf16>, vector<2x192xf32> -> vector<2x192xf32>
    %483 = vector.broadcast %358 : vector<1x192xf32> to vector<2x192xf32>
    %484 = arith.addf %482, %483 : vector<2x192xf32>
    %485 = vector.extract_strided_slice %480 {offsets = [0, 0], sizes = [2, 128], strides = [1, 1]} : vector<2x192xf32> to vector<2x128xf32>
    %486 = vector.extract_strided_slice %484 {offsets = [0, 0], sizes = [2, 128], strides = [1, 1]} : vector<2x192xf32> to vector<2x128xf32>
    %487 = arith.addf %485, %486 : vector<2x128xf32>
    %488 = arith.negf %487 : vector<2x128xf32>
    %489 = math.exp %488 : vector<2x128xf32>
    %cst_83 = arith.constant 1.000000e+00 : f32
    %490 = vector.broadcast %cst_83 : f32 to vector<2x128xf32>
    %491 = arith.addf %490, %489 : vector<2x128xf32>
    %492 = arith.divf %490, %491 : vector<2x128xf32>
    %493 = vector.extract_strided_slice %492 {offsets = [0, 0], sizes = [2, 64], strides = [1, 1]} : vector<2x128xf32> to vector<2x64xf32>
    %494 = vector.extract_strided_slice %492 {offsets = [0, 64], sizes = [2, 64], strides = [1, 1]} : vector<2x128xf32> to vector<2x64xf32>
    %495 = vector.extract_strided_slice %480 {offsets = [0, 128], sizes = [2, 64], strides = [1, 1]} : vector<2x192xf32> to vector<2x64xf32>
    %496 = vector.extract_strided_slice %484 {offsets = [0, 128], sizes = [2, 64], strides = [1, 1]} : vector<2x192xf32> to vector<2x64xf32>
    %497 = arith.mulf %493, %496 : vector<2x64xf32>
    %498 = arith.addf %495, %497 : vector<2x64xf32>
    %499 = math.tanh %498 : vector<2x64xf32>
    %cst_84 = arith.constant 1.000000e+00 : f32
    %500 = vector.broadcast %cst_84 : f32 to vector<2x64xf32>
    %501 = arith.subf %500, %494 : vector<2x64xf32>
    %502 = arith.mulf %501, %499 : vector<2x64xf32>
    %503 = arith.mulf %494, %475 : vector<2x64xf32>
    %504 = arith.addf %502, %503 : vector<2x64xf32>
    %505 = vector.extract_strided_slice %356 {offsets = [0, 5, 0], sizes = [2, 1, 192], strides = [1, 1, 1]} : vector<2x8x192xf32> to vector<2x1x192xf32>
    %506 = vector.shape_cast %505 : vector<2x1x192xf32> to vector<2x192xf32>
    %507 = vector.extract_strided_slice %356 {offsets = [0, 2, 0], sizes = [2, 1, 192], strides = [1, 1, 1]} : vector<2x8x192xf32> to vector<2x1x192xf32>
    %508 = vector.shape_cast %507 : vector<2x1x192xf32> to vector<2x192xf32>
    %509 = arith.select %86, %506, %508 : vector<2x192xi1>, vector<2x192xf32>
    %510 = arith.truncf %504 : vector<2x64xf32> to vector<2x64xbf16>
    %cst_85 = arith.constant dense<0.000000e+00> : vector<2x192xf32>
    %511 = tpu.matmul %510, %357, %cst_85 {dimension_numbers = #tpu.dot_dimension_numbers<[1], [0], [0], [1], [0, 0, 1, 1], [], []>} : vector<2x64xbf16>, vector<64x192xbf16>, vector<2x192xf32> -> vector<2x192xf32>
    %512 = vector.broadcast %358 : vector<1x192xf32> to vector<2x192xf32>
    %513 = arith.addf %511, %512 : vector<2x192xf32>
    %514 = vector.extract_strided_slice %509 {offsets = [0, 0], sizes = [2, 128], strides = [1, 1]} : vector<2x192xf32> to vector<2x128xf32>
    %515 = vector.extract_strided_slice %513 {offsets = [0, 0], sizes = [2, 128], strides = [1, 1]} : vector<2x192xf32> to vector<2x128xf32>
    %516 = arith.addf %514, %515 : vector<2x128xf32>
    %517 = arith.negf %516 : vector<2x128xf32>
    %518 = math.exp %517 : vector<2x128xf32>
    %cst_86 = arith.constant 1.000000e+00 : f32
    %519 = vector.broadcast %cst_86 : f32 to vector<2x128xf32>
    %520 = arith.addf %519, %518 : vector<2x128xf32>
    %521 = arith.divf %519, %520 : vector<2x128xf32>
    %522 = vector.extract_strided_slice %521 {offsets = [0, 0], sizes = [2, 64], strides = [1, 1]} : vector<2x128xf32> to vector<2x64xf32>
    %523 = vector.extract_strided_slice %521 {offsets = [0, 64], sizes = [2, 64], strides = [1, 1]} : vector<2x128xf32> to vector<2x64xf32>
    %524 = vector.extract_strided_slice %509 {offsets = [0, 128], sizes = [2, 64], strides = [1, 1]} : vector<2x192xf32> to vector<2x64xf32>
    %525 = vector.extract_strided_slice %513 {offsets = [0, 128], sizes = [2, 64], strides = [1, 1]} : vector<2x192xf32> to vector<2x64xf32>
    %526 = arith.mulf %522, %525 : vector<2x64xf32>
    %527 = arith.addf %524, %526 : vector<2x64xf32>
    %528 = math.tanh %527 : vector<2x64xf32>
    %cst_87 = arith.constant 1.000000e+00 : f32
    %529 = vector.broadcast %cst_87 : f32 to vector<2x64xf32>
    %530 = arith.subf %529, %523 : vector<2x64xf32>
    %531 = arith.mulf %530, %528 : vector<2x64xf32>
    %532 = arith.mulf %523, %504 : vector<2x64xf32>
    %533 = arith.addf %531, %532 : vector<2x64xf32>
    %534 = vector.extract_strided_slice %356 {offsets = [0, 6, 0], sizes = [2, 1, 192], strides = [1, 1, 1]} : vector<2x8x192xf32> to vector<2x1x192xf32>
    %535 = vector.shape_cast %534 : vector<2x1x192xf32> to vector<2x192xf32>
    %536 = vector.extract_strided_slice %356 {offsets = [0, 1, 0], sizes = [2, 1, 192], strides = [1, 1, 1]} : vector<2x8x192xf32> to vector<2x1x192xf32>
    %537 = vector.shape_cast %536 : vector<2x1x192xf32> to vector<2x192xf32>
    %538 = arith.select %86, %535, %537 : vector<2x192xi1>, vector<2x192xf32>
    %539 = arith.truncf %533 : vector<2x64xf32> to vector<2x64xbf16>
    %cst_88 = arith.constant dense<0.000000e+00> : vector<2x192xf32>
    %540 = tpu.matmul %539, %357, %cst_88 {dimension_numbers = #tpu.dot_dimension_numbers<[1], [0], [0], [1], [0, 0, 1, 1], [], []>} : vector<2x64xbf16>, vector<64x192xbf16>, vector<2x192xf32> -> vector<2x192xf32>
    %541 = vector.broadcast %358 : vector<1x192xf32> to vector<2x192xf32>
    %542 = arith.addf %540, %541 : vector<2x192xf32>
    %543 = vector.extract_strided_slice %538 {offsets = [0, 0], sizes = [2, 128], strides = [1, 1]} : vector<2x192xf32> to vector<2x128xf32>
    %544 = vector.extract_strided_slice %542 {offsets = [0, 0], sizes = [2, 128], strides = [1, 1]} : vector<2x192xf32> to vector<2x128xf32>
    %545 = arith.addf %543, %544 : vector<2x128xf32>
    %546 = arith.negf %545 : vector<2x128xf32>
    %547 = math.exp %546 : vector<2x128xf32>
    %cst_89 = arith.constant 1.000000e+00 : f32
    %548 = vector.broadcast %cst_89 : f32 to vector<2x128xf32>
    %549 = arith.addf %548, %547 : vector<2x128xf32>
    %550 = arith.divf %548, %549 : vector<2x128xf32>
    %551 = vector.extract_strided_slice %550 {offsets = [0, 0], sizes = [2, 64], strides = [1, 1]} : vector<2x128xf32> to vector<2x64xf32>
    %552 = vector.extract_strided_slice %550 {offsets = [0, 64], sizes = [2, 64], strides = [1, 1]} : vector<2x128xf32> to vector<2x64xf32>
    %553 = vector.extract_strided_slice %538 {offsets = [0, 128], sizes = [2, 64], strides = [1, 1]} : vector<2x192xf32> to vector<2x64xf32>
    %554 = vector.extract_strided_slice %542 {offsets = [0, 128], sizes = [2, 64], strides = [1, 1]} : vector<2x192xf32> to vector<2x64xf32>
    %555 = arith.mulf %551, %554 : vector<2x64xf32>
    %556 = arith.addf %553, %555 : vector<2x64xf32>
    %557 = math.tanh %556 : vector<2x64xf32>
    %cst_90 = arith.constant 1.000000e+00 : f32
    %558 = vector.broadcast %cst_90 : f32 to vector<2x64xf32>
    %559 = arith.subf %558, %552 : vector<2x64xf32>
    %560 = arith.mulf %559, %557 : vector<2x64xf32>
    %561 = arith.mulf %552, %533 : vector<2x64xf32>
    %562 = arith.addf %560, %561 : vector<2x64xf32>
    %563 = vector.extract_strided_slice %356 {offsets = [0, 7, 0], sizes = [2, 1, 192], strides = [1, 1, 1]} : vector<2x8x192xf32> to vector<2x1x192xf32>
    %564 = vector.shape_cast %563 : vector<2x1x192xf32> to vector<2x192xf32>
    %565 = vector.extract_strided_slice %356 {offsets = [0, 0, 0], sizes = [2, 1, 192], strides = [1, 1, 1]} : vector<2x8x192xf32> to vector<2x1x192xf32>
    %566 = vector.shape_cast %565 : vector<2x1x192xf32> to vector<2x192xf32>
    %567 = arith.select %86, %564, %566 : vector<2x192xi1>, vector<2x192xf32>
    %568 = arith.truncf %562 : vector<2x64xf32> to vector<2x64xbf16>
    %cst_91 = arith.constant dense<0.000000e+00> : vector<2x192xf32>
    %569 = tpu.matmul %568, %357, %cst_91 {dimension_numbers = #tpu.dot_dimension_numbers<[1], [0], [0], [1], [0, 0, 1, 1], [], []>} : vector<2x64xbf16>, vector<64x192xbf16>, vector<2x192xf32> -> vector<2x192xf32>
    %570 = vector.broadcast %358 : vector<1x192xf32> to vector<2x192xf32>
    %571 = arith.addf %569, %570 : vector<2x192xf32>
    %572 = vector.extract_strided_slice %567 {offsets = [0, 0], sizes = [2, 128], strides = [1, 1]} : vector<2x192xf32> to vector<2x128xf32>
    %573 = vector.extract_strided_slice %571 {offsets = [0, 0], sizes = [2, 128], strides = [1, 1]} : vector<2x192xf32> to vector<2x128xf32>
    %574 = arith.addf %572, %573 : vector<2x128xf32>
    %575 = arith.negf %574 : vector<2x128xf32>
    %576 = math.exp %575 : vector<2x128xf32>
    %cst_92 = arith.constant 1.000000e+00 : f32
    %577 = vector.broadcast %cst_92 : f32 to vector<2x128xf32>
    %578 = arith.addf %577, %576 : vector<2x128xf32>
    %579 = arith.divf %577, %578 : vector<2x128xf32>
    %580 = vector.extract_strided_slice %579 {offsets = [0, 0], sizes = [2, 64], strides = [1, 1]} : vector<2x128xf32> to vector<2x64xf32>
    %581 = vector.extract_strided_slice %579 {offsets = [0, 64], sizes = [2, 64], strides = [1, 1]} : vector<2x128xf32> to vector<2x64xf32>
    %582 = vector.extract_strided_slice %567 {offsets = [0, 128], sizes = [2, 64], strides = [1, 1]} : vector<2x192xf32> to vector<2x64xf32>
    %583 = vector.extract_strided_slice %571 {offsets = [0, 128], sizes = [2, 64], strides = [1, 1]} : vector<2x192xf32> to vector<2x64xf32>
    %584 = arith.mulf %580, %583 : vector<2x64xf32>
    %585 = arith.addf %582, %584 : vector<2x64xf32>
    %586 = math.tanh %585 : vector<2x64xf32>
    %cst_93 = arith.constant 1.000000e+00 : f32
    %587 = vector.broadcast %cst_93 : f32 to vector<2x64xf32>
    %588 = arith.subf %587, %581 : vector<2x64xf32>
    %589 = arith.mulf %588, %586 : vector<2x64xf32>
    %590 = arith.mulf %581, %562 : vector<2x64xf32>
    %591 = arith.addf %589, %590 : vector<2x64xf32>
    %592 = arith.select %89, %591, %388 : vector<2x64xi1>, vector<2x64xf32>
    %593 = arith.truncf %592 : vector<2x64xf32> to vector<2x64xbf16>
    %c0_94 = arith.constant 0 : index
    %c0_95 = arith.constant 0 : index
    %594 = vector.load %arg15[%c0_94, %c0_95] : memref<64x2xbf16, #tpu.memory_space<vmem>>, vector<64x2xbf16>
    %cst_96 = arith.constant dense<0.000000e+00> : vector<2x2xf32>
    %595 = tpu.matmul %593, %594, %cst_96 {dimension_numbers = #tpu.dot_dimension_numbers<[1], [0], [0], [1], [0, 0, 1, 1], [], []>} : vector<2x64xbf16>, vector<64x2xbf16>, vector<2x2xf32> -> vector<2x2xf32>
    %c0_97 = arith.constant 0 : index
    %c0_98 = arith.constant 0 : index
    %596 = vector.load %arg16[%c0_97, %c0_98] : memref<1x2xf32, #tpu.memory_space<vmem>>, vector<1x2xf32>
    %597 = vector.broadcast %596 : vector<1x2xf32> to vector<2x2xf32>
    %598 = arith.addf %595, %597 : vector<2x2xf32>
    %c0_99 = arith.constant 0 : index
    %c0_100 = arith.constant 0 : index
    %599 = vector.load %arg17[%c0_99, %c0_100] : memref<2x2xf32, #tpu.memory_space<vmem>>, vector<2x2xf32>
    tpu.vector_store %arg17[%c0_99, %c0_100], %598 {strides = array<i32>} : memref<2x2xf32, #tpu.memory_space<vmem>>, vector<2x2xf32>,
    return
  }
}

</mosaic_0001>

<llo_original>
// kernel: lightcnn_rnn_forward.1
$region0: #{lightcnn_rnn_forward.1}
  #allocation0 [shape = 'u32[]', space=smem, size = 0x4, offset = 0x4, fixed_abs, tag = 'smem constant byte address 0x4 - core index']
  #allocation1 [shape = 'u32[144,128]{1,0:T(1,128)}', space=vmem, size = 0x12000, scoped, tag = 'internal scratch']
  %s0 = inlined_call_operand.hbm [shape: f32[2,1,16,16], index: 0, kind: input, shape index: {}]
  %s1 = inlined_call_operand.vmem [shape: bf16[80,256], index: 1, kind: input, shape index: {}]
  %s2 = inlined_call_operand.vmem [shape: f32[1,256], index: 2, kind: input, shape index: {}]
  %s3 = inlined_call_operand.hbm [shape: bf16[64,128], index: 3, kind: input, shape index: {}]
  %s4 = inlined_call_operand.hbm [shape: f32[1,128], index: 4, kind: input, shape index: {}]
  %s5 = inlined_call_operand.vmem [shape: bf16[192,256], index: 5, kind: input, shape index: {}]
  %s6 = inlined_call_operand.vmem [shape: f32[1,256], index: 6, kind: input, shape index: {}]
  %s7 = inlined_call_operand.vmem [shape: bf16[128,192], index: 7, kind: input, shape index: {}]
  %s8 = inlined_call_operand.vmem [shape: f32[1,192], index: 8, kind: input, shape index: {}]
  %s9 = inlined_call_operand.hbm [shape: bf16[64,192], index: 9, kind: input, shape index: {}]
  %s10 = inlined_call_operand.hbm [shape: f32[1,192], index: 10, kind: input, shape index: {}]
  %s11 = inlined_call_operand.hbm [shape: bf16[64,192], index: 11, kind: input, shape index: {}]
  %s12 = inlined_call_operand.hbm [shape: f32[1,192], index: 12, kind: input, shape index: {}]
  %s13 = inlined_call_operand.hbm [shape: bf16[64,192], index: 13, kind: input, shape index: {}]
  %s14 = inlined_call_operand.hbm [shape: f32[1,192], index: 14, kind: input, shape index: {}]
  %s15 = inlined_call_operand.vmem [shape: bf16[64,2], index: 15, kind: input, shape index: {}]
  %s16 = inlined_call_operand.hbm [shape: f32[1,2], index: 16, kind: input, shape index: {}]
  %s17 = inlined_call_operand.hbm [shape: f32[2,2], index: 17, kind: output, shape index: {}]
  %s18 = sld [smem:[#allocation0]]
  $region118: #{lightcnn_rnn_forward.1} parent=0
    _
  %s20 = ssub.s32 1, %s18
  %s21 = scalar_select 0, %s20, %s18
  $region1: #{lightcnn_rnn_forward.1} parent=0
    #allocation2 [shape = 'u8[16384]{0}', space=vmem, size = 0x4000, scoped, tag = 'input window, operand 0, single buffered']
    #allocation3 [shape = 's32[1]{0}', space=sflag, size = 0x4, scoped, tag = 'scoped memory for lightcnn_rnn_forward.1']
    #allocation4 [shape = 's32[1]{0}', space=sflag, size = 0x4, scoped, tag = 'scoped memory for lightcnn_rnn_forward.1']
    #allocation5 [shape = 'u8[16384]{0}', space=vmem, size = 0x4000, scoped, tag = 'input window, operand 3, single buffered']
    #allocation6 [shape = 's32[1]{0}', space=sflag, size = 0x4, scoped, tag = 'scoped memory for lightcnn_rnn_forward.1']
    #allocation7 [shape = 'u8[512]{0}', space=vmem, size = 0x400, scoped, tag = 'input window, operand 4, single buffered']
    #allocation8 [shape = 'u8[32768]{0}', space=vmem, size = 0x8000, scoped, tag = 'input window, operand 9, single buffered']
    #allocation9 [shape = 's32[1]{0}', space=sflag, size = 0x4, scoped, tag = 'scoped memory for lightcnn_rnn_forward.1']
    #allocation10 [shape = 'u8[1024]{0}', space=vmem, size = 0x400, scoped, tag = 'input window, operand 10, single buffered']
    #allocation11 [shape = 'u8[32768]{0}', space=vmem, size = 0x8000, scoped, tag = 'input window, operand 11, single buffered']
    #allocation12 [shape = 's32[1]{0}', space=sflag, size = 0x4, scoped, tag = 'scoped memory for lightcnn_rnn_forward.1']
    #allocation13 [shape = 'u8[1024]{0}', space=vmem, size = 0x400, scoped, tag = 'input window, operand 12, single buffered']
    #allocation14 [shape = 'u8[32768]{0}', space=vmem, size = 0x8000, scoped, tag = 'input window, operand 13, single buffered']
    #allocation15 [shape = 's32[1]{0}', space=sflag, size = 0x4, scoped, tag = 'scoped memory for lightcnn_rnn_forward.1']
    #allocation16 [shape = 'u8[1024]{0}', space=vmem, size = 0x400, scoped, tag = 'input window, operand 14, single buffered']
    #allocation17 [shape = 'u8[512]{0}', space=vmem, size = 0x400, scoped, tag = 'input window, operand 16, single buffered']
    #allocation18 [shape = 's32[1]{0}', space=sflag, size = 0x4, scoped, tag = 'scoped memory for lightcnn_rnn_forward.1']
    #allocation19 [shape = 'u8[1024]{0}', space=vmem, size = 0x400, scoped, tag = 'output window, operand 0, single buffered']
    %22 = vsyncpa [#allocation3], 0
    %23 = vsyncpa [#allocation6], 0
    %24 = vsyncpa [#allocation9], 0
    %25 = vsyncpa [#allocation12], 0
    %26 = vsyncpa [#allocation15], 0
    %27 = vsyncpa [#allocation18], 0
    %28 = vsyncpa [#allocation4], 0
    // Predicated region
    $region2: #{lightcnn_rnn_forward.1} parent=1 // pred_check
      _
    $region3: #{lightcnn_rnn_forward.1} parent=1 // pred_check_branch
      %30 = sbr.rel (0) target = $region5
    $region4: #{lightcnn_rnn_forward.1} parent=1 // pred_region
      %s32 = ssub.s32 512, 512
      %33 = vsyncadd [#allocation3], %s32
      %s34 = sshll.u32 [#allocation2], 4
      %s35 = int_to_ptr.vmem [resolvable:$true] %s34
      %40 = dma.hbm_to_vmem [thread:$0]  %s0, 512, %s35, [#allocation3], 128, 128, 8
    $region5: #{lightcnn_rnn_forward.1} parent=1 // pred_fallthru
      _
    // Predicated region
    $region6: #{lightcnn_rnn_forward.1} parent=1 // pred_check
      _
    $region7: #{lightcnn_rnn_forward.1} parent=1 // pred_check_branch
      %42 = sbr.rel (0) target = $region9
    $region8: #{lightcnn_rnn_forward.1} parent=1 // pred_region
      _
    $region9: #{lightcnn_rnn_forward.1} parent=1 // pred_fallthru
      _
    // Predicated region
    $region10: #{lightcnn_rnn_forward.1} parent=1 // pred_check
      _
    $region11: #{lightcnn_rnn_forward.1} parent=1 // pred_check_branch
      %44 = sbr.rel (0) target = $region13
    $region12: #{lightcnn_rnn_forward.1} parent=1 // pred_region
      _
    $region13: #{lightcnn_rnn_forward.1} parent=1 // pred_fallthru
      _
    // Predicated region
    $region14: #{lightcnn_rnn_forward.1} parent=1 // pred_check
      _
    $region15: #{lightcnn_rnn_forward.1} parent=1 // pred_check_branch
      %46 = sbr.rel (0) target = $region17
    $region16: #{lightcnn_rnn_forward.1} parent=1 // pred_region
      %s48 = ssub.s32 512, 512
      %49 = vsyncadd [#allocation6], %s48
      %s50 = sshll.u32 [#allocation5], 4
      %s51 = int_to_ptr.vmem [resolvable:$true] %s50
      %56 = dma.hbm_to_vmem [thread:$0]  %s3, 512, %s51, [#allocation6], 64, 64, 4
    $region17: #{lightcnn_rnn_forward.1} parent=1 // pred_fallthru
      _
    // Predicated region
    $region18: #{lightcnn_rnn_forward.1} parent=1 // pred_check
      _
    $region19: #{lightcnn_rnn_forward.1} parent=1 // pred_check_branch
      %58 = sbr.rel (0) target = $region21
    $region20: #{lightcnn_rnn_forward.1} parent=1 // pred_region
      %s60 = ssub.s32 16, 16
      %61 = vsyncadd [#allocation6], %s60
      %s63 = sshll.u32 [#allocation7], 4
      %s64 = int_to_ptr.vmem [resolvable:$true] %s63
      %66 = dma.hbm_to_vmem [thread:$0]  %s4, 16, %s64, [#allocation6]
    $region21: #{lightcnn_rnn_forward.1} parent=1 // pred_fallthru
      _
    // Predicated region
    $region22: #{lightcnn_rnn_forward.1} parent=1 // pred_check
      _
    $region23: #{lightcnn_rnn_forward.1} parent=1 // pred_check_branch
      %68 = sbr.rel (0) target = $region25
    $region24: #{lightcnn_rnn_forward.1} parent=1 // pred_region
      _
    $region25: #{lightcnn_rnn_forward.1} parent=1 // pred_fallthru
      _
    // Predicated region
    $region26: #{lightcnn_rnn_forward.1} parent=1 // pred_check
      _
    $region27: #{lightcnn_rnn_forward.1} parent=1 // pred_check_branch
      %70 = sbr.rel (0) target = $region29
    $region28: #{lightcnn_rnn_forward.1} parent=1 // pred_region
      _
    $region29: #{lightcnn_rnn_forward.1} parent=1 // pred_fallthru
      _
    // Predicated region
    $region30: #{lightcnn_rnn_forward.1} parent=1 // pred_check
      _
    $region31: #{lightcnn_rnn_forward.1} parent=1 // pred_check_branch
      %72 = sbr.rel (0) target = $region33
    $region32: #{lightcnn_rnn_forward.1} parent=1 // pred_region
      _
    $region33: #{lightcnn_rnn_forward.1} parent=1 // pred_fallthru
      _
    // Predicated region
    $region34: #{lightcnn_rnn_forward.1} parent=1 // pred_check
      _
    $region35: #{lightcnn_rnn_forward.1} parent=1 // pred_check_branch
      %74 = sbr.rel (0) target = $region37
    $region36: #{lightcnn_rnn_forward.1} parent=1 // pred_region
      _
    $region37: #{lightcnn_rnn_forward.1} parent=1 // pred_fallthru
      _
    // Predicated region
    $region38: #{lightcnn_rnn_forward.1} parent=1 // pred_check
      _
    $region39: #{lightcnn_rnn_forward.1} parent=1 // pred_check_branch
      %76 = sbr.rel (0) target = $region41
    $region40: #{lightcnn_rnn_forward.1} parent=1 // pred_region
      %s78 = ssub.s32 1024, 1024
      %79 = vsyncadd [#allocation9], %s78
      %s80 = sshll.u32 [#allocation8], 4
      %s81 = int_to_ptr.vmem [resolvable:$true] %s80
      %86 = dma.hbm_to_vmem [thread:$0]  %s9, 1024, %s81, [#allocation9], 128, 128, 8
    $region41: #{lightcnn_rnn_forward.1} parent=1 // pred_fallthru
      _
    // Predicated region
    $region42: #{lightcnn_rnn_forward.1} parent=1 // pred_check
      _
    $region43: #{lightcnn_rnn_forward.1} parent=1 // pred_check_branch
      %88 = sbr.rel (0) target = $region45
    $region44: #{lightcnn_rnn_forward.1} parent=1 // pred_region
      %s90 = ssub.s32 32, 32
      %91 = vsyncadd [#allocation9], %s90
      %s93 = sshll.u32 [#allocation10], 4
      %s94 = int_to_ptr.vmem [resolvable:$true] %s93
      %96 = dma.hbm_to_vmem [thread:$0]  %s10, 32, %s94, [#allocation9]
    $region45: #{lightcnn_rnn_forward.1} parent=1 // pred_fallthru
      _
    // Predicated region
    $region46: #{lightcnn_rnn_forward.1} parent=1 // pred_check
      _
    $region47: #{lightcnn_rnn_forward.1} parent=1 // pred_check_branch
      %98 = sbr.rel (0) target = $region49
    $region48: #{lightcnn_rnn_forward.1} parent=1 // pred_region
      %s100 = ssub.s32 1024, 1024
      %101 = vsyncadd [#allocation12], %s100
      %s102 = sshll.u32 [#allocation11], 4
      %s103 = int_to_ptr.vmem [resolvable:$true] %s102
      %108 = dma.hbm_to_vmem [thread:$0]  %s11, 1024, %s103, [#allocation12], 128, 128, 8
    $region49: #{lightcnn_rnn_forward.1} parent=1 // pred_fallthru
      _
    // Predicated region
    $region50: #{lightcnn_rnn_forward.1} parent=1 // pred_check
      _
    $region51: #{lightcnn_rnn_forward.1} parent=1 // pred_check_branch
      %110 = sbr.rel (0) target = $region53
    $region52: #{lightcnn_rnn_forward.1} parent=1 // pred_region
      %s112 = ssub.s32 32, 32
      %113 = vsyncadd [#allocation12], %s112
      %s115 = sshll.u32 [#allocation13], 4
      %s116 = int_to_ptr.vmem [resolvable:$true] %s115
      %118 = dma.hbm_to_vmem [thread:$0]  %s12, 32, %s116, [#allocation12]
    $region53: #{lightcnn_rnn_forward.1} parent=1 // pred_fallthru
      _
    // Predicated region
    $region54: #{lightcnn_rnn_forward.1} parent=1 // pred_check
      _
    $region55: #{lightcnn_rnn_forward.1} parent=1 // pred_check_branch
      %120 = sbr.rel (0) target = $region57
    $region56: #{lightcnn_rnn_forward.1} parent=1 // pred_region
      %s122 = ssub.s32 1024, 1024
      %123 = vsyncadd [#allocation15], %s122
      %s124 = sshll.u32 [#allocation14], 4
      %s125 = int_to_ptr.vmem [resolvable:$true] %s124
      %130 = dma.hbm_to_vmem [thread:$0]  %s13, 1024, %s125, [#allocation15], 128, 128, 8
    $region57: #{lightcnn_rnn_forward.1} parent=1 // pred_fallthru
      _
    // Predicated region
    $region58: #{lightcnn_rnn_forward.1} parent=1 // pred_check
      _
    $region59: #{lightcnn_rnn_forward.1} parent=1 // pred_check_branch
      %132 = sbr.rel (0) target = $region61
    $region60: #{lightcnn_rnn_forward.1} parent=1 // pred_region
      %s134 = ssub.s32 32, 32
      %135 = vsyncadd [#allocation15], %s134
      %s137 = sshll.u32 [#allocation16], 4
      %s138 = int_to_ptr.vmem [resolvable:$true] %s137
      %140 = dma.hbm_to_vmem [thread:$0]  %s14, 32, %s138, [#allocation15]
    $region61: #{lightcnn_rnn_forward.1} parent=1 // pred_fallthru
      _
    // Predicated region
    $region62: #{lightcnn_rnn_forward.1} parent=1 // pred_check
      _
    $region63: #{lightcnn_rnn_forward.1} parent=1 // pred_check_branch
      %142 = sbr.rel (0) target = $region65
    $region64: #{lightcnn_rnn_forward.1} parent=1 // pred_region
      _
    $region65: #{lightcnn_rnn_forward.1} parent=1 // pred_fallthru
      _
    // Predicated region
    $region66: #{lightcnn_rnn_forward.1} parent=1 // pred_check
      _
    $region67: #{lightcnn_rnn_forward.1} parent=1 // pred_check_branch
      %144 = sbr.rel (0) target = $region69
    $region68: #{lightcnn_rnn_forward.1} parent=1 // pred_region
      %s146 = ssub.s32 16, 16
      %147 = vsyncadd [#allocation18], %s146
      %s149 = sshll.u32 [#allocation17], 4
      %s150 = int_to_ptr.vmem [resolvable:$true] %s149
      %152 = dma.hbm_to_vmem [thread:$0]  %s16, 16, %s150, [#allocation18]
    $region69: #{lightcnn_rnn_forward.1} parent=1 // pred_fallthru
      _
    // Predicated region
    $region70: #{lightcnn_rnn_forward.1} parent=1 // pred_check
      _
    $region71: #{lightcnn_rnn_forward.1} parent=1 // pred_check_branch
      %154 = sbr.rel (0) target = $region73
    $region72: #{lightcnn_rnn_forward.1} parent=1 // pred_region
      %155 = dma.done [#allocation3], 512
    $region73: #{lightcnn_rnn_forward.1} parent=1 // pred_fallthru
      _
    // Predicated region
    $region74: #{lightcnn_rnn_forward.1} parent=1 // pred_check
      _
    $region75: #{lightcnn_rnn_forward.1} parent=1 // pred_check_branch
      %157 = sbr.rel (0) target = $region77
    $region76: #{lightcnn_rnn_forward.1} parent=1 // pred_region
      %158 = dma.done [#allocation6], 512
    $region77: #{lightcnn_rnn_forward.1} parent=1 // pred_fallthru
      _
    // Predicated region
    $region78: #{lightcnn_rnn_forward.1} parent=1 // pred_check
      _
    $region79: #{lightcnn_rnn_forward.1} parent=1 // pred_check_branch
      %160 = sbr.rel (0) target = $region81
    $region80: #{lightcnn_rnn_forward.1} parent=1 // pred_region
      %161 = dma.done [#allocation6], 16
    $region81: #{lightcnn_rnn_forward.1} parent=1 // pred_fallthru
      _
    // Predicated region
    $region82: #{lightcnn_rnn_forward.1} parent=1 // pred_check
      _
    $region83: #{lightcnn_rnn_forward.1} parent=1 // pred_check_branch
      %163 = sbr.rel (0) target = $region85
    $region84: #{lightcnn_rnn_forward.1} parent=1 // pred_region
      %164 = dma.done [#allocation9], 1024
    $region85: #{lightcnn_rnn_forward.1} parent=1 // pred_fallthru
      _
    // Predicated region
    $region86: #{lightcnn_rnn_forward.1} parent=1 // pred_check
      _
    $region87: #{lightcnn_rnn_forward.1} parent=1 // pred_check_branch
      %166 = sbr.rel (0) target = $region89
    $region88: #{lightcnn_rnn_forward.1} parent=1 // pred_region
      %167 = dma.done [#allocation9], 32
    $region89: #{lightcnn_rnn_forward.1} parent=1 // pred_fallthru
      _
    // Predicated region
    $region90: #{lightcnn_rnn_forward.1} parent=1 // pred_check
      _
    $region91: #{lightcnn_rnn_forward.1} parent=1 // pred_check_branch
      %169 = sbr.rel (0) target = $region93
    $region92: #{lightcnn_rnn_forward.1} parent=1 // pred_region
      %170 = dma.done [#allocation12], 1024
    $region93: #{lightcnn_rnn_forward.1} parent=1 // pred_fallthru
      _
    // Predicated region
    $region94: #{lightcnn_rnn_forward.1} parent=1 // pred_check
      _
    $region95: #{lightcnn_rnn_forward.1} parent=1 // pred_check_branch
      %172 = sbr.rel (0) target = $region97
    $region96: #{lightcnn_rnn_forward.1} parent=1 // pred_region
      %173 = dma.done [#allocation12], 32
    $region97: #{lightcnn_rnn_forward.1} parent=1 // pred_fallthru
      _
    // Predicated region
    $region98: #{lightcnn_rnn_forward.1} parent=1 // pred_check
      _
    $region99: #{lightcnn_rnn_forward.1} parent=1 // pred_check_branch
      %175 = sbr.rel (0) target = $region101
    $region100: #{lightcnn_rnn_forward.1} parent=1 // pred_region
      %176 = dma.done [#allocation15], 1024
    $region101: #{lightcnn_rnn_forward.1} parent=1 // pred_fallthru
      _
    // Predicated region
    $region102: #{lightcnn_rnn_forward.1} parent=1 // pred_check
      _
    $region103: #{lightcnn_rnn_forward.1} parent=1 // pred_check_branch
      %178 = sbr.rel (0) target = $region105
    $region104: #{lightcnn_rnn_forward.1} parent=1 // pred_region
      %179 = dma.done [#allocation15], 32
    $region105: #{lightcnn_rnn_forward.1} parent=1 // pred_fallthru
      _
    // Predicated region
    $region106: #{lightcnn_rnn_forward.1} parent=1 // pred_check
      _
    $region107: #{lightcnn_rnn_forward.1} parent=1 // pred_check_branch
      %181 = sbr.rel (0) target = $region109
    $region108: #{lightcnn_rnn_forward.1} parent=1 // pred_region
      %182 = dma.done [#allocation18], 16
    $region109: #{lightcnn_rnn_forward.1} parent=1 // pred_fallthru
      _
    %v184 = vld [vmem:[#allocation2] sm:$0xff]
    %v185 = vld [vmem:[#allocation2 + $0x8] sm:$0xff]
    %186 = vxpose.xlu0.b32.start [1/16] %v184, 128
    %187 = vxpose.xlu0.b32.cont [2/16] %v185, 128
    %188 = vxpose.xlu0.b32.cont [3/16] 0.0, 128
    %189 = vxpose.xlu0.b32.cont [4/16] 0.0, 128
    %190 = vxpose.xlu0.b32.cont [5/16] 0.0, 128
    %191 = vxpose.xlu0.b32.cont [6/16] 0.0, 128
    %192 = vxpose.xlu0.b32.cont [7/16] 0.0, 128
    %193 = vxpose.xlu0.b32.cont [8/16] 0.0, 128
    %194 = vxpose.xlu0.b32.cont [9/16] 0.0, 128
    %195 = vxpose.xlu0.b32.cont [10/16] 0.0, 128
    %196 = vxpose.xlu0.b32.cont [11/16] 0.0, 128
    %197 = vxpose.xlu0.b32.cont [12/16] 0.0, 128
    %198 = vxpose.xlu0.b32.cont [13/16] 0.0, 128
    %199 = vxpose.xlu0.b32.cont [14/16] 0.0, 128
    %200 = vxpose.xlu0.b32.cont [15/16] 0.0, 128
    %201 = vxpose.xlu0.b32.end [16/16] 0.0, 128
    %v202 = vpop.trf.xlu0
    %v203 = vpop.trf.xlu0
    %v204 = vpop.trf.xlu0
    %v205 = vpop.trf.xlu0
    %v206 = vpop.trf.xlu0
    %v207 = vpop.trf.xlu0
    %v208 = vpop.trf.xlu0
    %v209 = vpop.trf.xlu0
    %v210 = vpop.trf.xlu0
    %v211 = vpop.trf.xlu0
    %v212 = vpop.trf.xlu0
    %v213 = vpop.trf.xlu0
    %v214 = vpop.trf.xlu0
    %v215 = vpop.trf.xlu0
    %v216 = vpop.trf.xlu0
    %v217 = vpop.trf.xlu0
    %s218 = scalar_lea.vmem [#allocation2], 16
    %v219 = vld [vmem:[%s218] sm:$0xff]
    %v220 = vld [vmem:[%s218 + $0x8] sm:$0xff]
    %221 = vxpose.xlu0.b32.start [1/16] %v219, 128
    %222 = vxpose.xlu0.b32.cont [2/16] %v220, 128
    %223 = vxpose.xlu0.b32.cont [3/16] 0.0, 128
    %224 = vxpose.xlu0.b32.cont [4/16] 0.0, 128
    %225 = vxpose.xlu0.b32.cont [5/16] 0.0, 128
    %226 = vxpose.xlu0.b32.cont [6/16] 0.0, 128
    %227 = vxpose.xlu0.b32.cont [7/16] 0.0, 128
    %228 = vxpose.xlu0.b32.cont [8/16] 0.0, 128
    %229 = vxpose.xlu0.b32.cont [9/16] 0.0, 128
    %230 = vxpose.xlu0.b32.cont [10/16] 0.0, 128
    %231 = vxpose.xlu0.b32.cont [11/16] 0.0, 128
    %232 = vxpose.xlu0.b32.cont [12/16] 0.0, 128
    %233 = vxpose.xlu0.b32.cont [13/16] 0.0, 128
    %234 = vxpose.xlu0.b32.cont [14/16] 0.0, 128
    %235 = vxpose.xlu0.b32.cont [15/16] 0.0, 128
    %236 = vxpose.xlu0.b32.end [16/16] 0.0, 128
    %v237 = vpop.trf.xlu0
    %v238 = vpop.trf.xlu0
    %v239 = vpop.trf.xlu0
    %v240 = vpop.trf.xlu0
    %v241 = vpop.trf.xlu0
    %v242 = vpop.trf.xlu0
    %v243 = vpop.trf.xlu0
    %v244 = vpop.trf.xlu0
    %v245 = vpop.trf.xlu0
    %v246 = vpop.trf.xlu0
    %v247 = vpop.trf.xlu0
    %v248 = vpop.trf.xlu0
    %v249 = vpop.trf.xlu0
    %v250 = vpop.trf.xlu0
    %v251 = vpop.trf.xlu0
    %v252 = vpop.trf.xlu0
    %vm257 = vcmask 1041408
    %v258 = vrot.slane %v202, 6
    %v259 = vrot.slane %v203, 6
    %v260 = vsel %vm257, %v258, %v259
    %v261 = vrot.slane %v237, 6
    %v262 = vrot.slane %v238, 6
    %v263 = vsel %vm257, %v261, %v262
    %v270 = vsel %vm257, 0.0, %v258
    %v271 = vsel %vm257, 0.0, %v261
    %v272 = vsel %vm257, %v259, 0.0
    %v273 = vsel %vm257, %v262, 0.0
    %vm278 = vcmask 1046528
    %v279 = vrot.slane %v270, 1
    %v280 = vrot.slane %v260, 1
    %v281 = vsel %vm278, %v279, %v280
    %v282 = vrot.slane %v272, 1
    %v283 = vsel %vm278, %v280, %v282
    %v284 = vrot.slane %v271, 1
    %v285 = vrot.slane %v263, 1
    %v286 = vsel %vm278, %v284, %v285
    %v287 = vrot.slane %v273, 1
    %v288 = vsel %vm278, %v285, %v287
    %vm289 = vcmask 1045504
    %v290 = vrot.slane %v270, 2
    %v291 = vrot.slane %v260, 2
    %v292 = vsel %vm289, %v290, %v291
    %v293 = vrot.slane %v272, 2
    %v294 = vsel %vm289, %v291, %v293
    %v295 = vrot.slane %v271, 2
    %v296 = vrot.slane %v263, 2
    %v297 = vsel %vm289, %v295, %v296
    %v298 = vrot.slane %v273, 2
    %v299 = vsel %vm289, %v296, %v298
    %vm300 = vcmask 1044480
    %v301 = vrot.slane %v270, 3
    %v302 = vrot.slane %v260, 3
    %v303 = vsel %vm300, %v301, %v302
    %v304 = vrot.slane %v272, 3
    %v305 = vsel %vm300, %v302, %v304
    %v306 = vrot.slane %v271, 3
    %v307 = vrot.slane %v263, 3
    %v308 = vsel %vm300, %v306, %v307
    %v309 = vrot.slane %v273, 3
    %v310 = vsel %vm300, %v307, %v309
    %vm311 = vcmask 1043456
    %v312 = vrot.slane %v270, 4
    %v313 = vrot.slane %v260, 4
    %v314 = vsel %vm311, %v312, %v313
    %v315 = vrot.slane %v272, 4
    %v316 = vsel %vm311, %v313, %v315
    %v317 = vrot.slane %v271, 4
    %v318 = vrot.slane %v263, 4
    %v319 = vsel %vm311, %v317, %v318
    %v320 = vrot.slane %v273, 4
    %v321 = vsel %vm311, %v318, %v320
    %322 = vrot.lane.b32.xlu0 %v281, 16
    %v323 = vpop.permute.xlu0 %322
    %324 = vrot.lane.b32.xlu0 %v283, 16
    %v325 = vpop.permute.xlu0 %324
    %326 = vrot.lane.b32.xlu0 %v286, 16
    %v327 = vpop.permute.xlu0 %326
    %328 = vrot.lane.b32.xlu0 %v288, 16
    %v329 = vpop.permute.xlu0 %328
    %334 = vrot.lane.b32.xlu0 %v292, 32
    %v335 = vpop.permute.xlu0 %334
    %336 = vrot.lane.b32.xlu0 %v294, 32
    %v337 = vpop.permute.xlu0 %336
    %338 = vrot.lane.b32.xlu0 %v297, 32
    %v339 = vpop.permute.xlu0 %338
    %340 = vrot.lane.b32.xlu0 %v299, 32
    %v341 = vpop.permute.xlu0 %340
    %346 = vrot.lane.b32.xlu0 %v303, 48
    %v347 = vpop.permute.xlu0 %346
    %348 = vrot.lane.b32.xlu0 %v305, 48
    %v349 = vpop.permute.xlu0 %348
    %350 = vrot.lane.b32.xlu0 %v308, 48
    %v351 = vpop.permute.xlu0 %350
    %352 = vrot.lane.b32.xlu0 %v310, 48
    %v353 = vpop.permute.xlu0 %352
    %358 = vrot.lane.b32.xlu0 %v314, 64
    %v359 = vpop.permute.xlu0 %358
    %360 = vrot.lane.b32.xlu0 %v316, 64
    %v361 = vpop.permute.xlu0 %360
    %362 = vrot.lane.b32.xlu0 %v319, 64
    %v363 = vpop.permute.xlu0 %362
    %364 = vrot.lane.b32.xlu0 %v321, 64
    %v365 = vpop.permute.xlu0 %364
    %vm370 = vcmask 130048
    %v371 = vsel %vm370, %v270, %v323
    %v372 = vsel %vm370, %v260, %v325
    %v373 = vsel %vm370, %v271, %v327
    %v374 = vsel %vm370, %v263, %v329
    %vm375 = vcmask 261120
    %v376 = vsel %vm375, %v371, %v335
    %v377 = vsel %vm375, %v372, %v337
    %v378 = vsel %vm375, %v373, %v339
    %v379 = vsel %vm375, %v374, %v341
    %vm380 = vcmask 392192
    %v381 = vsel %vm380, %v376, %v347
    %v382 = vsel %vm380, %v377, %v349
    %v383 = vsel %vm380, %v378, %v351
    %v384 = vsel %vm380, %v379, %v353
    %vm385 = vcmask 523264
    %v386 = vsel %vm385, %v381, %v359
    %v387 = vsel %vm385, %v382, %v361
    %v388 = vsel %vm385, %v383, %v363
    %v389 = vsel %vm385, %v384, %v365
    %v390 = vpack.c.bf16 %v387, %v386
    %v391 = vpack.c.bf16 %v389, %v388
    %v392 = vld [vmem:[%s1] sm:$0xff]
    %v393 = vld [vmem:[%s1 + $0x8] sm:$0xff]
    %v394 = vld [vmem:[%s1 + $0x10] sm:$0xff]
    %v395 = vld [vmem:[%s1 + $0x18] sm:$0xff]
    %v396 = vld [vmem:[%s1 + $0x20] sm:$0xff]
    %v397 = vld [vmem:[%s1 + $0x28] sm:$0xff]
    %v398 = vld [vmem:[%s1 + $0x30] sm:$0xff]
    %v399 = vld [vmem:[%s1 + $0x38] sm:$0xff]
    %v400 = vld [vmem:[%s1 + $0x40] sm:$0xff]
    %v401 = vld [vmem:[%s1 + $0x48] sm:$0xff]
    %v402 = vld [vmem:[%s2] sm:$0x3]
    %v404 = vlaneseq
    %v405 = vshrl.u32 %v404, 7
    %v406 = vsub.s32 0, %v405
    %v407 = vrot.slane %v402, %v406
    %v408 = vlaneseq
    %v409 = vshrl.u32 %v408, 7
    %v410 = vsub.s32 1, %v409
    %v411 = vrot.slane %v402, %v410
    %v424 = vunpack.c.l.b16 %v392
    %v425 = vunpack.c.h.b16 %v392
    %v426 = vunpack.c.l.b16 %v393
    %v427 = vunpack.c.h.b16 %v393
    %v428 = vunpack.c.l.b16 %v394
    %v429 = vunpack.c.h.b16 %v394
    %v430 = vunpack.c.l.b16 %v395
    %v431 = vunpack.c.h.b16 %v395
    %v432 = vunpack.c.l.b16 %v396
    %v433 = vunpack.c.h.b16 %v396
    %v434 = vunpack.c.l.b16 %v397
    %v435 = vunpack.c.h.b16 %v397
    %v436 = vunpack.c.l.b16 %v398
    %v437 = vunpack.c.h.b16 %v398
    %v438 = vunpack.c.l.b16 %v399
    %v439 = vunpack.c.h.b16 %v399
    %v440 = vunpack.c.l.b16 %v400
    %v441 = vunpack.c.h.b16 %v400
    %v442 = vunpack.c.l.b16 %v401
    %v443 = vunpack.c.h.b16 %v401
    %v444 = vpack.c.b16 %v426, %v424
    %v445 = vpack.c.b16 %v427, %v425
    %v446 = vpack.c.b16 %v430, %v428
    %v447 = vpack.c.b16 %v431, %v429
    %v448 = vpack.c.b16 %v434, %v432
    %v449 = vpack.c.b16 %v435, %v433
    %v450 = vpack.c.b16 %v438, %v436
    %v451 = vpack.c.b16 %v439, %v437
    %v452 = vpack.c.b16 %v442, %v440
    %v453 = vpack.c.b16 %v443, %v441
    %vm464 = vcmask 654336
    %v466 = vsel %vm464, %v390, 0
    %v469 = vsel %vm464, %v391, 0
    %471 = vmatprep.subr.bf16.mxu0 0
    %472 = vmatpush1.bf16.msra.mxu0 0
    %473 = vmatprep.subr.bf16.mxu0 0
    %474 = vmatpush1.bf16.msra.mxu0 0
    %475 = vmatprep.subr.bf16.mxu0 0
    %476 = vmatpush1.bf16.msra.mxu0 0
    %477 = vmatprep.subr.bf16.mxu0 %v453
    %478 = vmatpush1.bf16.msra.mxu0 %v452
    %479 = vmatprep.subr.bf16.mxu0 %v451
    %480 = vmatpush1.bf16.msra.mxu0 %v450
    %481 = vmatprep.subr.bf16.mxu0 %v449
    %482 = vmatpush1.bf16.msra.mxu0 %v448
    %483 = vmatprep.subr.bf16.mxu0 %v447
    %484 = vmatpush1.bf16.msra.mxu0 %v446
    %485 = vmatprep.subr.bf16.mxu0 %v445
    %486 = vmatpush1.bf16.msra.mxu0 %v444
    %487 = vmatprep.subr.bf16.mxu0 0
    %488 = vmatpush2.bf16.msra.mxu0 0
    %489 = vmatprep.subr.bf16.mxu0 0
    %490 = vmatpush2.bf16.msra.mxu0 0
    %491 = vmatprep.subr.bf16.mxu0 0
    %492 = vmatpush2.bf16.msra.mxu0 0
    %493 = vmatprep.subr.bf16.mxu0 0
    %494 = vmatpush2.bf16.msra.mxu0 0
    %495 = vmatprep.subr.bf16.mxu0 0
    %496 = vmatpush2.bf16.msra.mxu0 0
    %497 = vmatprep.subr.bf16.mxu0 0
    %498 = vmatpush2.bf16.msra.mxu0 0
    %499 = vmatprep.subr.bf16.mxu0 0
    %500 = vmatpush2.bf16.msra.mxu0 0
    %501 = vmatprep.subr.bf16.mxu0 0
    %502 = vmatpush2.bf16.msra.mxu0 0
    %503 = vmatprep.mubr.bf16.mxu0 0
    %504 = vmatmul.mubr.bf16.gmra.mxu0 %v466
    %v505 = vpop.f32.mrf.mxu0
    %v506 = vadd.f32 %v407, %v505
    %v507 = vpop.f32.mrf.mxu0
    %v508 = vadd.f32 %v411, %v507
    %v509 = vpop.f32.mrf.mxu0
    %v510 = vadd.f32 %v407, %v509
    %v511 = vpop.f32.mrf.mxu0
    %v512 = vadd.f32 %v411, %v511
    %513 = vmatprep.mubr.bf16.mxu0 0
    %514 = vmatmul.mubr.bf16.gmra.mxu0 %v469
    %v515 = vpop.f32.mrf.mxu0
    %v516 = vadd.f32 %v407, %v515
    %v517 = vpop.f32.mrf.mxu0
    %v518 = vadd.f32 %v411, %v517
    %v519 = vpop.f32.mrf.mxu0
    %v520 = vadd.f32 %v407, %v519
    %v521 = vpop.f32.mrf.mxu0
    %v522 = vadd.f32 %v411, %v521
    %523 = vdwg.mxu0
    %v524 = vmax.f32 %v506, %v508
    %v525 = vmax.f32 %v510, %v512
    %v526 = vmax.f32 %v516, %v518
    %v527 = vmax.f32 %v520, %v522
    %532 = vrot.lane.b32.xlu0 %v524, 64
    %v533 = vpop.permute.xlu0 %532
    %534 = vrot.lane.b32.xlu0 %v525, 64
    %v535 = vpop.permute.xlu0 %534
    %536 = vrot.lane.b32.xlu0 %v526, 64
    %v537 = vpop.permute.xlu0 %536
    %538 = vrot.lane.b32.xlu0 %v527, 64
    %v539 = vpop.permute.xlu0 %538
    %v544 = vmax.f32 %v524, %v533
    %v545 = vmax.f32 %v525, %v535
    %v546 = vmax.f32 %v526, %v537
    %v547 = vmax.f32 %v527, %v539
    %v552 = vcombine.high %v544, %v544
    %v554 = vunpack.c.l.s4 1983009808
    %v555 = vunpack.c.0.s8 %v554
    %v556 = vlaneseq
    %v557 = vshrl.u32 %v556, 7
    %v558 = vsub.s32 %v555, %v557
    %v559 = vrot.slane %v544, %v558
    %v561 = vunpack.c.l.s4 1983009808
    %v562 = vunpack.c.0.s8 %v561
    %v563 = vlaneseq
    %v564 = vshrl.u32 %v563, 7
    %v565 = vsub.s32 %v562, %v564
    %v566 = vrot.slane %v552, %v565
    %v567 = vcombine.high %v559, %v559
    %v568 = vcombine.high %v566, %v566
    %v569 = vcombine.high %v545, %v545
    %v571 = vunpack.c.l.s4 1983009808
    %v572 = vunpack.c.0.s8 %v571
    %v573 = vlaneseq
    %v574 = vshrl.u32 %v573, 7
    %v575 = vsub.s32 %v572, %v574
    %v576 = vrot.slane %v545, %v575
    %v578 = vunpack.c.l.s4 1983009808
    %v579 = vunpack.c.0.s8 %v578
    %v580 = vlaneseq
    %v581 = vshrl.u32 %v580, 7
    %v582 = vsub.s32 %v579, %v581
    %v583 = vrot.slane %v569, %v582
    %v584 = vcombine.high %v576, %v576
    %v585 = vcombine.high %v583, %v583
    %v586 = vcombine.high %v546, %v546
    %v588 = vunpack.c.l.s4 1983009808
    %v589 = vunpack.c.0.s8 %v588
    %v590 = vlaneseq
    %v591 = vshrl.u32 %v590, 7
    %v592 = vsub.s32 %v589, %v591
    %v593 = vrot.slane %v546, %v592
    %v595 = vunpack.c.l.s4 1983009808
    %v596 = vunpack.c.0.s8 %v595
    %v597 = vlaneseq
    %v598 = vshrl.u32 %v597, 7
    %v599 = vsub.s32 %v596, %v598
    %v600 = vrot.slane %v586, %v599
    %v601 = vcombine.high %v593, %v593
    %v602 = vcombine.high %v600, %v600
    %v603 = vcombine.high %v547, %v547
    %v605 = vunpack.c.l.s4 1983009808
    %v606 = vunpack.c.0.s8 %v605
    %v607 = vlaneseq
    %v608 = vshrl.u32 %v607, 7
    %v609 = vsub.s32 %v606, %v608
    %v610 = vrot.slane %v547, %v609
    %v612 = vunpack.c.l.s4 1983009808
    %v613 = vunpack.c.0.s8 %v612
    %v614 = vlaneseq
    %v615 = vshrl.u32 %v614, 7
    %v616 = vsub.s32 %v613, %v615
    %v617 = vrot.slane %v603, %v616
    %v618 = vcombine.high %v610, %v610
    %v619 = vcombine.high %v617, %v617
    %v636 = vrot.slane %v559, 7
    %v637 = vrot.slane %v636, 2
    %v638 = vrot.slane %v567, 7
    %v639 = vrot.slane %v638, 2
    %v640 = vrot.slane %v566, 7
    %v641 = vrot.slane %v640, 2
    %v642 = vrot.slane %v568, 7
    %v643 = vrot.slane %v642, 2
    %v644 = vrot.slane %v576, 7
    %v645 = vrot.slane %v644, 2
    %v646 = vrot.slane %v584, 7
    %v647 = vrot.slane %v646, 2
    %v648 = vrot.slane %v583, 7
    %v649 = vrot.slane %v648, 2
    %v650 = vrot.slane %v585, 7
    %v651 = vrot.slane %v650, 2
    %v652 = vrot.slane %v593, 7
    %v653 = vrot.slane %v652, 2
    %v654 = vrot.slane %v601, 7
    %v655 = vrot.slane %v654, 2
    %v656 = vrot.slane %v600, 7
    %v657 = vrot.slane %v656, 2
    %v658 = vrot.slane %v602, 7
    %v659 = vrot.slane %v658, 2
    %v660 = vrot.slane %v610, 7
    %v661 = vrot.slane %v660, 2
    %v662 = vrot.slane %v618, 7
    %v663 = vrot.slane %v662, 2
    %v664 = vrot.slane %v617, 7
    %v665 = vrot.slane %v664, 2
    %v666 = vrot.slane %v619, 7
    %v667 = vrot.slane %v666, 2
    %v684 = vmax.f32 %v559, %v637
    %v685 = vmax.f32 %v567, %v639
    %v686 = vmax.f32 %v566, %v641
    %v687 = vmax.f32 %v568, %v643
    %v688 = vmax.f32 %v576, %v645
    %v689 = vmax.f32 %v584, %v647
    %v690 = vmax.f32 %v583, %v649
    %v691 = vmax.f32 %v585, %v651
    %v692 = vmax.f32 %v593, %v653
    %v693 = vmax.f32 %v601, %v655
    %v694 = vmax.f32 %v600, %v657
    %v695 = vmax.f32 %v602, %v659
    %v696 = vmax.f32 %v610, %v661
    %v697 = vmax.f32 %v618, %v663
    %v698 = vmax.f32 %v617, %v665
    %v699 = vmax.f32 %v619, %v667
    %v700 = vpack.c.bf16 %v684, %v684
    %v701 = vpack.c.bf16 %v685, %v685
    %v702 = vpack.c.bf16 %v686, %v686
    %v703 = vpack.c.bf16 %v687, %v687
    %v704 = vpack.c.bf16 %v688, %v688
    %v705 = vpack.c.bf16 %v689, %v689
    %v706 = vpack.c.bf16 %v690, %v690
    %v707 = vpack.c.bf16 %v691, %v691
    %v708 = vpack.c.bf16 %v692, %v692
    %v709 = vpack.c.bf16 %v693, %v693
    %v710 = vpack.c.bf16 %v694, %v694
    %v711 = vpack.c.bf16 %v695, %v695
    %v712 = vpack.c.bf16 %v696, %v696
    %v713 = vpack.c.bf16 %v697, %v697
    %v714 = vpack.c.bf16 %v698, %v698
    %v715 = vpack.c.bf16 %v699, %v699
    %v716 = vld [vmem:[#allocation5] sm:$0xf]
    %v717 = vld [vmem:[#allocation5 + $0x4] sm:$0xf]
    %v718 = vld [vmem:[#allocation5 + $0x8] sm:$0xf]
    %v719 = vld [vmem:[#allocation5 + $0xc] sm:$0xf]
    %v720 = vld [vmem:[#allocation5 + $0x10] sm:$0xf]
    %v721 = vld [vmem:[#allocation5 + $0x14] sm:$0xf]
    %v722 = vld [vmem:[#allocation5 + $0x18] sm:$0xf]
    %v723 = vld [vmem:[#allocation5 + $0x1c] sm:$0xf]
    %v724 = vld [vmem:[#allocation7] sm:$0x1]
    %v726 = vlaneseq
    %v727 = vshrl.u32 %v726, 7
    %v728 = vsub.s32 0, %v727
    %v729 = vrot.slane %v724, %v728
    %v747 = vunpack.c.l.b16 %v700
    %v748 = vunpack.c.l.b16 %v701
    %v749 = vunpack.c.l.b16 %v702
    %v750 = vunpack.c.l.b16 %v703
    %v751 = vunpack.c.l.b16 %v704
    %v752 = vunpack.c.l.b16 %v705
    %v753 = vunpack.c.l.b16 %v706
    %v754 = vunpack.c.l.b16 %v707
    %v755 = vunpack.c.l.b16 %v708
    %v756 = vunpack.c.l.b16 %v709
    %v757 = vunpack.c.l.b16 %v710
    %v758 = vunpack.c.l.b16 %v711
    %v759 = vunpack.c.l.b16 %v712
    %v760 = vunpack.c.l.b16 %v713
    %v761 = vunpack.c.l.b16 %v714
    %v762 = vunpack.c.l.b16 %v715
    %v763 = vrot.slane %v748, 7
    %vm764 = vcmask 1041409
    %v765 = vsel %vm764, %v763, %v747
    %v766 = vrot.slane %v749, 6
    %vm767 = vcmask 1042434
    %v768 = vsel %vm767, %v766, %v765
    %v769 = vrot.slane %v750, 5
    %vm770 = vcmask 1043459
    %v771 = vsel %vm770, %v769, %v768
    %v772 = vrot.slane %v751, 4
    %vm773 = vcmask 1044484
    %v774 = vsel %vm773, %v772, %v771
    %v775 = vrot.slane %v752, 3
    %vm776 = vcmask 1045509
    %v777 = vsel %vm776, %v775, %v774
    %v778 = vrot.slane %v753, 2
    %vm779 = vcmask 1046534
    %v780 = vsel %vm779, %v778, %v777
    %v781 = vrot.slane %v754, 1
    %vm782 = vcmask 1047559
    %v783 = vsel %vm782, %v781, %v780
    %v784 = vrot.slane %v756, 7
    %v785 = vsel %vm764, %v784, %v755
    %v786 = vrot.slane %v757, 6
    %v787 = vsel %vm767, %v786, %v785
    %v788 = vrot.slane %v758, 5
    %v789 = vsel %vm770, %v788, %v787
    %v790 = vrot.slane %v759, 4
    %v791 = vsel %vm773, %v790, %v789
    %v792 = vrot.slane %v760, 3
    %v793 = vsel %vm776, %v792, %v791
    %v794 = vrot.slane %v761, 2
    %v795 = vsel %vm779, %v794, %v793
    %v796 = vrot.slane %v762, 1
    %v797 = vsel %vm782, %v796, %v795
    %v798 = vpack.c.b16 %v797, %v783
    %v807 = vunpack.c.l.b16 %v716
    %v808 = vunpack.c.l.b16 %v717
    %v809 = vunpack.c.l.b16 %v718
    %v810 = vunpack.c.l.b16 %v719
    %v811 = vunpack.c.l.b16 %v720
    %v812 = vunpack.c.l.b16 %v721
    %v813 = vunpack.c.l.b16 %v722
    %v814 = vunpack.c.l.b16 %v723
    %v815 = vpack.c.b16 %v808, %v807
    %v816 = vpack.c.b16 %v810, %v809
    %v817 = vpack.c.b16 %v812, %v811
    %v818 = vpack.c.b16 %v814, %v813
    %v824 = vsel %vm385, %v798, 0
    %826 = vmatprep.subr.bf16.mxu0 0
    %827 = vmatpush1.bf16.msra.mxu0 0
    %828 = vmatprep.subr.bf16.mxu0 0
    %829 = vmatpush1.bf16.msra.mxu0 0
    %830 = vmatprep.subr.bf16.mxu0 0
    %831 = vmatpush1.bf16.msra.mxu0 0
    %832 = vmatprep.subr.bf16.mxu0 0
    %833 = vmatpush1.bf16.msra.mxu0 0
    %834 = vmatprep.subr.bf16.mxu0 0
    %835 = vmatpush1.bf16.msra.mxu0 %v818
    %836 = vmatprep.subr.bf16.mxu0 0
    %837 = vmatpush1.bf16.msra.mxu0 %v817
    %838 = vmatprep.subr.bf16.mxu0 0
    %839 = vmatpush1.bf16.msra.mxu0 %v816
    %840 = vmatprep.subr.bf16.mxu0 0
    %841 = vmatpush1.bf16.msra.mxu0 %v815
    %842 = vmatprep.subr.bf16.mxu0 0
    %843 = vmatpush2.bf16.msra.mxu0 0
    %844 = vmatprep.subr.bf16.mxu0 0
    %845 = vmatpush2.bf16.msra.mxu0 0
    %846 = vmatprep.subr.bf16.mxu0 0
    %847 = vmatpush2.bf16.msra.mxu0 0
    %848 = vmatprep.subr.bf16.mxu0 0
    %849 = vmatpush2.bf16.msra.mxu0 0
    %850 = vmatprep.subr.bf16.mxu0 0
    %851 = vmatpush2.bf16.msra.mxu0 0
    %852 = vmatprep.subr.bf16.mxu0 0
    %853 = vmatpush2.bf16.msra.mxu0 0
    %854 = vmatprep.subr.bf16.mxu0 0
    %855 = vmatpush2.bf16.msra.mxu0 0
    %856 = vmatprep.subr.bf16.mxu0 0
    %857 = vmatpush2.bf16.msra.mxu0 0
    %858 = vmatprep.mubr.bf16.mxu0 0
    %859 = vmatmul.mubr.bf16.gmra.mxu0 %v824
    %v860 = vpop.f32.mrf.mxu0
    %v861 = vadd.f32 %v729, %v860
    %v862 = vpop.f32.mrf.mxu0
    %v863 = vpop.f32.mrf.mxu0
    %v864 = vadd.f32 %v729, %v863
    %v865 = vpop.f32.mrf.mxu0
    %866 = vdwg.mxu0
    %869 = vrot.lane.b32.xlu0 %v861, 64
    %v870 = vpop.permute.xlu0 %869
    %871 = vrot.lane.b32.xlu0 %v864, 64
    %v872 = vpop.permute.xlu0 %871
    %v875 = vmax.f32 %v861, %v870
    %v876 = vmax.f32 %v864, %v872
    %v879 = vrot.slane %v875, 7
    %v880 = vrot.slane %v876, 7
    %vm883 = vcmask 1040384
    %v884 = vsel %vm883, 0.0, %v879
    %v885 = vsel %vm883, 0.0, %v880
    %v886 = vsel %vm883, %v879, 0.0
    %v887 = vsel %vm883, %v880, 0.0
    %v892 = vrot.slane %v884, 1
    %v893 = vrot.slane %v886, 1
    %v894 = vsel %vm278, %v892, %v893
    %v895 = vrot.slane %v885, 1
    %v896 = vrot.slane %v887, 1
    %v897 = vsel %vm278, %v895, %v896
    %v898 = vrot.slane %v884, 2
    %v899 = vrot.slane %v886, 2
    %v900 = vsel %vm289, %v898, %v899
    %v901 = vrot.slane %v885, 2
    %v902 = vrot.slane %v887, 2
    %v903 = vsel %vm289, %v901, %v902
    %906 = vrot.lane.b32.xlu0 %v894, 64
    %v907 = vpop.permute.xlu0 %906
    %908 = vrot.lane.b32.xlu0 %v897, 64
    %v909 = vpop.permute.xlu0 %908
    %v912 = vsel %vm385, %v884, %v907
    %v913 = vsel %vm385, %v885, %v909
    %v914 = vpack.c.bf16 %v913, %v912
    %v915 = vpack.c.bf16 %v903, %v900
    %v916 = vld [vmem:[%s5] sm:$0xff]
    %v917 = vld [vmem:[%s5 + $0x8] sm:$0xff]
    %v918 = vld [vmem:[%s5 + $0x10] sm:$0xff]
    %v919 = vld [vmem:[%s5 + $0x18] sm:$0xff]
    %v920 = vld [vmem:[%s5 + $0x20] sm:$0xff]
    %v921 = vld [vmem:[%s5 + $0x28] sm:$0xff]
    %v922 = vld [vmem:[%s5 + $0x30] sm:$0xff]
    %v923 = vld [vmem:[%s5 + $0x38] sm:$0xff]
    %v924 = vld [vmem:[%s5 + $0x40] sm:$0xff]
    %v925 = vld [vmem:[%s5 + $0x48] sm:$0xff]
    %v926 = vld [vmem:[%s5 + $0x50] sm:$0xff]
    %v927 = vld [vmem:[%s5 + $0x58] sm:$0xff]
    %v928 = vld [vmem:[%s5 + $0x60] sm:$0xff]
    %v929 = vld [vmem:[%s5 + $0x68] sm:$0xff]
    %v930 = vld [vmem:[%s5 + $0x70] sm:$0xff]
    %v931 = vld [vmem:[%s5 + $0x78] sm:$0xff]
    %v932 = vld [vmem:[%s5 + $0x80] sm:$0xff]
    %v933 = vld [vmem:[%s5 + $0x88] sm:$0xff]
    %v934 = vld [vmem:[%s5 + $0x90] sm:$0xff]
    %v935 = vld [vmem:[%s5 + $0x98] sm:$0xff]
    %v936 = vld [vmem:[%s5 + $0xa0] sm:$0xff]
    %v937 = vld [vmem:[%s5 + $0xa8] sm:$0xff]
    %v938 = vld [vmem:[%s5 + $0xb0] sm:$0xff]
    %v939 = vld [vmem:[%s5 + $0xb8] sm:$0xff]
    %v940 = vld [vmem:[%s6] sm:$0x3]
    %v942 = vlaneseq
    %v943 = vshrl.u32 %v942, 7
    %v944 = vsub.s32 0, %v943
    %v945 = vrot.slane %v940, %v944
    %v946 = vlaneseq
    %v947 = vshrl.u32 %v946, 7
    %v948 = vsub.s32 1, %v947
    %v949 = vrot.slane %v940, %v948
    %v976 = vunpack.c.l.b16 %v916
    %v977 = vunpack.c.h.b16 %v916
    %v978 = vunpack.c.l.b16 %v917
    %v979 = vunpack.c.h.b16 %v917
    %v980 = vunpack.c.l.b16 %v918
    %v981 = vunpack.c.h.b16 %v918
    %v982 = vunpack.c.l.b16 %v919
    %v983 = vunpack.c.h.b16 %v919
    %v984 = vunpack.c.l.b16 %v920
    %v985 = vunpack.c.h.b16 %v920
    %v986 = vunpack.c.l.b16 %v921
    %v987 = vunpack.c.h.b16 %v921
    %v988 = vunpack.c.l.b16 %v922
    %v989 = vunpack.c.h.b16 %v922
    %v990 = vunpack.c.l.b16 %v923
    %v991 = vunpack.c.h.b16 %v923
    %v992 = vunpack.c.l.b16 %v924
    %v993 = vunpack.c.h.b16 %v924
    %v994 = vunpack.c.l.b16 %v925
    %v995 = vunpack.c.h.b16 %v925
    %v996 = vunpack.c.l.b16 %v926
    %v997 = vunpack.c.h.b16 %v926
    %v998 = vunpack.c.l.b16 %v927
    %v999 = vunpack.c.h.b16 %v927
    %v1000 = vunpack.c.l.b16 %v928
    %v1001 = vunpack.c.h.b16 %v928
    %v1002 = vunpack.c.l.b16 %v929
    %v1003 = vunpack.c.h.b16 %v929
    %v1004 = vunpack.c.l.b16 %v930
    %v1005 = vunpack.c.h.b16 %v930
    %v1006 = vunpack.c.l.b16 %v931
    %v1007 = vunpack.c.h.b16 %v931
    %v1008 = vunpack.c.l.b16 %v932
    %v1009 = vunpack.c.h.b16 %v932
    %v1010 = vunpack.c.l.b16 %v933
    %v1011 = vunpack.c.h.b16 %v933
    %v1012 = vunpack.c.l.b16 %v934
    %v1013 = vunpack.c.h.b16 %v934
    %v1014 = vunpack.c.l.b16 %v935
    %v1015 = vunpack.c.h.b16 %v935
    %v1016 = vunpack.c.l.b16 %v936
    %v1017 = vunpack.c.h.b16 %v936
    %v1018 = vunpack.c.l.b16 %v937
    %v1019 = vunpack.c.h.b16 %v937
    %v1020 = vunpack.c.l.b16 %v938
    %v1021 = vunpack.c.h.b16 %v938
    %v1022 = vunpack.c.l.b16 %v939
    %v1023 = vunpack.c.h.b16 %v939
    %v1024 = vpack.c.b16 %v978, %v976
    %v1025 = vpack.c.b16 %v979, %v977
    %v1026 = vpack.c.b16 %v982, %v980
    %v1027 = vpack.c.b16 %v983, %v981
    %v1028 = vpack.c.b16 %v986, %v984
    %v1029 = vpack.c.b16 %v987, %v985
    %v1030 = vpack.c.b16 %v990, %v988
    %v1031 = vpack.c.b16 %v991, %v989
    %v1032 = vpack.c.b16 %v994, %v992
    %v1033 = vpack.c.b16 %v995, %v993
    %v1034 = vpack.c.b16 %v998, %v996
    %v1035 = vpack.c.b16 %v999, %v997
    %v1036 = vpack.c.b16 %v1002, %v1000
    %v1037 = vpack.c.b16 %v1003, %v1001
    %v1038 = vpack.c.b16 %v1006, %v1004
    %v1039 = vpack.c.b16 %v1007, %v1005
    %v1040 = vpack.c.b16 %v1010, %v1008
    %v1041 = vpack.c.b16 %v1011, %v1009
    %v1042 = vpack.c.b16 %v1014, %v1012
    %v1043 = vpack.c.b16 %v1015, %v1013
    %v1044 = vpack.c.b16 %v1018, %v1016
    %v1045 = vpack.c.b16 %v1019, %v1017
    %v1046 = vpack.c.b16 %v1022, %v1020
    %v1047 = vpack.c.b16 %v1023, %v1021
    %v1073 = vsel %vm385, %v915, 0
    %1075 = vmatprep.subr.bf16.mxu0 %v1039
    %1076 = vmatpush1.bf16.msra.mxu0 %v1038
    %1077 = vmatprep.subr.bf16.mxu0 %v1037
    %1078 = vmatpush1.bf16.msra.mxu0 %v1036
    %1079 = vmatprep.subr.bf16.mxu0 %v1035
    %1080 = vmatpush1.bf16.msra.mxu0 %v1034
    %1081 = vmatprep.subr.bf16.mxu0 %v1033
    %1082 = vmatpush1.bf16.msra.mxu0 %v1032
    %1083 = vmatprep.subr.bf16.mxu0 %v1031
    %1084 = vmatpush1.bf16.msra.mxu0 %v1030
    %1085 = vmatprep.subr.bf16.mxu0 %v1029
    %1086 = vmatpush1.bf16.msra.mxu0 %v1028
    %1087 = vmatprep.subr.bf16.mxu0 %v1027
    %1088 = vmatpush1.bf16.msra.mxu0 %v1026
    %1089 = vmatprep.subr.bf16.mxu0 %v1025
    %1090 = vmatpush1.bf16.msra.mxu0 %v1024
    %1091 = vmatprep.subr.bf16.mxu0 0
    %1092 = vmatpush2.bf16.msra.mxu0 0
    %1093 = vmatprep.subr.bf16.mxu0 0
    %1094 = vmatpush2.bf16.msra.mxu0 0
    %1095 = vmatprep.subr.bf16.mxu0 0
    %1096 = vmatpush2.bf16.msra.mxu0 0
    %1097 = vmatprep.subr.bf16.mxu0 0
    %1098 = vmatpush2.bf16.msra.mxu0 0
    %1099 = vmatprep.subr.bf16.mxu0 %v1047
    %1100 = vmatpush2.bf16.msra.mxu0 %v1046
    %1101 = vmatprep.subr.bf16.mxu0 %v1045
    %1102 = vmatpush2.bf16.msra.mxu0 %v1044
    %1103 = vmatprep.subr.bf16.mxu0 %v1043
    %1104 = vmatpush2.bf16.msra.mxu0 %v1042
    %1105 = vmatprep.subr.bf16.mxu0 %v1041
    %1106 = vmatpush2.bf16.msra.mxu0 %v1040
    %1107 = vmatprep.mubr.bf16.mxu0 %v1073
    %1108 = vmatmul.mubr.bf16.gmra.mxu0 %v914
    %v1109 = vpop.f32.mrf.mxu0
    %v1110 = vadd.f32 %v945, %v1109
    %v1111 = vpop.f32.mrf.mxu0
    %v1112 = vadd.f32 %v949, %v1111
    %v1113 = vpop.f32.mrf.mxu0
    %v1114 = vadd.f32 %v945, %v1113
    %v1115 = vpop.f32.mrf.mxu0
    %v1116 = vadd.f32 %v949, %v1115
    %1117 = vdwg.mxu0
    %v1118 = vmax.f32 %v1110, %v1112
    %v1119 = vmax.f32 %v1114, %v1116
    %v1120 = vlaneseq
    %v1121 = vand.u32 %v1120, 127
    %v1122 = vadd.s32 %v1121, 128
    %vm1123 = vcmp.lt.s32.totalorder %v1121, 0
    %v1124 = vsub.s32 0, %v1121
    %v1125 = vsel %vm1123, %v1124, %v1121
    %v1126 = vshrl.u32 %v1125, 6
    %v1127 = vand.u32 %v1125, 63
    %v1128 = vsub.s32 0, %v1127
    %v1129 = vsel %vm1123, %v1128, %v1127
    %vm1130 = vcmp.lt.s32.totalorder %v1122, 0
    %v1131 = vsub.s32 0, %v1122
    %v1132 = vsel %vm1130, %v1131, %v1122
    %v1133 = vshrl.u32 %v1132, 6
    %v1134 = vand.u32 %v1132, 63
    %v1135 = vsub.s32 0, %v1134
    %v1136 = vsel %vm1130, %v1135, %v1134
    %vm1137 = vcmp.ne.s32.totalorder %v1129, 0
    %vm1138 = vcmp.ne.s32.totalorder %v1136, 0
    %vm1139 = vcmp.lt.s32.totalorder %v1129, 0
    %vm1140 = vcmp.lt.s32.totalorder %v1136, 0
    %vm1141 = vmand %vm1139, %vm1137
    %vm1142 = vmand %vm1140, %vm1138
    %v1143 = vadd.s32 %v1129, 64
    %v1144 = vadd.s32 %v1136, 64
    %v1145 = vsel %vm1141, %v1143, %v1129
    %v1146 = vsel %vm1142, %v1144, %v1136
    %vm1147 = vcmp.lt.s32.totalorder %v1145, 32
    %vm1148 = vcmp.lt.s32.totalorder %v1146, 32
    %vm1149 = vcmp.lt.s32.totalorder %v1121, 32
    %v1150 = vpack.c.bf16 %v1119, %v1118
    %v1151 = vld [vmem:[%s7] sm:$0xff]
    %v1152 = vld [vmem:[%s7 + $0x8] sm:$0xff]
    %v1153 = vld [vmem:[%s7 + $0x10] sm:$0xff]
    %v1154 = vld [vmem:[%s7 + $0x18] sm:$0xff]
    %v1155 = vld [vmem:[%s7 + $0x20] sm:$0xff]
    %v1156 = vld [vmem:[%s7 + $0x28] sm:$0xff]
    %v1157 = vld [vmem:[%s7 + $0x30] sm:$0xff]
    %v1158 = vld [vmem:[%s7 + $0x38] sm:$0xff]
    %v1159 = vld [vmem:[%s7 + $0x40] sm:$0xff]
    %v1160 = vld [vmem:[%s7 + $0x48] sm:$0xff]
    %v1161 = vld [vmem:[%s7 + $0x50] sm:$0xff]
    %v1162 = vld [vmem:[%s7 + $0x58] sm:$0xff]
    %v1163 = vld [vmem:[%s7 + $0x60] sm:$0xff]
    %v1164 = vld [vmem:[%s7 + $0x68] sm:$0xff]
    %v1165 = vld [vmem:[%s7 + $0x70] sm:$0xff]
    %v1166 = vld [vmem:[%s7 + $0x78] sm:$0xff]
    %v1167 = vld [vmem:[%s8] sm:$0x3]
    %v1169 = vlaneseq
    %v1170 = vshrl.u32 %v1169, 7
    %v1171 = vsub.s32 0, %v1170
    %v1172 = vrot.slane %v1167, %v1171
    %v1173 = vlaneseq
    %v1174 = vshrl.u32 %v1173, 7
    %v1175 = vsub.s32 1, %v1174
    %v1176 = vrot.slane %v1167, %v1175
    %v1195 = vunpack.c.l.b16 %v1151
    %v1196 = vunpack.c.h.b16 %v1151
    %v1197 = vunpack.c.l.b16 %v1152
    %v1198 = vunpack.c.h.b16 %v1152
    %v1199 = vunpack.c.l.b16 %v1153
    %v1200 = vunpack.c.h.b16 %v1153
    %v1201 = vunpack.c.l.b16 %v1154
    %v1202 = vunpack.c.h.b16 %v1154
    %v1203 = vunpack.c.l.b16 %v1155
    %v1204 = vunpack.c.h.b16 %v1155
    %v1205 = vunpack.c.l.b16 %v1156
    %v1206 = vunpack.c.h.b16 %v1156
    %v1207 = vunpack.c.l.b16 %v1157
    %v1208 = vunpack.c.h.b16 %v1157
    %v1209 = vunpack.c.l.b16 %v1158
    %v1210 = vunpack.c.h.b16 %v1158
    %v1211 = vunpack.c.l.b16 %v1159
    %v1212 = vunpack.c.h.b16 %v1159
    %v1213 = vunpack.c.l.b16 %v1160
    %v1214 = vunpack.c.h.b16 %v1160
    %v1215 = vunpack.c.l.b16 %v1161
    %v1216 = vunpack.c.h.b16 %v1161
    %v1217 = vunpack.c.l.b16 %v1162
    %v1218 = vunpack.c.h.b16 %v1162
    %v1219 = vunpack.c.l.b16 %v1163
    %v1220 = vunpack.c.h.b16 %v1163
    %v1221 = vunpack.c.l.b16 %v1164
    %v1222 = vunpack.c.h.b16 %v1164
    %v1223 = vunpack.c.l.b16 %v1165
    %v1224 = vunpack.c.h.b16 %v1165
    %v1225 = vunpack.c.l.b16 %v1166
    %v1226 = vunpack.c.h.b16 %v1166
    %v1227 = vpack.c.b16 %v1197, %v1195
    %v1228 = vpack.c.b16 %v1198, %v1196
    %v1229 = vpack.c.b16 %v1201, %v1199
    %v1230 = vpack.c.b16 %v1202, %v1200
    %v1231 = vpack.c.b16 %v1205, %v1203
    %v1232 = vpack.c.b16 %v1206, %v1204
    %v1233 = vpack.c.b16 %v1209, %v1207
    %v1234 = vpack.c.b16 %v1210, %v1208
    %v1235 = vpack.c.b16 %v1213, %v1211
    %v1236 = vpack.c.b16 %v1214, %v1212
    %v1237 = vpack.c.b16 %v1217, %v1215
    %v1238 = vpack.c.b16 %v1218, %v1216
    %v1239 = vpack.c.b16 %v1221, %v1219
    %v1240 = vpack.c.b16 %v1222, %v1220
    %v1241 = vpack.c.b16 %v1225, %v1223
    %v1242 = vpack.c.b16 %v1226, %v1224
    %1259 = vmatprep.subr.bf16.mxu0 %v1242
    %1260 = vmatpush1.bf16.msra.mxu0 %v1241
    %1261 = vmatprep.subr.bf16.mxu0 %v1240
    %1262 = vmatpush1.bf16.msra.mxu0 %v1239
    %1263 = vmatprep.subr.bf16.mxu0 %v1238
    %1264 = vmatpush1.bf16.msra.mxu0 %v1237
    %1265 = vmatprep.subr.bf16.mxu0 %v1236
    %1266 = vmatpush1.bf16.msra.mxu0 %v1235
    %1267 = vmatprep.subr.bf16.mxu0 %v1234
    %1268 = vmatpush1.bf16.msra.mxu0 %v1233
    %1269 = vmatprep.subr.bf16.mxu0 %v1232
    %1270 = vmatpush1.bf16.msra.mxu0 %v1231
    %1271 = vmatprep.subr.bf16.mxu0 %v1230
    %1272 = vmatpush1.bf16.msra.mxu0 %v1229
    %1273 = vmatprep.subr.bf16.mxu0 %v1228
    %1274 = vmatpush1.bf16.msra.mxu0 %v1227
    %1275 = vmatprep.subr.bf16.mxu0 0
    %1276 = vmatpush2.bf16.msra.mxu0 0
    %1277 = vmatprep.subr.bf16.mxu0 0
    %1278 = vmatpush2.bf16.msra.mxu0 0
    %1279 = vmatprep.subr.bf16.mxu0 0
    %1280 = vmatpush2.bf16.msra.mxu0 0
    %1281 = vmatprep.subr.bf16.mxu0 0
    %1282 = vmatpush2.bf16.msra.mxu0 0
    %1283 = vmatprep.subr.bf16.mxu0 0
    %1284 = vmatpush2.bf16.msra.mxu0 0
    %1285 = vmatprep.subr.bf16.mxu0 0
    %1286 = vmatpush2.bf16.msra.mxu0 0
    %1287 = vmatprep.subr.bf16.mxu0 0
    %1288 = vmatpush2.bf16.msra.mxu0 0
    %1289 = vmatprep.subr.bf16.mxu0 0
    %1290 = vmatpush2.bf16.msra.mxu0 0
    %1291 = vmatprep.mubr.bf16.mxu0 0
    %1292 = vmatmul.mubr.bf16.gmra.mxu0 %v1150
    %v1293 = vpop.f32.mrf.mxu0
    %v1294 = vadd.f32 %v1172, %v1293
    %v1295 = vpop.f32.mrf.mxu0
    %v1296 = vadd.f32 %v1176, %v1295
    %v1297 = vpop.f32.mrf.mxu0
    %v1298 = vadd.f32 %v1172, %v1297
    %v1299 = vpop.f32.mrf.mxu0
    %v1300 = vadd.f32 %v1176, %v1299
    %1301 = vdwg.mxu0
    %v1302 = vld [vmem:[#allocation8] sm:$0xff]
    %v1303 = vld [vmem:[#allocation8 + $0x8] sm:$0xff]
    %v1304 = vld [vmem:[#allocation8 + $0x10] sm:$0xff]
    %v1305 = vld [vmem:[#allocation8 + $0x18] sm:$0xff]
    %v1306 = vld [vmem:[#allocation8 + $0x20] sm:$0xff]
    %v1307 = vld [vmem:[#allocation8 + $0x28] sm:$0xff]
    %v1308 = vld [vmem:[#allocation8 + $0x30] sm:$0xff]
    %v1309 = vld [vmem:[#allocation8 + $0x38] sm:$0xff]
    %v1310 = vld [vmem:[#allocation10] sm:$0x3]
    %v1315 = vrot.slane %v1298, 7
    %v1316 = vsel %vm764, %v1315, %v1294
    %v1317 = vrot.slane %v1300, 7
    %v1318 = vsel %vm764, %v1317, %v1296
    %v1321 = vrot.slane %v1294, 7
    %v1322 = vrot.slane %v1298, 6
    %v1323 = vsel %vm764, %v1322, %v1321
    %v1324 = vrot.slane %v1296, 7
    %v1325 = vrot.slane %v1300, 6
    %v1326 = vsel %vm764, %v1325, %v1324
    %v1329 = vsel %vm1147, %v1316, %v1323
    %v1330 = vsel %vm1148, %v1318, %v1326
    %v1332 = vlaneseq
    %v1333 = vshrl.u32 %v1332, 7
    %v1334 = vsub.s32 0, %v1333
    %v1335 = vrot.slane %v1310, %v1334
    %v1336 = vlaneseq
    %v1337 = vshrl.u32 %v1336, 7
    %v1338 = vsub.s32 1, %v1337
    %v1339 = vrot.slane %v1310, %v1338
    %v1350 = vunpack.c.l.b16 %v1302
    %v1351 = vunpack.c.h.b16 %v1302
    %v1352 = vunpack.c.l.b16 %v1303
    %v1353 = vunpack.c.h.b16 %v1303
    %v1354 = vunpack.c.l.b16 %v1304
    %v1355 = vunpack.c.h.b16 %v1304
    %v1356 = vunpack.c.l.b16 %v1305
    %v1357 = vunpack.c.h.b16 %v1305
    %v1358 = vunpack.c.l.b16 %v1306
    %v1359 = vunpack.c.h.b16 %v1306
    %v1360 = vunpack.c.l.b16 %v1307
    %v1361 = vunpack.c.h.b16 %v1307
    %v1362 = vunpack.c.l.b16 %v1308
    %v1363 = vunpack.c.h.b16 %v1308
    %v1364 = vunpack.c.l.b16 %v1309
    %v1365 = vunpack.c.h.b16 %v1309
    %v1366 = vpack.c.b16 %v1352, %v1350
    %v1367 = vpack.c.b16 %v1353, %v1351
    %v1368 = vpack.c.b16 %v1356, %v1354
    %v1369 = vpack.c.b16 %v1357, %v1355
    %v1370 = vpack.c.b16 %v1360, %v1358
    %v1371 = vpack.c.b16 %v1361, %v1359
    %v1372 = vpack.c.b16 %v1364, %v1362
    %v1373 = vpack.c.b16 %v1365, %v1363
    %v1383 = vsel %vm385, 0, 0
    %1385 = vmatprep.subr.bf16.mxu0 0
    %1386 = vmatpush1.bf16.msra.mxu0 0
    %1387 = vmatprep.subr.bf16.mxu0 0
    %1388 = vmatpush1.bf16.msra.mxu0 0
    %1389 = vmatprep.subr.bf16.mxu0 0
    %1390 = vmatpush1.bf16.msra.mxu0 0
    %1391 = vmatprep.subr.bf16.mxu0 0
    %1392 = vmatpush1.bf16.msra.mxu0 0
    %1393 = vmatprep.subr.bf16.mxu0 %v1373
    %1394 = vmatpush1.bf16.msra.mxu0 %v1372
    %1395 = vmatprep.subr.bf16.mxu0 %v1371
    %1396 = vmatpush1.bf16.msra.mxu0 %v1370
    %1397 = vmatprep.subr.bf16.mxu0 %v1369
    %1398 = vmatpush1.bf16.msra.mxu0 %v1368
    %1399 = vmatprep.subr.bf16.mxu0 %v1367
    %1400 = vmatpush1.bf16.msra.mxu0 %v1366
    %1401 = vmatprep.subr.bf16.mxu0 0
    %1402 = vmatpush2.bf16.msra.mxu0 0
    %1403 = vmatprep.subr.bf16.mxu0 0
    %1404 = vmatpush2.bf16.msra.mxu0 0
    %1405 = vmatprep.subr.bf16.mxu0 0
    %1406 = vmatpush2.bf16.msra.mxu0 0
    %1407 = vmatprep.subr.bf16.mxu0 0
    %1408 = vmatpush2.bf16.msra.mxu0 0
    %1409 = vmatprep.subr.bf16.mxu0 0
    %1410 = vmatpush2.bf16.msra.mxu0 0
    %1411 = vmatprep.subr.bf16.mxu0 0
    %1412 = vmatpush2.bf16.msra.mxu0 0
    %1413 = vmatprep.subr.bf16.mxu0 0
    %1414 = vmatpush2.bf16.msra.mxu0 0
    %1415 = vmatprep.subr.bf16.mxu0 0
    %1416 = vmatpush2.bf16.msra.mxu0 0
    %1417 = vmatprep.mubr.bf16.mxu0 0
    %1418 = vmatmul.mubr.bf16.gmra.mxu0 %v1383
    %v1419 = vpop.f32.mrf.mxu0
    %v1420 = vadd.f32 %v1335, %v1419
    %v1421 = vpop.f32.mrf.mxu0
    %v1422 = vadd.f32 %v1339, %v1421
    %v1423 = vpop.f32.mrf.mxu0
    %v1424 = vpop.f32.mrf.mxu0
    %1425 = vdwg.mxu0
    %v1426 = vadd.f32 %v1329, %v1420
    %v1427 = vxor.u32 %v1426, 2147483648
    %v1428 = vmul.f32 %v1427, 1.442695
    %v1429 = vpow.pop %v1428
    %v1430 = vadd.f32 %v1429, 1.0
    %v1431 = vrcp.pop %v1430
    %v1432 = vmul.f32 1.0, %v1431
    %v1433 = vmul.f32 %v1432, %v1422
    %v1434 = vadd.f32 %v1330, %v1433
    %v1435 = vtanh.pop %v1434
    %v1436 = vsub.f32 1.0, %v1432
    %1438 = vrot.lane.b32.xlu0 %v1435, 64
    %v1439 = vpop.permute.xlu0 %1438
    %v1441 = vmul.f32 %v1436, %v1439
    %v1442 = vmul.f32 %v1432, 0.0
    %v1443 = vadd.f32 %v1441, %v1442
    %v1444 = vrot.slane %v1294, 1
    %v1445 = vsel %vm764, %v1298, %v1444
    %v1446 = vrot.slane %v1296, 1
    %v1447 = vsel %vm764, %v1300, %v1446
    %v1450 = vrot.slane %v1294, 6
    %v1451 = vrot.slane %v1298, 5
    %v1452 = vsel %vm764, %v1451, %v1450
    %v1453 = vrot.slane %v1296, 6
    %v1454 = vrot.slane %v1300, 5
    %v1455 = vsel %vm764, %v1454, %v1453
    %v1458 = vsel %vm1147, %v1445, %v1452
    %v1459 = vsel %vm1148, %v1447, %v1455
    %v1460 = vpack.c.bf16 %v1443, %v1443
    %1462 = vrot.lane.b32.xlu0 %v1460, 64
    %v1463 = vpop.permute.xlu0 %1462
    %v1465 = vsel %vm385, %v1463, 0
    %1467 = vmatprep.subr.bf16.mxu0 0
    %1468 = vmatpush1.bf16.msra.mxu0 0
    %1469 = vmatprep.subr.bf16.mxu0 0
    %1470 = vmatpush1.bf16.msra.mxu0 0
    %1471 = vmatprep.subr.bf16.mxu0 0
    %1472 = vmatpush1.bf16.msra.mxu0 0
    %1473 = vmatprep.subr.bf16.mxu0 0
    %1474 = vmatpush1.bf16.msra.mxu0 0
    %1475 = vmatprep.subr.bf16.mxu0 %v1373
    %1476 = vmatpush1.bf16.msra.mxu0 %v1372
    %1477 = vmatprep.subr.bf16.mxu0 %v1371
    %1478 = vmatpush1.bf16.msra.mxu0 %v1370
    %1479 = vmatprep.subr.bf16.mxu0 %v1369
    %1480 = vmatpush1.bf16.msra.mxu0 %v1368
    %1481 = vmatprep.subr.bf16.mxu0 %v1367
    %1482 = vmatpush1.bf16.msra.mxu0 %v1366
    %1483 = vmatprep.subr.bf16.mxu0 0
    %1484 = vmatpush2.bf16.msra.mxu0 0
    %1485 = vmatprep.subr.bf16.mxu0 0
    %1486 = vmatpush2.bf16.msra.mxu0 0
    %1487 = vmatprep.subr.bf16.mxu0 0
    %1488 = vmatpush2.bf16.msra.mxu0 0
    %1489 = vmatprep.subr.bf16.mxu0 0
    %1490 = vmatpush2.bf16.msra.mxu0 0
    %1491 = vmatprep.subr.bf16.mxu0 0
    %1492 = vmatpush2.bf16.msra.mxu0 0
    %1493 = vmatprep.subr.bf16.mxu0 0
    %1494 = vmatpush2.bf16.msra.mxu0 0
    %1495 = vmatprep.subr.bf16.mxu0 0
    %1496 = vmatpush2.bf16.msra.mxu0 0
    %1497 = vmatprep.subr.bf16.mxu0 0
    %1498 = vmatpush2.bf16.msra.mxu0 0
    %1499 = vmatprep.mubr.bf16.mxu0 0
    %1500 = vmatmul.mubr.bf16.gmra.mxu0 %v1465
    %v1501 = vpop.f32.mrf.mxu0
    %v1502 = vadd.f32 %v1335, %v1501
    %v1503 = vpop.f32.mrf.mxu0
    %v1504 = vadd.f32 %v1339, %v1503
    %v1505 = vpop.f32.mrf.mxu0
    %v1506 = vpop.f32.mrf.mxu0
    %1507 = vdwg.mxu0
    %v1508 = vadd.f32 %v1458, %v1502
    %v1509 = vxor.u32 %v1508, 2147483648
    %v1510 = vmul.f32 %v1509, 1.442695
    %v1511 = vpow.pop %v1510
    %v1512 = vadd.f32 %v1511, 1.0
    %v1513 = vrcp.pop %v1512
    %v1514 = vmul.f32 1.0, %v1513
    %v1515 = vmul.f32 %v1514, %v1504
    %v1516 = vadd.f32 %v1459, %v1515
    %v1517 = vtanh.pop %v1516
    %v1518 = vsub.f32 1.0, %v1514
    %1520 = vrot.lane.b32.xlu0 %v1517, 64
    %v1521 = vpop.permute.xlu0 %1520
    %v1523 = vmul.f32 %v1518, %v1521
    %v1524 = vmul.f32 %v1514, %v1443
    %v1525 = vadd.f32 %v1523, %v1524
    %v1526 = vrot.slane %v1294, 2
    %v1527 = vrot.slane %v1298, 1
    %v1528 = vsel %vm764, %v1527, %v1526
    %v1529 = vrot.slane %v1296, 2
    %v1530 = vrot.slane %v1300, 1
    %v1531 = vsel %vm764, %v1530, %v1529
    %v1534 = vrot.slane %v1294, 5
    %v1535 = vrot.slane %v1298, 4
    %v1536 = vsel %vm764, %v1535, %v1534
    %v1537 = vrot.slane %v1296, 5
    %v1538 = vrot.slane %v1300, 4
    %v1539 = vsel %vm764, %v1538, %v1537
    %v1542 = vsel %vm1147, %v1528, %v1536
    %v1543 = vsel %vm1148, %v1531, %v1539
    %v1544 = vpack.c.bf16 %v1525, %v1525
    %1546 = vrot.lane.b32.xlu0 %v1544, 64
    %v1547 = vpop.permute.xlu0 %1546
    %v1549 = vsel %vm385, %v1547, 0
    %1551 = vmatprep.subr.bf16.mxu0 0
    %1552 = vmatpush1.bf16.msra.mxu0 0
    %1553 = vmatprep.subr.bf16.mxu0 0
    %1554 = vmatpush1.bf16.msra.mxu0 0
    %1555 = vmatprep.subr.bf16.mxu0 0
    %1556 = vmatpush1.bf16.msra.mxu0 0
    %1557 = vmatprep.subr.bf16.mxu0 0
    %1558 = vmatpush1.bf16.msra.mxu0 0
    %1559 = vmatprep.subr.bf16.mxu0 %v1373
    %1560 = vmatpush1.bf16.msra.mxu0 %v1372
    %1561 = vmatprep.subr.bf16.mxu0 %v1371
    %1562 = vmatpush1.bf16.msra.mxu0 %v1370
    %1563 = vmatprep.subr.bf16.mxu0 %v1369
    %1564 = vmatpush1.bf16.msra.mxu0 %v1368
    %1565 = vmatprep.subr.bf16.mxu0 %v1367
    %1566 = vmatpush1.bf16.msra.mxu0 %v1366
    %1567 = vmatprep.subr.bf16.mxu0 0
    %1568 = vmatpush2.bf16.msra.mxu0 0
    %1569 = vmatprep.subr.bf16.mxu0 0
    %1570 = vmatpush2.bf16.msra.mxu0 0
    %1571 = vmatprep.subr.bf16.mxu0 0
    %1572 = vmatpush2.bf16.msra.mxu0 0
    %1573 = vmatprep.subr.bf16.mxu0 0
    %1574 = vmatpush2.bf16.msra.mxu0 0
    %1575 = vmatprep.subr.bf16.mxu0 0
    %1576 = vmatpush2.bf16.msra.mxu0 0
    %1577 = vmatprep.subr.bf16.mxu0 0
    %1578 = vmatpush2.bf16.msra.mxu0 0
    %1579 = vmatprep.subr.bf16.mxu0 0
    %1580 = vmatpush2.bf16.msra.mxu0 0
    %1581 = vmatprep.subr.bf16.mxu0 0
    %1582 = vmatpush2.bf16.msra.mxu0 0
    %1583 = vmatprep.mubr.bf16.mxu0 0
    %1584 = vmatmul.mubr.bf16.gmra.mxu0 %v1549
    %v1585 = vpop.f32.mrf.mxu0
    %v1586 = vadd.f32 %v1335, %v1585
    %v1587 = vpop.f32.mrf.mxu0
    %v1588 = vadd.f32 %v1339, %v1587
    %v1589 = vpop.f32.mrf.mxu0
    %v1590 = vpop.f32.mrf.mxu0
    %1591 = vdwg.mxu0
    %v1592 = vadd.f32 %v1542, %v1586
    %v1593 = vxor.u32 %v1592, 2147483648
    %v1594 = vmul.f32 %v1593, 1.442695
    %v1595 = vpow.pop %v1594
    %v1596 = vadd.f32 %v1595, 1.0
    %v1597 = vrcp.pop %v1596
    %v1598 = vmul.f32 1.0, %v1597
    %v1599 = vmul.f32 %v1598, %v1588
    %v1600 = vadd.f32 %v1543, %v1599
    %v1601 = vtanh.pop %v1600
    %v1602 = vsub.f32 1.0, %v1598
    %1604 = vrot.lane.b32.xlu0 %v1601, 64
    %v1605 = vpop.permute.xlu0 %1604
    %v1607 = vmul.f32 %v1602, %v1605
    %v1608 = vmul.f32 %v1598, %v1525
    %v1609 = vadd.f32 %v1607, %v1608
    %v1610 = vrot.slane %v1294, 3
    %v1611 = vrot.slane %v1298, 2
    %v1612 = vsel %vm764, %v1611, %v1610
    %v1613 = vrot.slane %v1296, 3
    %v1614 = vrot.slane %v1300, 2
    %v1615 = vsel %vm764, %v1614, %v1613
    %v1618 = vrot.slane %v1294, 4
    %v1619 = vrot.slane %v1298, 3
    %v1620 = vsel %vm764, %v1619, %v1618
    %v1621 = vrot.slane %v1296, 4
    %v1622 = vrot.slane %v1300, 3
    %v1623 = vsel %vm764, %v1622, %v1621
    %v1626 = vsel %vm1147, %v1612, %v1620
    %v1627 = vsel %vm1148, %v1615, %v1623
    %v1628 = vpack.c.bf16 %v1609, %v1609
    %1630 = vrot.lane.b32.xlu0 %v1628, 64
    %v1631 = vpop.permute.xlu0 %1630
    %v1633 = vsel %vm385, %v1631, 0
    %1635 = vmatprep.subr.bf16.mxu0 0
    %1636 = vmatpush1.bf16.msra.mxu0 0
    %1637 = vmatprep.subr.bf16.mxu0 0
    %1638 = vmatpush1.bf16.msra.mxu0 0
    %1639 = vmatprep.subr.bf16.mxu0 0
    %1640 = vmatpush1.bf16.msra.mxu0 0
    %1641 = vmatprep.subr.bf16.mxu0 0
    %1642 = vmatpush1.bf16.msra.mxu0 0
    %1643 = vmatprep.subr.bf16.mxu0 %v1373
    %1644 = vmatpush1.bf16.msra.mxu0 %v1372
    %1645 = vmatprep.subr.bf16.mxu0 %v1371
    %1646 = vmatpush1.bf16.msra.mxu0 %v1370
    %1647 = vmatprep.subr.bf16.mxu0 %v1369
    %1648 = vmatpush1.bf16.msra.mxu0 %v1368
    %1649 = vmatprep.subr.bf16.mxu0 %v1367
    %1650 = vmatpush1.bf16.msra.mxu0 %v1366
    %1651 = vmatprep.subr.bf16.mxu0 0
    %1652 = vmatpush2.bf16.msra.mxu0 0
    %1653 = vmatprep.subr.bf16.mxu0 0
    %1654 = vmatpush2.bf16.msra.mxu0 0
    %1655 = vmatprep.subr.bf16.mxu0 0
    %1656 = vmatpush2.bf16.msra.mxu0 0
    %1657 = vmatprep.subr.bf16.mxu0 0
    %1658 = vmatpush2.bf16.msra.mxu0 0
    %1659 = vmatprep.subr.bf16.mxu0 0
    %1660 = vmatpush2.bf16.msra.mxu0 0
    %1661 = vmatprep.subr.bf16.mxu0 0
    %1662 = vmatpush2.bf16.msra.mxu0 0
    %1663 = vmatprep.subr.bf16.mxu0 0
    %1664 = vmatpush2.bf16.msra.mxu0 0
    %1665 = vmatprep.subr.bf16.mxu0 0
    %1666 = vmatpush2.bf16.msra.mxu0 0
    %1667 = vmatprep.mubr.bf16.mxu0 0
    %1668 = vmatmul.mubr.bf16.gmra.mxu0 %v1633
    %v1669 = vpop.f32.mrf.mxu0
    %v1670 = vadd.f32 %v1335, %v1669
    %v1671 = vpop.f32.mrf.mxu0
    %v1672 = vadd.f32 %v1339, %v1671
    %v1673 = vpop.f32.mrf.mxu0
    %v1674 = vpop.f32.mrf.mxu0
    %1675 = vdwg.mxu0
    %v1676 = vadd.f32 %v1626, %v1670
    %v1677 = vxor.u32 %v1676, 2147483648
    %v1678 = vmul.f32 %v1677, 1.442695
    %v1679 = vpow.pop %v1678
    %v1680 = vadd.f32 %v1679, 1.0
    %v1681 = vrcp.pop %v1680
    %v1682 = vmul.f32 1.0, %v1681
    %v1683 = vmul.f32 %v1682, %v1672
    %v1684 = vadd.f32 %v1627, %v1683
    %v1685 = vtanh.pop %v1684
    %v1686 = vsub.f32 1.0, %v1682
    %1688 = vrot.lane.b32.xlu0 %v1685, 64
    %v1689 = vpop.permute.xlu0 %1688
    %v1691 = vmul.f32 %v1686, %v1689
    %v1692 = vmul.f32 %v1682, %v1609
    %v1693 = vadd.f32 %v1691, %v1692
    %v1694 = vsel %vm1147, %v1620, %v1612
    %v1695 = vsel %vm1148, %v1623, %v1615
    %v1696 = vpack.c.bf16 %v1693, %v1693
    %1698 = vrot.lane.b32.xlu0 %v1696, 64
    %v1699 = vpop.permute.xlu0 %1698
    %v1701 = vsel %vm385, %v1699, 0
    %1703 = vmatprep.subr.bf16.mxu0 0
    %1704 = vmatpush1.bf16.msra.mxu0 0
    %1705 = vmatprep.subr.bf16.mxu0 0
    %1706 = vmatpush1.bf16.msra.mxu0 0
    %1707 = vmatprep.subr.bf16.mxu0 0
    %1708 = vmatpush1.bf16.msra.mxu0 0
    %1709 = vmatprep.subr.bf16.mxu0 0
    %1710 = vmatpush1.bf16.msra.mxu0 0
    %1711 = vmatprep.subr.bf16.mxu0 %v1373
    %1712 = vmatpush1.bf16.msra.mxu0 %v1372
    %1713 = vmatprep.subr.bf16.mxu0 %v1371
    %1714 = vmatpush1.bf16.msra.mxu0 %v1370
    %1715 = vmatprep.subr.bf16.mxu0 %v1369
    %1716 = vmatpush1.bf16.msra.mxu0 %v1368
    %1717 = vmatprep.subr.bf16.mxu0 %v1367
    %1718 = vmatpush1.bf16.msra.mxu0 %v1366
    %1719 = vmatprep.subr.bf16.mxu0 0
    %1720 = vmatpush2.bf16.msra.mxu0 0
    %1721 = vmatprep.subr.bf16.mxu0 0
    %1722 = vmatpush2.bf16.msra.mxu0 0
    %1723 = vmatprep.subr.bf16.mxu0 0
    %1724 = vmatpush2.bf16.msra.mxu0 0
    %1725 = vmatprep.subr.bf16.mxu0 0
    %1726 = vmatpush2.bf16.msra.mxu0 0
    %1727 = vmatprep.subr.bf16.mxu0 0
    %1728 = vmatpush2.bf16.msra.mxu0 0
    %1729 = vmatprep.subr.bf16.mxu0 0
    %1730 = vmatpush2.bf16.msra.mxu0 0
    %1731 = vmatprep.subr.bf16.mxu0 0
    %1732 = vmatpush2.bf16.msra.mxu0 0
    %1733 = vmatprep.subr.bf16.mxu0 0
    %1734 = vmatpush2.bf16.msra.mxu0 0
    %1735 = vmatprep.mubr.bf16.mxu0 0
    %1736 = vmatmul.mubr.bf16.gmra.mxu0 %v1701
    %v1737 = vpop.f32.mrf.mxu0
    %v1738 = vadd.f32 %v1335, %v1737
    %v1739 = vpop.f32.mrf.mxu0
    %v1740 = vadd.f32 %v1339, %v1739
    %v1741 = vpop.f32.mrf.mxu0
    %v1742 = vpop.f32.mrf.mxu0
    %1743 = vdwg.mxu0
    %v1744 = vadd.f32 %v1694, %v1738
    %v1745 = vxor.u32 %v1744, 2147483648
    %v1746 = vmul.f32 %v1745, 1.442695
    %v1747 = vpow.pop %v1746
    %v1748 = vadd.f32 %v1747, 1.0
    %v1749 = vrcp.pop %v1748
    %v1750 = vmul.f32 1.0, %v1749
    %v1751 = vmul.f32 %v1750, %v1740
    %v1752 = vadd.f32 %v1695, %v1751
    %v1753 = vtanh.pop %v1752
    %v1754 = vsub.f32 1.0, %v1750
    %1756 = vrot.lane.b32.xlu0 %v1753, 64
    %v1757 = vpop.permute.xlu0 %1756
    %v1759 = vmul.f32 %v1754, %v1757
    %v1760 = vmul.f32 %v1750, %v1693
    %v1761 = vadd.f32 %v1759, %v1760
    %v1762 = vsel %vm1147, %v1536, %v1528
    %v1763 = vsel %vm1148, %v1539, %v1531
    %v1764 = vpack.c.bf16 %v1761, %v1761
    %1766 = vrot.lane.b32.xlu0 %v1764, 64
    %v1767 = vpop.permute.xlu0 %1766
    %v1769 = vsel %vm385, %v1767, 0
    %1771 = vmatprep.subr.bf16.mxu0 0
    %1772 = vmatpush1.bf16.msra.mxu0 0
    %1773 = vmatprep.subr.bf16.mxu0 0
    %1774 = vmatpush1.bf16.msra.mxu0 0
    %1775 = vmatprep.subr.bf16.mxu0 0
    %1776 = vmatpush1.bf16.msra.mxu0 0
    %1777 = vmatprep.subr.bf16.mxu0 0
    %1778 = vmatpush1.bf16.msra.mxu0 0
    %1779 = vmatprep.subr.bf16.mxu0 %v1373
    %1780 = vmatpush1.bf16.msra.mxu0 %v1372
    %1781 = vmatprep.subr.bf16.mxu0 %v1371
    %1782 = vmatpush1.bf16.msra.mxu0 %v1370
    %1783 = vmatprep.subr.bf16.mxu0 %v1369
    %1784 = vmatpush1.bf16.msra.mxu0 %v1368
    %1785 = vmatprep.subr.bf16.mxu0 %v1367
    %1786 = vmatpush1.bf16.msra.mxu0 %v1366
    %1787 = vmatprep.subr.bf16.mxu0 0
    %1788 = vmatpush2.bf16.msra.mxu0 0
    %1789 = vmatprep.subr.bf16.mxu0 0
    %1790 = vmatpush2.bf16.msra.mxu0 0
    %1791 = vmatprep.subr.bf16.mxu0 0
    %1792 = vmatpush2.bf16.msra.mxu0 0
    %1793 = vmatprep.subr.bf16.mxu0 0
    %1794 = vmatpush2.bf16.msra.mxu0 0
    %1795 = vmatprep.subr.bf16.mxu0 0
    %1796 = vmatpush2.bf16.msra.mxu0 0
    %1797 = vmatprep.subr.bf16.mxu0 0
    %1798 = vmatpush2.bf16.msra.mxu0 0
    %1799 = vmatprep.subr.bf16.mxu0 0
    %1800 = vmatpush2.bf16.msra.mxu0 0
    %1801 = vmatprep.subr.bf16.mxu0 0
    %1802 = vmatpush2.bf16.msra.mxu0 0
    %1803 = vmatprep.mubr.bf16.mxu0 0
    %1804 = vmatmul.mubr.bf16.gmra.mxu0 %v1769
    %v1805 = vpop.f32.mrf.mxu0
    %v1806 = vadd.f32 %v1335, %v1805
    %v1807 = vpop.f32.mrf.mxu0
    %v1808 = vadd.f32 %v1339, %v1807
    %v1809 = vpop.f32.mrf.mxu0
    %v1810 = vpop.f32.mrf.mxu0
    %1811 = vdwg.mxu0
    %v1812 = vadd.f32 %v1762, %v1806
    %v1813 = vxor.u32 %v1812, 2147483648
    %v1814 = vmul.f32 %v1813, 1.442695
    %v1815 = vpow.pop %v1814
    %v1816 = vadd.f32 %v1815, 1.0
    %v1817 = vrcp.pop %v1816
    %v1818 = vmul.f32 1.0, %v1817
    %v1819 = vmul.f32 %v1818, %v1808
    %v1820 = vadd.f32 %v1763, %v1819
    %v1821 = vtanh.pop %v1820
    %v1822 = vsub.f32 1.0, %v1818
    %1824 = vrot.lane.b32.xlu0 %v1821, 64
    %v1825 = vpop.permute.xlu0 %1824
    %v1827 = vmul.f32 %v1822, %v1825
    %v1828 = vmul.f32 %v1818, %v1761
    %v1829 = vadd.f32 %v1827, %v1828
    %v1830 = vsel %vm1147, %v1452, %v1445
    %v1831 = vsel %vm1148, %v1455, %v1447
    %v1832 = vpack.c.bf16 %v1829, %v1829
    %1834 = vrot.lane.b32.xlu0 %v1832, 64
    %v1835 = vpop.permute.xlu0 %1834
    %v1837 = vsel %vm385, %v1835, 0
    %1839 = vmatprep.subr.bf16.mxu0 0
    %1840 = vmatpush1.bf16.msra.mxu0 0
    %1841 = vmatprep.subr.bf16.mxu0 0
    %1842 = vmatpush1.bf16.msra.mxu0 0
    %1843 = vmatprep.subr.bf16.mxu0 0
    %1844 = vmatpush1.bf16.msra.mxu0 0
    %1845 = vmatprep.subr.bf16.mxu0 0
    %1846 = vmatpush1.bf16.msra.mxu0 0
    %1847 = vmatprep.subr.bf16.mxu0 %v1373
    %1848 = vmatpush1.bf16.msra.mxu0 %v1372
    %1849 = vmatprep.subr.bf16.mxu0 %v1371
    %1850 = vmatpush1.bf16.msra.mxu0 %v1370
    %1851 = vmatprep.subr.bf16.mxu0 %v1369
    %1852 = vmatpush1.bf16.msra.mxu0 %v1368
    %1853 = vmatprep.subr.bf16.mxu0 %v1367
    %1854 = vmatpush1.bf16.msra.mxu0 %v1366
    %1855 = vmatprep.subr.bf16.mxu0 0
    %1856 = vmatpush2.bf16.msra.mxu0 0
    %1857 = vmatprep.subr.bf16.mxu0 0
    %1858 = vmatpush2.bf16.msra.mxu0 0
    %1859 = vmatprep.subr.bf16.mxu0 0
    %1860 = vmatpush2.bf16.msra.mxu0 0
    %1861 = vmatprep.subr.bf16.mxu0 0
    %1862 = vmatpush2.bf16.msra.mxu0 0
    %1863 = vmatprep.subr.bf16.mxu0 0
    %1864 = vmatpush2.bf16.msra.mxu0 0
    %1865 = vmatprep.subr.bf16.mxu0 0
    %1866 = vmatpush2.bf16.msra.mxu0 0
    %1867 = vmatprep.subr.bf16.mxu0 0
    %1868 = vmatpush2.bf16.msra.mxu0 0
    %1869 = vmatprep.subr.bf16.mxu0 0
    %1870 = vmatpush2.bf16.msra.mxu0 0
    %1871 = vmatprep.mubr.bf16.mxu0 0
    %1872 = vmatmul.mubr.bf16.gmra.mxu0 %v1837
    %v1873 = vpop.f32.mrf.mxu0
    %v1874 = vadd.f32 %v1335, %v1873
    %v1875 = vpop.f32.mrf.mxu0
    %v1876 = vadd.f32 %v1339, %v1875
    %v1877 = vpop.f32.mrf.mxu0
    %v1878 = vpop.f32.mrf.mxu0
    %1879 = vdwg.mxu0
    %v1880 = vadd.f32 %v1830, %v1874
    %v1881 = vxor.u32 %v1880, 2147483648
    %v1882 = vmul.f32 %v1881, 1.442695
    %v1883 = vpow.pop %v1882
    %v1884 = vadd.f32 %v1883, 1.0
    %v1885 = vrcp.pop %v1884
    %v1886 = vmul.f32 1.0, %v1885
    %v1887 = vmul.f32 %v1886, %v1876
    %v1888 = vadd.f32 %v1831, %v1887
    %v1889 = vtanh.pop %v1888
    %v1890 = vsub.f32 1.0, %v1886
    %1892 = vrot.lane.b32.xlu0 %v1889, 64
    %v1893 = vpop.permute.xlu0 %1892
    %v1895 = vmul.f32 %v1890, %v1893
    %v1896 = vmul.f32 %v1886, %v1829
    %v1897 = vadd.f32 %v1895, %v1896
    %v1898 = vsel %vm1147, %v1323, %v1316
    %v1899 = vsel %vm1148, %v1326, %v1318
    %v1900 = vpack.c.bf16 %v1897, %v1897
    %1902 = vrot.lane.b32.xlu0 %v1900, 64
    %v1903 = vpop.permute.xlu0 %1902
    %v1905 = vsel %vm385, %v1903, 0
    %1907 = vmatprep.subr.bf16.mxu0 0
    %1908 = vmatpush1.bf16.msra.mxu0 0
    %1909 = vmatprep.subr.bf16.mxu0 0
    %1910 = vmatpush1.bf16.msra.mxu0 0
    %1911 = vmatprep.subr.bf16.mxu0 0
    %1912 = vmatpush1.bf16.msra.mxu0 0
    %1913 = vmatprep.subr.bf16.mxu0 0
    %1914 = vmatpush1.bf16.msra.mxu0 0
    %1915 = vmatprep.subr.bf16.mxu0 %v1373
    %1916 = vmatpush1.bf16.msra.mxu0 %v1372
    %1917 = vmatprep.subr.bf16.mxu0 %v1371
    %1918 = vmatpush1.bf16.msra.mxu0 %v1370
    %1919 = vmatprep.subr.bf16.mxu0 %v1369
    %1920 = vmatpush1.bf16.msra.mxu0 %v1368
    %1921 = vmatprep.subr.bf16.mxu0 %v1367
    %1922 = vmatpush1.bf16.msra.mxu0 %v1366
    %1923 = vmatprep.subr.bf16.mxu0 0
    %1924 = vmatpush2.bf16.msra.mxu0 0
    %1925 = vmatprep.subr.bf16.mxu0 0
    %1926 = vmatpush2.bf16.msra.mxu0 0
    %1927 = vmatprep.subr.bf16.mxu0 0
    %1928 = vmatpush2.bf16.msra.mxu0 0
    %1929 = vmatprep.subr.bf16.mxu0 0
    %1930 = vmatpush2.bf16.msra.mxu0 0
    %1931 = vmatprep.subr.bf16.mxu0 0
    %1932 = vmatpush2.bf16.msra.mxu0 0
    %1933 = vmatprep.subr.bf16.mxu0 0
    %1934 = vmatpush2.bf16.msra.mxu0 0
    %1935 = vmatprep.subr.bf16.mxu0 0
    %1936 = vmatpush2.bf16.msra.mxu0 0
    %1937 = vmatprep.subr.bf16.mxu0 0
    %1938 = vmatpush2.bf16.msra.mxu0 0
    %1939 = vmatprep.mubr.bf16.mxu0 0
    %1940 = vmatmul.mubr.bf16.gmra.mxu0 %v1905
    %v1941 = vpop.f32.mrf.mxu0
    %v1942 = vadd.f32 %v1335, %v1941
    %v1943 = vpop.f32.mrf.mxu0
    %v1944 = vadd.f32 %v1339, %v1943
    %v1945 = vpop.f32.mrf.mxu0
    %v1946 = vpop.f32.mrf.mxu0
    %1947 = vdwg.mxu0
    %v1948 = vadd.f32 %v1898, %v1942
    %v1949 = vxor.u32 %v1948, 2147483648
    %v1950 = vmul.f32 %v1949, 1.442695
    %v1951 = vpow.pop %v1950
    %v1952 = vadd.f32 %v1951, 1.0
    %v1953 = vrcp.pop %v1952
    %v1954 = vmul.f32 1.0, %v1953
    %v1955 = vmul.f32 %v1954, %v1944
    %v1956 = vadd.f32 %v1899, %v1955
    %v1957 = vtanh.pop %v1956
    %v1958 = vsub.f32 1.0, %v1954
    %1960 = vrot.lane.b32.xlu0 %v1957, 64
    %v1961 = vpop.permute.xlu0 %1960
    %v1963 = vmul.f32 %v1958, %v1961
    %v1964 = vmul.f32 %v1954, %v1897
    %v1965 = vadd.f32 %v1963, %v1964
    %1967 = vrot.lane.b32.xlu0 %v1443, 64
    %v1968 = vpop.permute.xlu0 %1967
    %1971 = vrot.lane.b32.xlu0 %v1965, 64
    %v1972 = vpop.permute.xlu0 %1971
    %v1974 = vsel %vm1149, %v1968, %v1972
    %1976 = vrot.lane.b32.xlu0 %v1525, 64
    %v1977 = vpop.permute.xlu0 %1976
    %1980 = vrot.lane.b32.xlu0 %v1897, 64
    %v1981 = vpop.permute.xlu0 %1980
    %v1983 = vsel %vm1149, %v1977, %v1981
    %1985 = vrot.lane.b32.xlu0 %v1609, 64
    %v1986 = vpop.permute.xlu0 %1985
    %1989 = vrot.lane.b32.xlu0 %v1829, 64
    %v1990 = vpop.permute.xlu0 %1989
    %v1992 = vsel %vm1149, %v1986, %v1990
    %1994 = vrot.lane.b32.xlu0 %v1693, 64
    %v1995 = vpop.permute.xlu0 %1994
    %1998 = vrot.lane.b32.xlu0 %v1761, 64
    %v1999 = vpop.permute.xlu0 %1998
    %v2001 = vsel %vm1149, %v1995, %v1999
    %v2002 = vsel %vm1149, %v1999, %v1995
    %v2003 = vsel %vm1149, %v1990, %v1986
    %v2004 = vsel %vm1149, %v1981, %v1977
    %v2005 = vsel %vm1149, %v1972, %v1968
    %v2008 = vunpack.c.l.s4 1966171168
    %v2009 = vunpack.c.0.s8 %v2008
    %v2010 = vlaneseq
    %v2011 = vshrl.u32 %v2010, 7
    %v2012 = vsub.s32 %v2009, %v2011
    %v2013 = vrot.slane %v1974, %v2012
    %v2014 = vcombine.high %v2013, %v2013
    %v2016 = vunpack.c.l.s4 1966171168
    %v2017 = vunpack.c.0.s8 %v2016
    %v2018 = vlaneseq
    %v2019 = vshrl.u32 %v2018, 7
    %v2020 = vsub.s32 %v2017, %v2019
    %v2021 = vrot.slane %v2013, %v2020
    %v2023 = vunpack.c.l.s4 1966171168
    %v2024 = vunpack.c.0.s8 %v2023
    %v2025 = vlaneseq
    %v2026 = vshrl.u32 %v2025, 7
    %v2027 = vsub.s32 %v2024, %v2026
    %v2028 = vrot.slane %v2014, %v2027
    %v2033 = vunpack.c.l.s4 1966171168
    %v2034 = vunpack.c.0.s8 %v2033
    %v2035 = vlaneseq
    %v2036 = vshrl.u32 %v2035, 7
    %v2037 = vsub.s32 %v2034, %v2036
    %v2038 = vrot.slane %v1983, %v2037
    %v2039 = vcombine.high %v2038, %v2038
    %v2041 = vunpack.c.l.s4 1966171168
    %v2042 = vunpack.c.0.s8 %v2041
    %v2043 = vlaneseq
    %v2044 = vshrl.u32 %v2043, 7
    %v2045 = vsub.s32 %v2042, %v2044
    %v2046 = vrot.slane %v2038, %v2045
    %v2048 = vunpack.c.l.s4 1966171168
    %v2049 = vunpack.c.0.s8 %v2048
    %v2050 = vlaneseq
    %v2051 = vshrl.u32 %v2050, 7
    %v2052 = vsub.s32 %v2049, %v2051
    %v2053 = vrot.slane %v2039, %v2052
    %v2056 = vunpack.c.l.s4 1966171168
    %v2057 = vunpack.c.0.s8 %v2056
    %v2058 = vlaneseq
    %v2059 = vshrl.u32 %v2058, 7
    %v2060 = vsub.s32 %v2057, %v2059
    %v2061 = vrot.slane %v1992, %v2060
    %v2062 = vcombine.high %v2061, %v2061
    %v2064 = vunpack.c.l.s4 1966171168
    %v2065 = vunpack.c.0.s8 %v2064
    %v2066 = vlaneseq
    %v2067 = vshrl.u32 %v2066, 7
    %v2068 = vsub.s32 %v2065, %v2067
    %v2069 = vrot.slane %v2061, %v2068
    %v2071 = vunpack.c.l.s4 1966171168
    %v2072 = vunpack.c.0.s8 %v2071
    %v2073 = vlaneseq
    %v2074 = vshrl.u32 %v2073, 7
    %v2075 = vsub.s32 %v2072, %v2074
    %v2076 = vrot.slane %v2062, %v2075
    %v2079 = vunpack.c.l.s4 1966171168
    %v2080 = vunpack.c.0.s8 %v2079
    %v2081 = vlaneseq
    %v2082 = vshrl.u32 %v2081, 7
    %v2083 = vsub.s32 %v2080, %v2082
    %v2084 = vrot.slane %v2001, %v2083
    %v2085 = vcombine.high %v2084, %v2084
    %v2087 = vunpack.c.l.s4 1966171168
    %v2088 = vunpack.c.0.s8 %v2087
    %v2089 = vlaneseq
    %v2090 = vshrl.u32 %v2089, 7
    %v2091 = vsub.s32 %v2088, %v2090
    %v2092 = vrot.slane %v2084, %v2091
    %v2094 = vunpack.c.l.s4 1966171168
    %v2095 = vunpack.c.0.s8 %v2094
    %v2096 = vlaneseq
    %v2097 = vshrl.u32 %v2096, 7
    %v2098 = vsub.s32 %v2095, %v2097
    %v2099 = vrot.slane %v2085, %v2098
    %v2102 = vunpack.c.l.s4 1966171168
    %v2103 = vunpack.c.0.s8 %v2102
    %v2104 = vlaneseq
    %v2105 = vshrl.u32 %v2104, 7
    %v2106 = vsub.s32 %v2103, %v2105
    %v2107 = vrot.slane %v2002, %v2106
    %v2108 = vcombine.high %v2107, %v2107
    %v2110 = vunpack.c.l.s4 1966171168
    %v2111 = vunpack.c.0.s8 %v2110
    %v2112 = vlaneseq
    %v2113 = vshrl.u32 %v2112, 7
    %v2114 = vsub.s32 %v2111, %v2113
    %v2115 = vrot.slane %v2107, %v2114
    %v2117 = vunpack.c.l.s4 1966171168
    %v2118 = vunpack.c.0.s8 %v2117
    %v2119 = vlaneseq
    %v2120 = vshrl.u32 %v2119, 7
    %v2121 = vsub.s32 %v2118, %v2120
    %v2122 = vrot.slane %v2108, %v2121
    %v2125 = vunpack.c.l.s4 1966171168
    %v2126 = vunpack.c.0.s8 %v2125
    %v2127 = vlaneseq
    %v2128 = vshrl.u32 %v2127, 7
    %v2129 = vsub.s32 %v2126, %v2128
    %v2130 = vrot.slane %v2003, %v2129
    %v2131 = vcombine.high %v2130, %v2130
    %v2133 = vunpack.c.l.s4 1966171168
    %v2134 = vunpack.c.0.s8 %v2133
    %v2135 = vlaneseq
    %v2136 = vshrl.u32 %v2135, 7
    %v2137 = vsub.s32 %v2134, %v2136
    %v2138 = vrot.slane %v2130, %v2137
    %v2140 = vunpack.c.l.s4 1966171168
    %v2141 = vunpack.c.0.s8 %v2140
    %v2142 = vlaneseq
    %v2143 = vshrl.u32 %v2142, 7
    %v2144 = vsub.s32 %v2141, %v2143
    %v2145 = vrot.slane %v2131, %v2144
    %v2148 = vunpack.c.l.s4 1966171168
    %v2149 = vunpack.c.0.s8 %v2148
    %v2150 = vlaneseq
    %v2151 = vshrl.u32 %v2150, 7
    %v2152 = vsub.s32 %v2149, %v2151
    %v2153 = vrot.slane %v2004, %v2152
    %v2154 = vcombine.high %v2153, %v2153
    %v2156 = vunpack.c.l.s4 1966171168
    %v2157 = vunpack.c.0.s8 %v2156
    %v2158 = vlaneseq
    %v2159 = vshrl.u32 %v2158, 7
    %v2160 = vsub.s32 %v2157, %v2159
    %v2161 = vrot.slane %v2153, %v2160
    %v2163 = vunpack.c.l.s4 1966171168
    %v2164 = vunpack.c.0.s8 %v2163
    %v2165 = vlaneseq
    %v2166 = vshrl.u32 %v2165, 7
    %v2167 = vsub.s32 %v2164, %v2166
    %v2168 = vrot.slane %v2154, %v2167
    %v2171 = vunpack.c.l.s4 1966171168
    %v2172 = vunpack.c.0.s8 %v2171
    %v2173 = vlaneseq
    %v2174 = vshrl.u32 %v2173, 7
    %v2175 = vsub.s32 %v2172, %v2174
    %v2176 = vrot.slane %v2005, %v2175
    %v2177 = vcombine.high %v2176, %v2176
    %v2179 = vunpack.c.l.s4 1966171168
    %v2180 = vunpack.c.0.s8 %v2179
    %v2181 = vlaneseq
    %v2182 = vshrl.u32 %v2181, 7
    %v2183 = vsub.s32 %v2180, %v2182
    %v2184 = vrot.slane %v2176, %v2183
    %v2186 = vunpack.c.l.s4 1966171168
    %v2187 = vunpack.c.0.s8 %v2186
    %v2188 = vlaneseq
    %v2189 = vshrl.u32 %v2188, 7
    %v2190 = vsub.s32 %v2187, %v2189
    %v2191 = vrot.slane %v2177, %v2190
    %v2192 = vlaneseq
    %v2193 = vshrl.u32 %v2192, 7
    %v2194 = vsub.s32 0, %v2193
    %v2195 = vrot.slane %v2046, %v2194
    %v2196 = vlaneseq
    %v2197 = vshrl.u32 %v2196, 7
    %v2198 = vsub.s32 0, %v2197
    %v2199 = vrot.slane %v2053, %v2198
    %v2202 = vlaneseq
    %v2203 = vshrl.u32 %v2202, 7
    %v2204 = vsub.s32 0, %v2203
    %v2205 = vrot.slane %v2069, %v2204
    %v2206 = vlaneseq
    %v2207 = vshrl.u32 %v2206, 7
    %v2208 = vsub.s32 0, %v2207
    %v2209 = vrot.slane %v2076, %v2208
    %v2212 = vlaneseq
    %v2213 = vshrl.u32 %v2212, 7
    %v2214 = vsub.s32 0, %v2213
    %v2215 = vrot.slane %v2092, %v2214
    %v2216 = vlaneseq
    %v2217 = vshrl.u32 %v2216, 7
    %v2218 = vsub.s32 0, %v2217
    %v2219 = vrot.slane %v2099, %v2218
    %v2222 = vlaneseq
    %v2223 = vshrl.u32 %v2222, 7
    %v2224 = vsub.s32 0, %v2223
    %v2225 = vrot.slane %v2115, %v2224
    %v2226 = vlaneseq
    %v2227 = vshrl.u32 %v2226, 7
    %v2228 = vsub.s32 0, %v2227
    %v2229 = vrot.slane %v2122, %v2228
    %v2232 = vlaneseq
    %v2233 = vshrl.u32 %v2232, 7
    %v2234 = vsub.s32 0, %v2233
    %v2235 = vrot.slane %v2138, %v2234
    %v2236 = vlaneseq
    %v2237 = vshrl.u32 %v2236, 7
    %v2238 = vsub.s32 0, %v2237
    %v2239 = vrot.slane %v2145, %v2238
    %v2242 = vlaneseq
    %v2243 = vshrl.u32 %v2242, 7
    %v2244 = vsub.s32 0, %v2243
    %v2245 = vrot.slane %v2161, %v2244
    %v2246 = vlaneseq
    %v2247 = vshrl.u32 %v2246, 7
    %v2248 = vsub.s32 0, %v2247
    %v2249 = vrot.slane %v2168, %v2248
    %v2252 = vlaneseq
    %v2253 = vshrl.u32 %v2252, 7
    %v2254 = vsub.s32 0, %v2253
    %v2255 = vrot.slane %v2184, %v2254
    %v2256 = vlaneseq
    %v2257 = vshrl.u32 %v2256, 7
    %v2258 = vsub.s32 0, %v2257
    %v2259 = vrot.slane %v2191, %v2258
    %v2262 = vsel %vm883, %v2021, %v2195
    %v2263 = vsel %vm883, %v2028, %v2199
    %v2264 = vsel %vm257, %v2262, %v2205
    %v2265 = vsel %vm257, %v2263, %v2209
    %vm2266 = vcmask 1042432
    %v2267 = vsel %vm2266, %v2264, %v2215
    %v2268 = vsel %vm2266, %v2265, %v2219
    %v2269 = vsel %vm311, %v2267, %v2225
    %v2270 = vsel %vm311, %v2268, %v2229
    %v2271 = vsel %vm300, %v2269, %v2235
    %v2272 = vsel %vm300, %v2270, %v2239
    %v2273 = vsel %vm289, %v2271, %v2245
    %v2274 = vsel %vm289, %v2272, %v2249
    %v2275 = vsel %vm278, %v2273, %v2255
    %v2276 = vsel %vm278, %v2274, %v2259
    %v2277 = vpack.c.bf16 %v2276, %v2275
    %v2278 = vld [vmem:[#allocation11] sm:$0xff]
    %v2279 = vld [vmem:[#allocation11 + $0x8] sm:$0xff]
    %v2280 = vld [vmem:[#allocation11 + $0x10] sm:$0xff]
    %v2281 = vld [vmem:[#allocation11 + $0x18] sm:$0xff]
    %v2282 = vld [vmem:[#allocation11 + $0x20] sm:$0xff]
    %v2283 = vld [vmem:[#allocation11 + $0x28] sm:$0xff]
    %v2284 = vld [vmem:[#allocation11 + $0x30] sm:$0xff]
    %v2285 = vld [vmem:[#allocation11 + $0x38] sm:$0xff]
    %v2286 = vld [vmem:[#allocation13] sm:$0x3]
    %v2288 = vlaneseq
    %v2289 = vshrl.u32 %v2288, 7
    %v2290 = vsub.s32 0, %v2289
    %v2291 = vrot.slane %v2286, %v2290
    %v2292 = vlaneseq
    %v2293 = vshrl.u32 %v2292, 7
    %v2294 = vsub.s32 1, %v2293
    %v2295 = vrot.slane %v2286, %v2294
    %v2306 = vunpack.c.l.b16 %v2278
    %v2307 = vunpack.c.h.b16 %v2278
    %v2308 = vunpack.c.l.b16 %v2279
    %v2309 = vunpack.c.h.b16 %v2279
    %v2310 = vunpack.c.l.b16 %v2280
    %v2311 = vunpack.c.h.b16 %v2280
    %v2312 = vunpack.c.l.b16 %v2281
    %v2313 = vunpack.c.h.b16 %v2281
    %v2314 = vunpack.c.l.b16 %v2282
    %v2315 = vunpack.c.h.b16 %v2282
    %v2316 = vunpack.c.l.b16 %v2283
    %v2317 = vunpack.c.h.b16 %v2283
    %v2318 = vunpack.c.l.b16 %v2284
    %v2319 = vunpack.c.h.b16 %v2284
    %v2320 = vunpack.c.l.b16 %v2285
    %v2321 = vunpack.c.h.b16 %v2285
    %v2322 = vpack.c.b16 %v2308, %v2306
    %v2323 = vpack.c.b16 %v2309, %v2307
    %v2324 = vpack.c.b16 %v2312, %v2310
    %v2325 = vpack.c.b16 %v2313, %v2311
    %v2326 = vpack.c.b16 %v2316, %v2314
    %v2327 = vpack.c.b16 %v2317, %v2315
    %v2328 = vpack.c.b16 %v2320, %v2318
    %v2329 = vpack.c.b16 %v2321, %v2319
    %v2339 = vsel %vm385, %v2277, 0
    %2341 = vmatprep.subr.bf16.mxu0 0
    %2342 = vmatpush1.bf16.msra.mxu0 0
    %2343 = vmatprep.subr.bf16.mxu0 0
    %2344 = vmatpush1.bf16.msra.mxu0 0
    %2345 = vmatprep.subr.bf16.mxu0 0
    %2346 = vmatpush1.bf16.msra.mxu0 0
    %2347 = vmatprep.subr.bf16.mxu0 0
    %2348 = vmatpush1.bf16.msra.mxu0 0
    %2349 = vmatprep.subr.bf16.mxu0 %v2329
    %2350 = vmatpush1.bf16.msra.mxu0 %v2328
    %2351 = vmatprep.subr.bf16.mxu0 %v2327
    %2352 = vmatpush1.bf16.msra.mxu0 %v2326
    %2353 = vmatprep.subr.bf16.mxu0 %v2325
    %2354 = vmatpush1.bf16.msra.mxu0 %v2324
    %2355 = vmatprep.subr.bf16.mxu0 %v2323
    %2356 = vmatpush1.bf16.msra.mxu0 %v2322
    %2357 = vmatprep.subr.bf16.mxu0 0
    %2358 = vmatpush2.bf16.msra.mxu0 0
    %2359 = vmatprep.subr.bf16.mxu0 0
    %2360 = vmatpush2.bf16.msra.mxu0 0
    %2361 = vmatprep.subr.bf16.mxu0 0
    %2362 = vmatpush2.bf16.msra.mxu0 0
    %2363 = vmatprep.subr.bf16.mxu0 0
    %2364 = vmatpush2.bf16.msra.mxu0 0
    %2365 = vmatprep.subr.bf16.mxu0 0
    %2366 = vmatpush2.bf16.msra.mxu0 0
    %2367 = vmatprep.subr.bf16.mxu0 0
    %2368 = vmatpush2.bf16.msra.mxu0 0
    %2369 = vmatprep.subr.bf16.mxu0 0
    %2370 = vmatpush2.bf16.msra.mxu0 0
    %2371 = vmatprep.subr.bf16.mxu0 0
    %2372 = vmatpush2.bf16.msra.mxu0 0
    %2373 = vmatprep.mubr.bf16.mxu0 0
    %2374 = vmatmul.mubr.bf16.gmra.mxu0 %v2339
    %v2375 = vpop.f32.mrf.mxu0
    %v2376 = vadd.f32 %v2291, %v2375
    %v2377 = vpop.f32.mrf.mxu0
    %v2378 = vadd.f32 %v2295, %v2377
    %v2379 = vpop.f32.mrf.mxu0
    %v2380 = vadd.f32 %v2291, %v2379
    %v2381 = vpop.f32.mrf.mxu0
    %v2382 = vadd.f32 %v2295, %v2381
    %2383 = vdwg.mxu0
    %v2384 = vld [vmem:[#allocation14] sm:$0xff]
    %v2385 = vld [vmem:[#allocation14 + $0x8] sm:$0xff]
    %v2386 = vld [vmem:[#allocation14 + $0x10] sm:$0xff]
    %v2387 = vld [vmem:[#allocation14 + $0x18] sm:$0xff]
    %v2388 = vld [vmem:[#allocation14 + $0x20] sm:$0xff]
    %v2389 = vld [vmem:[#allocation14 + $0x28] sm:$0xff]
    %v2390 = vld [vmem:[#allocation14 + $0x30] sm:$0xff]
    %v2391 = vld [vmem:[#allocation14 + $0x38] sm:$0xff]
    %v2392 = vld [vmem:[#allocation16] sm:$0x3]
    %v2397 = vrot.slane %v2380, 7
    %v2398 = vsel %vm764, %v2397, %v2376
    %v2399 = vrot.slane %v2382, 7
    %v2400 = vsel %vm764, %v2399, %v2378
    %v2403 = vrot.slane %v2376, 7
    %v2404 = vrot.slane %v2380, 6
    %v2405 = vsel %vm764, %v2404, %v2403
    %v2406 = vrot.slane %v2378, 7
    %v2407 = vrot.slane %v2382, 6
    %v2408 = vsel %vm764, %v2407, %v2406
    %v2411 = vsel %vm1147, %v2398, %v2405
    %v2412 = vsel %vm1148, %v2400, %v2408
    %v2414 = vlaneseq
    %v2415 = vshrl.u32 %v2414, 7
    %v2416 = vsub.s32 0, %v2415
    %v2417 = vrot.slane %v2392, %v2416
    %v2418 = vlaneseq
    %v2419 = vshrl.u32 %v2418, 7
    %v2420 = vsub.s32 1, %v2419
    %v2421 = vrot.slane %v2392, %v2420
    %v2432 = vunpack.c.l.b16 %v2384
    %v2433 = vunpack.c.h.b16 %v2384
    %v2434 = vunpack.c.l.b16 %v2385
    %v2435 = vunpack.c.h.b16 %v2385
    %v2436 = vunpack.c.l.b16 %v2386
    %v2437 = vunpack.c.h.b16 %v2386
    %v2438 = vunpack.c.l.b16 %v2387
    %v2439 = vunpack.c.h.b16 %v2387
    %v2440 = vunpack.c.l.b16 %v2388
    %v2441 = vunpack.c.h.b16 %v2388
    %v2442 = vunpack.c.l.b16 %v2389
    %v2443 = vunpack.c.h.b16 %v2389
    %v2444 = vunpack.c.l.b16 %v2390
    %v2445 = vunpack.c.h.b16 %v2390
    %v2446 = vunpack.c.l.b16 %v2391
    %v2447 = vunpack.c.h.b16 %v2391
    %v2448 = vpack.c.b16 %v2434, %v2432
    %v2449 = vpack.c.b16 %v2435, %v2433
    %v2450 = vpack.c.b16 %v2438, %v2436
    %v2451 = vpack.c.b16 %v2439, %v2437
    %v2452 = vpack.c.b16 %v2442, %v2440
    %v2453 = vpack.c.b16 %v2443, %v2441
    %v2454 = vpack.c.b16 %v2446, %v2444
    %v2455 = vpack.c.b16 %v2447, %v2445
    %2464 = vmatprep.subr.bf16.mxu0 0
    %2465 = vmatpush1.bf16.msra.mxu0 0
    %2466 = vmatprep.subr.bf16.mxu0 0
    %2467 = vmatpush1.bf16.msra.mxu0 0
    %2468 = vmatprep.subr.bf16.mxu0 0
    %2469 = vmatpush1.bf16.msra.mxu0 0
    %2470 = vmatprep.subr.bf16.mxu0 0
    %2471 = vmatpush1.bf16.msra.mxu0 0
    %2472 = vmatprep.subr.bf16.mxu0 %v2455
    %2473 = vmatpush1.bf16.msra.mxu0 %v2454
    %2474 = vmatprep.subr.bf16.mxu0 %v2453
    %2475 = vmatpush1.bf16.msra.mxu0 %v2452
    %2476 = vmatprep.subr.bf16.mxu0 %v2451
    %2477 = vmatpush1.bf16.msra.mxu0 %v2450
    %2478 = vmatprep.subr.bf16.mxu0 %v2449
    %2479 = vmatpush1.bf16.msra.mxu0 %v2448
    %2480 = vmatprep.subr.bf16.mxu0 0
    %2481 = vmatpush2.bf16.msra.mxu0 0
    %2482 = vmatprep.subr.bf16.mxu0 0
    %2483 = vmatpush2.bf16.msra.mxu0 0
    %2484 = vmatprep.subr.bf16.mxu0 0
    %2485 = vmatpush2.bf16.msra.mxu0 0
    %2486 = vmatprep.subr.bf16.mxu0 0
    %2487 = vmatpush2.bf16.msra.mxu0 0
    %2488 = vmatprep.subr.bf16.mxu0 0
    %2489 = vmatpush2.bf16.msra.mxu0 0
    %2490 = vmatprep.subr.bf16.mxu0 0
    %2491 = vmatpush2.bf16.msra.mxu0 0
    %2492 = vmatprep.subr.bf16.mxu0 0
    %2493 = vmatpush2.bf16.msra.mxu0 0
    %2494 = vmatprep.subr.bf16.mxu0 0
    %2495 = vmatpush2.bf16.msra.mxu0 0
    %2496 = vmatprep.mubr.bf16.mxu0 0
    %2497 = vmatmul.mubr.bf16.gmra.mxu0 %v1383
    %v2498 = vpop.f32.mrf.mxu0
    %v2499 = vadd.f32 %v2417, %v2498
    %v2500 = vpop.f32.mrf.mxu0
    %v2501 = vadd.f32 %v2421, %v2500
    %v2502 = vpop.f32.mrf.mxu0
    %v2503 = vpop.f32.mrf.mxu0
    %2504 = vdwg.mxu0
    %v2505 = vadd.f32 %v2411, %v2499
    %v2506 = vxor.u32 %v2505, 2147483648
    %v2507 = vmul.f32 %v2506, 1.442695
    %v2508 = vpow.pop %v2507
    %v2509 = vadd.f32 %v2508, 1.0
    %v2510 = vrcp.pop %v2509
    %v2511 = vmul.f32 1.0, %v2510
    %v2512 = vmul.f32 %v2511, %v2501
    %v2513 = vadd.f32 %v2412, %v2512
    %v2514 = vtanh.pop %v2513
    %v2515 = vsub.f32 1.0, %v2511
    %2517 = vrot.lane.b32.xlu0 %v2514, 64
    %v2518 = vpop.permute.xlu0 %2517
    %v2520 = vmul.f32 %v2515, %v2518
    %v2521 = vmul.f32 %v2511, 0.0
    %v2522 = vadd.f32 %v2520, %v2521
    %v2523 = vrot.slane %v2376, 1
    %v2524 = vsel %vm764, %v2380, %v2523
    %v2525 = vrot.slane %v2378, 1
    %v2526 = vsel %vm764, %v2382, %v2525
    %v2529 = vrot.slane %v2376, 6
    %v2530 = vrot.slane %v2380, 5
    %v2531 = vsel %vm764, %v2530, %v2529
    %v2532 = vrot.slane %v2378, 6
    %v2533 = vrot.slane %v2382, 5
    %v2534 = vsel %vm764, %v2533, %v2532
    %v2537 = vsel %vm1147, %v2524, %v2531
    %v2538 = vsel %vm1148, %v2526, %v2534
    %v2539 = vpack.c.bf16 %v2522, %v2522
    %2541 = vrot.lane.b32.xlu0 %v2539, 64
    %v2542 = vpop.permute.xlu0 %2541
    %v2544 = vsel %vm385, %v2542, 0
    %2546 = vmatprep.subr.bf16.mxu0 0
    %2547 = vmatpush1.bf16.msra.mxu0 0
    %2548 = vmatprep.subr.bf16.mxu0 0
    %2549 = vmatpush1.bf16.msra.mxu0 0
    %2550 = vmatprep.subr.bf16.mxu0 0
    %2551 = vmatpush1.bf16.msra.mxu0 0
    %2552 = vmatprep.subr.bf16.mxu0 0
    %2553 = vmatpush1.bf16.msra.mxu0 0
    %2554 = vmatprep.subr.bf16.mxu0 %v2455
    %2555 = vmatpush1.bf16.msra.mxu0 %v2454
    %2556 = vmatprep.subr.bf16.mxu0 %v2453
    %2557 = vmatpush1.bf16.msra.mxu0 %v2452
    %2558 = vmatprep.subr.bf16.mxu0 %v2451
    %2559 = vmatpush1.bf16.msra.mxu0 %v2450
    %2560 = vmatprep.subr.bf16.mxu0 %v2449
    %2561 = vmatpush1.bf16.msra.mxu0 %v2448
    %2562 = vmatprep.subr.bf16.mxu0 0
    %2563 = vmatpush2.bf16.msra.mxu0 0
    %2564 = vmatprep.subr.bf16.mxu0 0
    %2565 = vmatpush2.bf16.msra.mxu0 0
    %2566 = vmatprep.subr.bf16.mxu0 0
    %2567 = vmatpush2.bf16.msra.mxu0 0
    %2568 = vmatprep.subr.bf16.mxu0 0
    %2569 = vmatpush2.bf16.msra.mxu0 0
    %2570 = vmatprep.subr.bf16.mxu0 0
    %2571 = vmatpush2.bf16.msra.mxu0 0
    %2572 = vmatprep.subr.bf16.mxu0 0
    %2573 = vmatpush2.bf16.msra.mxu0 0
    %2574 = vmatprep.subr.bf16.mxu0 0
    %2575 = vmatpush2.bf16.msra.mxu0 0
    %2576 = vmatprep.subr.bf16.mxu0 0
    %2577 = vmatpush2.bf16.msra.mxu0 0
    %2578 = vmatprep.mubr.bf16.mxu0 0
    %2579 = vmatmul.mubr.bf16.gmra.mxu0 %v2544
    %v2580 = vpop.f32.mrf.mxu0
    %v2581 = vadd.f32 %v2417, %v2580
    %v2582 = vpop.f32.mrf.mxu0
    %v2583 = vadd.f32 %v2421, %v2582
    %v2584 = vpop.f32.mrf.mxu0
    %v2585 = vpop.f32.mrf.mxu0
    %2586 = vdwg.mxu0
    %v2587 = vadd.f32 %v2537, %v2581
    %v2588 = vxor.u32 %v2587, 2147483648
    %v2589 = vmul.f32 %v2588, 1.442695
    %v2590 = vpow.pop %v2589
    %v2591 = vadd.f32 %v2590, 1.0
    %v2592 = vrcp.pop %v2591
    %v2593 = vmul.f32 1.0, %v2592
    %v2594 = vmul.f32 %v2593, %v2583
    %v2595 = vadd.f32 %v2538, %v2594
    %v2596 = vtanh.pop %v2595
    %v2597 = vsub.f32 1.0, %v2593
    %2599 = vrot.lane.b32.xlu0 %v2596, 64
    %v2600 = vpop.permute.xlu0 %2599
    %v2602 = vmul.f32 %v2597, %v2600
    %v2603 = vmul.f32 %v2593, %v2522
    %v2604 = vadd.f32 %v2602, %v2603
    %v2605 = vrot.slane %v2376, 2
    %v2606 = vrot.slane %v2380, 1
    %v2607 = vsel %vm764, %v2606, %v2605
    %v2608 = vrot.slane %v2378, 2
    %v2609 = vrot.slane %v2382, 1
    %v2610 = vsel %vm764, %v2609, %v2608
    %v2613 = vrot.slane %v2376, 5
    %v2614 = vrot.slane %v2380, 4
    %v2615 = vsel %vm764, %v2614, %v2613
    %v2616 = vrot.slane %v2378, 5
    %v2617 = vrot.slane %v2382, 4
    %v2618 = vsel %vm764, %v2617, %v2616
    %v2621 = vsel %vm1147, %v2607, %v2615
    %v2622 = vsel %vm1148, %v2610, %v2618
    %v2623 = vpack.c.bf16 %v2604, %v2604
    %2625 = vrot.lane.b32.xlu0 %v2623, 64
    %v2626 = vpop.permute.xlu0 %2625
    %v2628 = vsel %vm385, %v2626, 0
    %2630 = vmatprep.subr.bf16.mxu0 0
    %2631 = vmatpush1.bf16.msra.mxu0 0
    %2632 = vmatprep.subr.bf16.mxu0 0
    %2633 = vmatpush1.bf16.msra.mxu0 0
    %2634 = vmatprep.subr.bf16.mxu0 0
    %2635 = vmatpush1.bf16.msra.mxu0 0
    %2636 = vmatprep.subr.bf16.mxu0 0
    %2637 = vmatpush1.bf16.msra.mxu0 0
    %2638 = vmatprep.subr.bf16.mxu0 %v2455
    %2639 = vmatpush1.bf16.msra.mxu0 %v2454
    %2640 = vmatprep.subr.bf16.mxu0 %v2453
    %2641 = vmatpush1.bf16.msra.mxu0 %v2452
    %2642 = vmatprep.subr.bf16.mxu0 %v2451
    %2643 = vmatpush1.bf16.msra.mxu0 %v2450
    %2644 = vmatprep.subr.bf16.mxu0 %v2449
    %2645 = vmatpush1.bf16.msra.mxu0 %v2448
    %2646 = vmatprep.subr.bf16.mxu0 0
    %2647 = vmatpush2.bf16.msra.mxu0 0
    %2648 = vmatprep.subr.bf16.mxu0 0
    %2649 = vmatpush2.bf16.msra.mxu0 0
    %2650 = vmatprep.subr.bf16.mxu0 0
    %2651 = vmatpush2.bf16.msra.mxu0 0
    %2652 = vmatprep.subr.bf16.mxu0 0
    %2653 = vmatpush2.bf16.msra.mxu0 0
    %2654 = vmatprep.subr.bf16.mxu0 0
    %2655 = vmatpush2.bf16.msra.mxu0 0
    %2656 = vmatprep.subr.bf16.mxu0 0
    %2657 = vmatpush2.bf16.msra.mxu0 0
    %2658 = vmatprep.subr.bf16.mxu0 0
    %2659 = vmatpush2.bf16.msra.mxu0 0
    %2660 = vmatprep.subr.bf16.mxu0 0
    %2661 = vmatpush2.bf16.msra.mxu0 0
    %2662 = vmatprep.mubr.bf16.mxu0 0
    %2663 = vmatmul.mubr.bf16.gmra.mxu0 %v2628
    %v2664 = vpop.f32.mrf.mxu0
    %v2665 = vadd.f32 %v2417, %v2664
    %v2666 = vpop.f32.mrf.mxu0
    %v2667 = vadd.f32 %v2421, %v2666
    %v2668 = vpop.f32.mrf.mxu0
    %v2669 = vpop.f32.mrf.mxu0
    %2670 = vdwg.mxu0
    %v2671 = vadd.f32 %v2621, %v2665
    %v2672 = vxor.u32 %v2671, 2147483648
    %v2673 = vmul.f32 %v2672, 1.442695
    %v2674 = vpow.pop %v2673
    %v2675 = vadd.f32 %v2674, 1.0
    %v2676 = vrcp.pop %v2675
    %v2677 = vmul.f32 1.0, %v2676
    %v2678 = vmul.f32 %v2677, %v2667
    %v2679 = vadd.f32 %v2622, %v2678
    %v2680 = vtanh.pop %v2679
    %v2681 = vsub.f32 1.0, %v2677
    %2683 = vrot.lane.b32.xlu0 %v2680, 64
    %v2684 = vpop.permute.xlu0 %2683
    %v2686 = vmul.f32 %v2681, %v2684
    %v2687 = vmul.f32 %v2677, %v2604
    %v2688 = vadd.f32 %v2686, %v2687
    %v2689 = vrot.slane %v2376, 3
    %v2690 = vrot.slane %v2380, 2
    %v2691 = vsel %vm764, %v2690, %v2689
    %v2692 = vrot.slane %v2378, 3
    %v2693 = vrot.slane %v2382, 2
    %v2694 = vsel %vm764, %v2693, %v2692
    %v2697 = vrot.slane %v2376, 4
    %v2698 = vrot.slane %v2380, 3
    %v2699 = vsel %vm764, %v2698, %v2697
    %v2700 = vrot.slane %v2378, 4
    %v2701 = vrot.slane %v2382, 3
    %v2702 = vsel %vm764, %v2701, %v2700
    %v2705 = vsel %vm1147, %v2691, %v2699
    %v2706 = vsel %vm1148, %v2694, %v2702
    %v2707 = vpack.c.bf16 %v2688, %v2688
    %2709 = vrot.lane.b32.xlu0 %v2707, 64
    %v2710 = vpop.permute.xlu0 %2709
    %v2712 = vsel %vm385, %v2710, 0
    %2714 = vmatprep.subr.bf16.mxu0 0
    %2715 = vmatpush1.bf16.msra.mxu0 0
    %2716 = vmatprep.subr.bf16.mxu0 0
    %2717 = vmatpush1.bf16.msra.mxu0 0
    %2718 = vmatprep.subr.bf16.mxu0 0
    %2719 = vmatpush1.bf16.msra.mxu0 0
    %2720 = vmatprep.subr.bf16.mxu0 0
    %2721 = vmatpush1.bf16.msra.mxu0 0
    %2722 = vmatprep.subr.bf16.mxu0 %v2455
    %2723 = vmatpush1.bf16.msra.mxu0 %v2454
    %2724 = vmatprep.subr.bf16.mxu0 %v2453
    %2725 = vmatpush1.bf16.msra.mxu0 %v2452
    %2726 = vmatprep.subr.bf16.mxu0 %v2451
    %2727 = vmatpush1.bf16.msra.mxu0 %v2450
    %2728 = vmatprep.subr.bf16.mxu0 %v2449
    %2729 = vmatpush1.bf16.msra.mxu0 %v2448
    %2730 = vmatprep.subr.bf16.mxu0 0
    %2731 = vmatpush2.bf16.msra.mxu0 0
    %2732 = vmatprep.subr.bf16.mxu0 0
    %2733 = vmatpush2.bf16.msra.mxu0 0
    %2734 = vmatprep.subr.bf16.mxu0 0
    %2735 = vmatpush2.bf16.msra.mxu0 0
    %2736 = vmatprep.subr.bf16.mxu0 0
    %2737 = vmatpush2.bf16.msra.mxu0 0
    %2738 = vmatprep.subr.bf16.mxu0 0
    %2739 = vmatpush2.bf16.msra.mxu0 0
    %2740 = vmatprep.subr.bf16.mxu0 0
    %2741 = vmatpush2.bf16.msra.mxu0 0
    %2742 = vmatprep.subr.bf16.mxu0 0
    %2743 = vmatpush2.bf16.msra.mxu0 0
    %2744 = vmatprep.subr.bf16.mxu0 0
    %2745 = vmatpush2.bf16.msra.mxu0 0
    %2746 = vmatprep.mubr.bf16.mxu0 0
    %2747 = vmatmul.mubr.bf16.gmra.mxu0 %v2712
    %v2748 = vpop.f32.mrf.mxu0
    %v2749 = vadd.f32 %v2417, %v2748
    %v2750 = vpop.f32.mrf.mxu0
    %v2751 = vadd.f32 %v2421, %v2750
    %v2752 = vpop.f32.mrf.mxu0
    %v2753 = vpop.f32.mrf.mxu0
    %2754 = vdwg.mxu0
    %v2755 = vadd.f32 %v2705, %v2749
    %v2756 = vxor.u32 %v2755, 2147483648
    %v2757 = vmul.f32 %v2756, 1.442695
    %v2758 = vpow.pop %v2757
    %v2759 = vadd.f32 %v2758, 1.0
    %v2760 = vrcp.pop %v2759
    %v2761 = vmul.f32 1.0, %v2760
    %v2762 = vmul.f32 %v2761, %v2751
    %v2763 = vadd.f32 %v2706, %v2762
    %v2764 = vtanh.pop %v2763
    %v2765 = vsub.f32 1.0, %v2761
    %2767 = vrot.lane.b32.xlu0 %v2764, 64
    %v2768 = vpop.permute.xlu0 %2767
    %v2770 = vmul.f32 %v2765, %v2768
    %v2771 = vmul.f32 %v2761, %v2688
    %v2772 = vadd.f32 %v2770, %v2771
    %v2773 = vsel %vm1147, %v2699, %v2691
    %v2774 = vsel %vm1148, %v2702, %v2694
    %v2775 = vpack.c.bf16 %v2772, %v2772
    %2777 = vrot.lane.b32.xlu0 %v2775, 64
    %v2778 = vpop.permute.xlu0 %2777
    %v2780 = vsel %vm385, %v2778, 0
    %2782 = vmatprep.subr.bf16.mxu0 0
    %2783 = vmatpush1.bf16.msra.mxu0 0
    %2784 = vmatprep.subr.bf16.mxu0 0
    %2785 = vmatpush1.bf16.msra.mxu0 0
    %2786 = vmatprep.subr.bf16.mxu0 0
    %2787 = vmatpush1.bf16.msra.mxu0 0
    %2788 = vmatprep.subr.bf16.mxu0 0
    %2789 = vmatpush1.bf16.msra.mxu0 0
    %2790 = vmatprep.subr.bf16.mxu0 %v2455
    %2791 = vmatpush1.bf16.msra.mxu0 %v2454
    %2792 = vmatprep.subr.bf16.mxu0 %v2453
    %2793 = vmatpush1.bf16.msra.mxu0 %v2452
    %2794 = vmatprep.subr.bf16.mxu0 %v2451
    %2795 = vmatpush1.bf16.msra.mxu0 %v2450
    %2796 = vmatprep.subr.bf16.mxu0 %v2449
    %2797 = vmatpush1.bf16.msra.mxu0 %v2448
    %2798 = vmatprep.subr.bf16.mxu0 0
    %2799 = vmatpush2.bf16.msra.mxu0 0
    %2800 = vmatprep.subr.bf16.mxu0 0
    %2801 = vmatpush2.bf16.msra.mxu0 0
    %2802 = vmatprep.subr.bf16.mxu0 0
    %2803 = vmatpush2.bf16.msra.mxu0 0
    %2804 = vmatprep.subr.bf16.mxu0 0
    %2805 = vmatpush2.bf16.msra.mxu0 0
    %2806 = vmatprep.subr.bf16.mxu0 0
    %2807 = vmatpush2.bf16.msra.mxu0 0
    %2808 = vmatprep.subr.bf16.mxu0 0
    %2809 = vmatpush2.bf16.msra.mxu0 0
    %2810 = vmatprep.subr.bf16.mxu0 0
    %2811 = vmatpush2.bf16.msra.mxu0 0
    %2812 = vmatprep.subr.bf16.mxu0 0
    %2813 = vmatpush2.bf16.msra.mxu0 0
    %2814 = vmatprep.mubr.bf16.mxu0 0
    %2815 = vmatmul.mubr.bf16.gmra.mxu0 %v2780
    %v2816 = vpop.f32.mrf.mxu0
    %v2817 = vadd.f32 %v2417, %v2816
    %v2818 = vpop.f32.mrf.mxu0
    %v2819 = vadd.f32 %v2421, %v2818
    %v2820 = vpop.f32.mrf.mxu0
    %v2821 = vpop.f32.mrf.mxu0
    %2822 = vdwg.mxu0
    %v2823 = vadd.f32 %v2773, %v2817
    %v2824 = vxor.u32 %v2823, 2147483648
    %v2825 = vmul.f32 %v2824, 1.442695
    %v2826 = vpow.pop %v2825
    %v2827 = vadd.f32 %v2826, 1.0
    %v2828 = vrcp.pop %v2827
    %v2829 = vmul.f32 1.0, %v2828
    %v2830 = vmul.f32 %v2829, %v2819
    %v2831 = vadd.f32 %v2774, %v2830
    %v2832 = vtanh.pop %v2831
    %v2833 = vsub.f32 1.0, %v2829
    %2835 = vrot.lane.b32.xlu0 %v2832, 64
    %v2836 = vpop.permute.xlu0 %2835
    %v2838 = vmul.f32 %v2833, %v2836
    %v2839 = vmul.f32 %v2829, %v2772
    %v2840 = vadd.f32 %v2838, %v2839
    %v2841 = vsel %vm1147, %v2615, %v2607
    %v2842 = vsel %vm1148, %v2618, %v2610
    %v2843 = vpack.c.bf16 %v2840, %v2840
    %2845 = vrot.lane.b32.xlu0 %v2843, 64
    %v2846 = vpop.permute.xlu0 %2845
    %v2848 = vsel %vm385, %v2846, 0
    %2850 = vmatprep.subr.bf16.mxu0 0
    %2851 = vmatpush1.bf16.msra.mxu0 0
    %2852 = vmatprep.subr.bf16.mxu0 0
    %2853 = vmatpush1.bf16.msra.mxu0 0
    %2854 = vmatprep.subr.bf16.mxu0 0
    %2855 = vmatpush1.bf16.msra.mxu0 0
    %2856 = vmatprep.subr.bf16.mxu0 0
    %2857 = vmatpush1.bf16.msra.mxu0 0
    %2858 = vmatprep.subr.bf16.mxu0 %v2455
    %2859 = vmatpush1.bf16.msra.mxu0 %v2454
    %2860 = vmatprep.subr.bf16.mxu0 %v2453
    %2861 = vmatpush1.bf16.msra.mxu0 %v2452
    %2862 = vmatprep.subr.bf16.mxu0 %v2451
    %2863 = vmatpush1.bf16.msra.mxu0 %v2450
    %2864 = vmatprep.subr.bf16.mxu0 %v2449
    %2865 = vmatpush1.bf16.msra.mxu0 %v2448
    %2866 = vmatprep.subr.bf16.mxu0 0
    %2867 = vmatpush2.bf16.msra.mxu0 0
    %2868 = vmatprep.subr.bf16.mxu0 0
    %2869 = vmatpush2.bf16.msra.mxu0 0
    %2870 = vmatprep.subr.bf16.mxu0 0
    %2871 = vmatpush2.bf16.msra.mxu0 0
    %2872 = vmatprep.subr.bf16.mxu0 0
    %2873 = vmatpush2.bf16.msra.mxu0 0
    %2874 = vmatprep.subr.bf16.mxu0 0
    %2875 = vmatpush2.bf16.msra.mxu0 0
    %2876 = vmatprep.subr.bf16.mxu0 0
    %2877 = vmatpush2.bf16.msra.mxu0 0
    %2878 = vmatprep.subr.bf16.mxu0 0
    %2879 = vmatpush2.bf16.msra.mxu0 0
    %2880 = vmatprep.subr.bf16.mxu0 0
    %2881 = vmatpush2.bf16.msra.mxu0 0
    %2882 = vmatprep.mubr.bf16.mxu0 0
    %2883 = vmatmul.mubr.bf16.gmra.mxu0 %v2848
    %v2884 = vpop.f32.mrf.mxu0
    %v2885 = vadd.f32 %v2417, %v2884
    %v2886 = vpop.f32.mrf.mxu0
    %v2887 = vadd.f32 %v2421, %v2886
    %v2888 = vpop.f32.mrf.mxu0
    %v2889 = vpop.f32.mrf.mxu0
    %2890 = vdwg.mxu0
    %v2891 = vadd.f32 %v2841, %v2885
    %v2892 = vxor.u32 %v2891, 2147483648
    %v2893 = vmul.f32 %v2892, 1.442695
    %v2894 = vpow.pop %v2893
    %v2895 = vadd.f32 %v2894, 1.0
    %v2896 = vrcp.pop %v2895
    %v2897 = vmul.f32 1.0, %v2896
    %v2898 = vmul.f32 %v2897, %v2887
    %v2899 = vadd.f32 %v2842, %v2898
    %v2900 = vtanh.pop %v2899
    %v2901 = vsub.f32 1.0, %v2897
    %2903 = vrot.lane.b32.xlu0 %v2900, 64
    %v2904 = vpop.permute.xlu0 %2903
    %v2906 = vmul.f32 %v2901, %v2904
    %v2907 = vmul.f32 %v2897, %v2840
    %v2908 = vadd.f32 %v2906, %v2907
    %v2909 = vsel %vm1147, %v2531, %v2524
    %v2910 = vsel %vm1148, %v2534, %v2526
    %v2911 = vpack.c.bf16 %v2908, %v2908
    %2913 = vrot.lane.b32.xlu0 %v2911, 64
    %v2914 = vpop.permute.xlu0 %2913
    %v2916 = vsel %vm385, %v2914, 0
    %2918 = vmatprep.subr.bf16.mxu0 0
    %2919 = vmatpush1.bf16.msra.mxu0 0
    %2920 = vmatprep.subr.bf16.mxu0 0
    %2921 = vmatpush1.bf16.msra.mxu0 0
    %2922 = vmatprep.subr.bf16.mxu0 0
    %2923 = vmatpush1.bf16.msra.mxu0 0
    %2924 = vmatprep.subr.bf16.mxu0 0
    %2925 = vmatpush1.bf16.msra.mxu0 0
    %2926 = vmatprep.subr.bf16.mxu0 %v2455
    %2927 = vmatpush1.bf16.msra.mxu0 %v2454
    %2928 = vmatprep.subr.bf16.mxu0 %v2453
    %2929 = vmatpush1.bf16.msra.mxu0 %v2452
    %2930 = vmatprep.subr.bf16.mxu0 %v2451
    %2931 = vmatpush1.bf16.msra.mxu0 %v2450
    %2932 = vmatprep.subr.bf16.mxu0 %v2449
    %2933 = vmatpush1.bf16.msra.mxu0 %v2448
    %2934 = vmatprep.subr.bf16.mxu0 0
    %2935 = vmatpush2.bf16.msra.mxu0 0
    %2936 = vmatprep.subr.bf16.mxu0 0
    %2937 = vmatpush2.bf16.msra.mxu0 0
    %2938 = vmatprep.subr.bf16.mxu0 0
    %2939 = vmatpush2.bf16.msra.mxu0 0
    %2940 = vmatprep.subr.bf16.mxu0 0
    %2941 = vmatpush2.bf16.msra.mxu0 0
    %2942 = vmatprep.subr.bf16.mxu0 0
    %2943 = vmatpush2.bf16.msra.mxu0 0
    %2944 = vmatprep.subr.bf16.mxu0 0
    %2945 = vmatpush2.bf16.msra.mxu0 0
    %2946 = vmatprep.subr.bf16.mxu0 0
    %2947 = vmatpush2.bf16.msra.mxu0 0
    %2948 = vmatprep.subr.bf16.mxu0 0
    %2949 = vmatpush2.bf16.msra.mxu0 0
    %2950 = vmatprep.mubr.bf16.mxu0 0
    %2951 = vmatmul.mubr.bf16.gmra.mxu0 %v2916
    %v2952 = vpop.f32.mrf.mxu0
    %v2953 = vadd.f32 %v2417, %v2952
    %v2954 = vpop.f32.mrf.mxu0
    %v2955 = vadd.f32 %v2421, %v2954
    %v2956 = vpop.f32.mrf.mxu0
    %v2957 = vpop.f32.mrf.mxu0
    %2958 = vdwg.mxu0
    %v2959 = vadd.f32 %v2909, %v2953
    %v2960 = vxor.u32 %v2959, 2147483648
    %v2961 = vmul.f32 %v2960, 1.442695
    %v2962 = vpow.pop %v2961
    %v2963 = vadd.f32 %v2962, 1.0
    %v2964 = vrcp.pop %v2963
    %v2965 = vmul.f32 1.0, %v2964
    %v2966 = vmul.f32 %v2965, %v2955
    %v2967 = vadd.f32 %v2910, %v2966
    %v2968 = vtanh.pop %v2967
    %v2969 = vsub.f32 1.0, %v2965
    %2971 = vrot.lane.b32.xlu0 %v2968, 64
    %v2972 = vpop.permute.xlu0 %2971
    %v2974 = vmul.f32 %v2969, %v2972
    %v2975 = vmul.f32 %v2965, %v2908
    %v2976 = vadd.f32 %v2974, %v2975
    %v2977 = vsel %vm1147, %v2405, %v2398
    %v2978 = vsel %vm1148, %v2408, %v2400
    %v2979 = vpack.c.bf16 %v2976, %v2976
    %2981 = vrot.lane.b32.xlu0 %v2979, 64
    %v2982 = vpop.permute.xlu0 %2981
    %v2984 = vsel %vm385, %v2982, 0
    %2986 = vmatprep.subr.bf16.mxu0 0
    %2987 = vmatpush1.bf16.msra.mxu0 0
    %2988 = vmatprep.subr.bf16.mxu0 0
    %2989 = vmatpush1.bf16.msra.mxu0 0
    %2990 = vmatprep.subr.bf16.mxu0 0
    %2991 = vmatpush1.bf16.msra.mxu0 0
    %2992 = vmatprep.subr.bf16.mxu0 0
    %2993 = vmatpush1.bf16.msra.mxu0 0
    %2994 = vmatprep.subr.bf16.mxu0 %v2455
    %2995 = vmatpush1.bf16.msra.mxu0 %v2454
    %2996 = vmatprep.subr.bf16.mxu0 %v2453
    %2997 = vmatpush1.bf16.msra.mxu0 %v2452
    %2998 = vmatprep.subr.bf16.mxu0 %v2451
    %2999 = vmatpush1.bf16.msra.mxu0 %v2450
    %3000 = vmatprep.subr.bf16.mxu0 %v2449
    %3001 = vmatpush1.bf16.msra.mxu0 %v2448
    %3002 = vmatprep.subr.bf16.mxu0 0
    %3003 = vmatpush2.bf16.msra.mxu0 0
    %3004 = vmatprep.subr.bf16.mxu0 0
    %3005 = vmatpush2.bf16.msra.mxu0 0
    %3006 = vmatprep.subr.bf16.mxu0 0
    %3007 = vmatpush2.bf16.msra.mxu0 0
    %3008 = vmatprep.subr.bf16.mxu0 0
    %3009 = vmatpush2.bf16.msra.mxu0 0
    %3010 = vmatprep.subr.bf16.mxu0 0
    %3011 = vmatpush2.bf16.msra.mxu0 0
    %3012 = vmatprep.subr.bf16.mxu0 0
    %3013 = vmatpush2.bf16.msra.mxu0 0
    %3014 = vmatprep.subr.bf16.mxu0 0
    %3015 = vmatpush2.bf16.msra.mxu0 0
    %3016 = vmatprep.subr.bf16.mxu0 0
    %3017 = vmatpush2.bf16.msra.mxu0 0
    %3018 = vmatprep.mubr.bf16.mxu0 0
    %3019 = vmatmul.mubr.bf16.gmra.mxu0 %v2984
    %v3020 = vpop.f32.mrf.mxu0
    %v3021 = vadd.f32 %v2417, %v3020
    %v3022 = vpop.f32.mrf.mxu0
    %v3023 = vadd.f32 %v2421, %v3022
    %v3024 = vpop.f32.mrf.mxu0
    %v3025 = vpop.f32.mrf.mxu0
    %3026 = vdwg.mxu0
    %v3027 = vadd.f32 %v2977, %v3021
    %v3028 = vxor.u32 %v3027, 2147483648
    %v3029 = vmul.f32 %v3028, 1.442695
    %v3030 = vpow.pop %v3029
    %v3031 = vadd.f32 %v3030, 1.0
    %v3032 = vrcp.pop %v3031
    %v3033 = vmul.f32 1.0, %v3032
    %v3034 = vmul.f32 %v3033, %v3023
    %v3035 = vadd.f32 %v2978, %v3034
    %v3036 = vtanh.pop %v3035
    %v3037 = vsub.f32 1.0, %v3033
    %3039 = vrot.lane.b32.xlu0 %v3036, 64
    %v3040 = vpop.permute.xlu0 %3039
    %v3042 = vmul.f32 %v3037, %v3040
    %v3043 = vmul.f32 %v3033, %v2976
    %v3044 = vadd.f32 %v3042, %v3043
    %3046 = vrot.lane.b32.xlu0 %v3044, 64
    %v3047 = vpop.permute.xlu0 %3046
    %3050 = vrot.lane.b32.xlu0 %v2522, 64
    %v3051 = vpop.permute.xlu0 %3050
    %v3053 = vsel %vm1149, %v3047, %v3051
    %v3054 = vpack.c.bf16 %v3053, %v3053
    %v3055 = vld [vmem:[%s15] sm:$0xf]
    %v3056 = vld [vmem:[%s15 + $0x4] sm:$0xf]
    %v3057 = vld [vmem:[%s15 + $0x8] sm:$0xf]
    %v3058 = vld [vmem:[%s15 + $0xc] sm:$0xf]
    %v3059 = vld [vmem:[%s15 + $0x10] sm:$0xf]
    %v3060 = vld [vmem:[%s15 + $0x14] sm:$0xf]
    %v3061 = vld [vmem:[%s15 + $0x18] sm:$0xf]
    %v3062 = vld [vmem:[%s15 + $0x1c] sm:$0xf]
    %v3063 = vld [vmem:[#allocation17] sm:$0x1]
    %v3065 = vlaneseq
    %v3066 = vshrl.u32 %v3065, 7
    %v3067 = vsub.s32 0, %v3066
    %v3068 = vrot.slane %v3063, %v3067
    %v3078 = vunpack.c.l.b16 %v3055
    %v3079 = vunpack.c.l.b16 %v3056
    %v3080 = vunpack.c.l.b16 %v3057
    %v3081 = vunpack.c.l.b16 %v3058
    %v3082 = vunpack.c.l.b16 %v3059
    %v3083 = vunpack.c.l.b16 %v3060
    %v3084 = vunpack.c.l.b16 %v3061
    %v3085 = vunpack.c.l.b16 %v3062
    %v3086 = vpack.c.b16 %v3079, %v3078
    %v3087 = vpack.c.b16 %v3081, %v3080
    %v3088 = vpack.c.b16 %v3083, %v3082
    %v3089 = vpack.c.b16 %v3085, %v3084
    %v3095 = vsel %vm385, %v3054, 0
    %3097 = vmatprep.subr.bf16.mxu0 0
    %3098 = vmatpush1.bf16.msra.mxu0 0
    %3099 = vmatprep.subr.bf16.mxu0 0
    %3100 = vmatpush1.bf16.msra.mxu0 0
    %3101 = vmatprep.subr.bf16.mxu0 0
    %3102 = vmatpush1.bf16.msra.mxu0 0
    %3103 = vmatprep.subr.bf16.mxu0 0
    %3104 = vmatpush1.bf16.msra.mxu0 0
    %3105 = vmatprep.subr.bf16.mxu0 0
    %3106 = vmatpush1.bf16.msra.mxu0 %v3089
    %3107 = vmatprep.subr.bf16.mxu0 0
    %3108 = vmatpush1.bf16.msra.mxu0 %v3088
    %3109 = vmatprep.subr.bf16.mxu0 0
    %3110 = vmatpush1.bf16.msra.mxu0 %v3087
    %3111 = vmatprep.subr.bf16.mxu0 0
    %3112 = vmatpush1.bf16.msra.mxu0 %v3086
    %3113 = vmatprep.subr.bf16.mxu0 0
    %3114 = vmatpush2.bf16.msra.mxu0 0
    %3115 = vmatprep.subr.bf16.mxu0 0
    %3116 = vmatpush2.bf16.msra.mxu0 0
    %3117 = vmatprep.subr.bf16.mxu0 0
    %3118 = vmatpush2.bf16.msra.mxu0 0
    %3119 = vmatprep.subr.bf16.mxu0 0
    %3120 = vmatpush2.bf16.msra.mxu0 0
    %3121 = vmatprep.subr.bf16.mxu0 0
    %3122 = vmatpush2.bf16.msra.mxu0 0
    %3123 = vmatprep.subr.bf16.mxu0 0
    %3124 = vmatpush2.bf16.msra.mxu0 0
    %3125 = vmatprep.subr.bf16.mxu0 0
    %3126 = vmatpush2.bf16.msra.mxu0 0
    %3127 = vmatprep.subr.bf16.mxu0 0
    %3128 = vmatpush2.bf16.msra.mxu0 0
    %3129 = vmatprep.mubr.bf16.mxu0 0
    %3130 = vmatmul.mubr.bf16.gmra.mxu0 %v3095
    %v3131 = vpop.f32.mrf.mxu0
    %v3132 = vadd.f32 %v3068, %v3131
    %v3133 = vpop.f32.mrf.mxu0
    %v3134 = vpop.f32.mrf.mxu0
    %v3135 = vpop.f32.mrf.mxu0
    %3136 = vdwg.mxu0
    %vm3137 = vcmask 9216
    %3138 = vst.msk [vmem:[#allocation19] sm:$0x3] %vm3137, %v3132
    // Predicated region
    $region110: #{lightcnn_rnn_forward.1} parent=1 // pred_check
      _
    $region111: #{lightcnn_rnn_forward.1} parent=1 // pred_check_branch
      %3140 = sbr.rel (0) target = $region113
    $region112: #{lightcnn_rnn_forward.1} parent=1 // pred_region
      %s3142 = ssub.s32 32, 32
      %3143 = vsyncadd [#allocation4], %s3142
      %s3145 = sshll.u32 [#allocation19], 4
      %s3146 = int_to_ptr.vmem [resolvable:$true] %s3145
      %3148 = dma.vmem_to_hbm [thread:$0]  %s3146, 32, %s17, [#allocation4]
    $region113: #{lightcnn_rnn_forward.1} parent=1 // pred_fallthru
      _
    // Predicated region
    $region114: #{lightcnn_rnn_forward.1} parent=1 // pred_check
      _
    $region115: #{lightcnn_rnn_forward.1} parent=1 // pred_check_branch
      %3150 = sbr.rel (0) target = $region117
    $region116: #{lightcnn_rnn_forward.1} parent=1 // pred_region
      %3151 = dma.done [#allocation4], 32
    $region117: #{lightcnn_rnn_forward.1} parent=1 // pred_fallthru
      _
    %3152 = vsyncpa [#allocation3], 1
    %3153 = vsyncpa [#allocation6], 1
    %3154 = vsyncpa [#allocation9], 1
    %3155 = vsyncpa [#allocation12], 1
    %3156 = vsyncpa [#allocation15], 1
    %3157 = vsyncpa [#allocation18], 1
    %3158 = vsyncpa [#allocation4], 1

</llo_original>
